<compile_context>
chip_gen: v5e
topology: v5e:2x2
jax: 0.10.0
libtpu: 0.0.40
codegen_flags: <defaults>
</compile_context>

<pallas_src>
import functools

import jax
import jax.numpy as jnp
from jax.experimental import pallas as pl
from jax.experimental.pallas import tpu as pltpu


# ----------------------------- Fused network kernel ---------------------------
def _convnet_kernel(*refs, cfg):
    """One batch sample of the ConvNet forward, entirely in VMEM.

    refs layout (positional), D = len(cfg):
      [0]                    x_ref   (1, H0, W0, C0)      NHWC input block
      [1 + 2*i], [2 + 2*i]   w_i     (9*Cin_i, Cout_i),   b_i (1, Cout_i)
      [1 + 2*D], [2 + 2*D]   fc_w    (C, ncls),           fc_b (1, ncls)
      [3 + 2*D]              o_ref   (1, 1, ncls)
      [4 + 2*D]              xp      (1, Hmax+2, Wmax+2, Cmax) VMEM scratch
    """
    depth = len(cfg)
    x_ref = refs[0]
    w_refs = [refs[1 + 2 * i] for i in range(depth)]
    b_refs = [refs[2 + 2 * i] for i in range(depth)]
    fcw_ref = refs[1 + 2 * depth]
    fcb_ref = refs[2 + 2 * depth]
    o_ref = refs[3 + 2 * depth]
    xp = refs[4 + 2 * depth]

    act = x_ref[...].astype(jnp.float32)                    # (1, H0, W0, C0)

    for i, (H, W, Cin, Cout, relu, pool) in enumerate(cfg):
        # ---- padding=1: zero ONLY the 1-px border of this layer's
        # sub-region, then write the activation into the interior.
        zrow = jnp.zeros((1, 1, W + 2, Cin), jnp.float32)
        zcol = jnp.zeros((1, H, 1, Cin), jnp.float32)
        xp[:, 0:1, 0:W + 2, 0:Cin] = zrow
        xp[:, H + 1:H + 2, 0:W + 2, 0:Cin] = zrow
        xp[:, 1:1 + H, 0:1, 0:Cin] = zcol
        xp[:, 1:1 + H, W + 1:W + 2, 0:Cin] = zcol
        xp[:, 1:1 + H, 1:1 + W, 0:Cin] = act

        # ---- 3x3 conv: nine accumulated K=Cin dots (taps stay lane-resident;
        # no 9-way lane concatenate / giant im2col slab).
        acc = None
        t = 0
        for ky in range(3):
            for kx in range(3):
                tap = xp[:, ky:ky + H, kx:kx + W, 0:Cin].reshape(H * W, Cin)
                d = jnp.dot(tap, w_refs[i][t * Cin:(t + 1) * Cin, :],
                            preferred_element_type=jnp.float32)
                acc = d if acc is None else acc + d
                t += 1
        acc = acc + b_refs[i][...]                           # (1, Cout) bcast
        if relu:
            acc = jnp.maximum(acc, 0.0)
        act = acc.reshape(1, H, W, Cout)

        # ---- 2x2 max pool, layout-preserving: stage the conv output in the
        # scratch (its padded-input data is dead here) and read the four pool
        # taps back with stride-2 ref loads; combine with VPU maxima.
        if pool:
            h2, w2 = H // 2, W // 2
            xp[:, 0:H, 0:W, 0:Cout] = act
            p00 = xp[:, pl.ds(0, h2, stride=2), pl.ds(0, w2, stride=2), 0:Cout]
            p01 = xp[:, pl.ds(0, h2, stride=2), pl.ds(1, w2, stride=2), 0:Cout]
            p10 = xp[:, pl.ds(1, h2, stride=2), pl.ds(0, w2, stride=2), 0:Cout]
            p11 = xp[:, pl.ds(1, h2, stride=2), pl.ds(1, w2, stride=2), 0:Cout]
            act = jnp.maximum(jnp.maximum(p00, p01), jnp.maximum(p10, p11))

    # ---- head: global spatial mean -> tiny FC, fused in the same kernel.
    _, Hf, Wf, C = act.shape
    feat = jnp.sum(act.reshape(Hf * Wf, C), axis=0, keepdims=True)
    feat = feat * (1.0 / (Hf * Wf))                          # (1, C)
    out = (jnp.dot(feat, fcw_ref[...], preferred_element_type=jnp.float32)
           + fcb_ref[...])                                   # (1, ncls)
    o_ref[...] = out.reshape(o_ref.shape).astype(o_ref.dtype)


# ---------------------------------- Wrapper ------------------------------------
def convnet_forward(x_nchw, params, fc_w, fc_b, depth):
    """ConvNet.forward.  x_nchw: (N, C, H, W) float32 (PyTorch layout)."""
    num_channels = params[0][0].shape[-1]
    N, cin0, H, W = x_nchw.shape

    # Working lane width: layer-0 channels padded so all layers share full-lane
    # tiles.  Channel pad + NCHW->NHWC transpose fused in one expression.
    C = max(num_channels, ((cin0 + 7) // 8) * 8)
    x = jnp.transpose(
        jnp.pad(x_nchw.astype(jnp.float32),
                ((0, 0), (0, C - cin0), (0, 0), (0, 0))),
        (0, 2, 3, 1))                                        # (N, H, W, C)

    cfg, flat_w, flat_b = [], [], []
    Hc, Wc = H, W
    for i, (w, b) in enumerate(params):
        _, _, w_cin, cout = w.shape
        if i == 0:
            w = jnp.pad(w, ((0, 0), (0, 0), (0, C - w_cin), (0, 0)))
            w_cin = C
        relu = (i != depth - 1)      # mirrors ConvBlock(relu=(i != depth-1))
        pool = (i < 4)               # mirrors ConvBlock(pool=(i < 4))
        if pool:
            assert Hc % 2 == 0 and Wc % 2 == 0, "pooled layers need even H, W"
        cfg.append((Hc, Wc, w_cin, cout, relu, pool))
        flat_w.append(w.reshape(9 * w_cin, cout).astype(jnp.float32))
        flat_b.append(b.reshape(1, cout).astype(jnp.float32))
        if pool:
            Hc //= 2
            Wc //= 2

    ncls = fc_w.shape[-1]
    kernel = functools.partial(_convnet_kernel, cfg=tuple(cfg))

    inputs = [x]
    in_specs = [pl.BlockSpec((1, H, W, C), lambda n: (n, 0, 0, 0))]
    for wf, bf in zip(flat_w, flat_b):
        inputs += [wf, bf]
        in_specs += [pl.BlockSpec(wf.shape, lambda n: (0, 0)),
                     pl.BlockSpec(bf.shape, lambda n: (0, 0))]
    inputs += [fc_w.astype(jnp.float32),
               fc_b.reshape(1, ncls).astype(jnp.float32)]
    in_specs += [pl.BlockSpec(fc_w.shape, lambda n: (0, 0)),
                 pl.BlockSpec((1, ncls), lambda n: (0, 0))]

    # One padded-activation scratch sized to the LARGEST layer (max-of-layers
    # VMEM, not sum); every layer reuses its top-left sub-region.  Raise
    # vmem_limit_bytes in CompilerParams if N/H/W/channels are scaled up.
    max_h = max(h for (h, _, _, _, _, _) in cfg)
    max_w = max(wd for (_, wd, _, _, _, _) in cfg)
    max_c = max(c for (_, _, c, _, _, _) in cfg)
    scratch = [pltpu.VMEM((1, max_h + 2, max_w + 2, max_c), jnp.float32)]

    out = pl.pallas_call(
        kernel,
        out_shape=jax.ShapeDtypeStruct((N, 1, ncls), jnp.float32),
        grid=(N,),
        in_specs=in_specs,
        out_specs=pl.BlockSpec((1, 1, ncls), lambda n: (n, 0, 0)),
        scratch_shapes=scratch,
        compiler_params=pltpu.CompilerParams(
            dimension_semantics=("parallel",)),
    )(*inputs)
    return out.reshape(N, ncls)


# ------------------------------ Parameter setup -------------------------------
def init_params(key, depth, num_channels, num_classes, grayscale=False):
    params = []
    indim0 = 1 if grayscale else 3
    for i in range(depth):
        cin = indim0 if i == 0 else num_channels
        key, kw, kb = jax.random.split(key, 3)
        std = (2.0 / (9 * cin)) ** 0.5
        w = jax.random.normal(kw, (3, 3, cin, num_channels), jnp.float32) * std
        b = jax.random.normal(kb, (num_channels,), jnp.float32) * 0.01
        params.append((w, b))
    key, kw, kb = jax.random.split(key, 3)
    fc_w = jax.random.normal(kw, (num_channels, num_classes),
                             jnp.float32) / (num_channels ** 0.5)
    fc_b = jax.random.normal(kb, (num_classes,), jnp.float32) * 0.01
    return params, fc_w, fc_b


# ------------------------------ Plain-JAX reference ----------------------------
def reference_forward(x_nchw, params, fc_w, fc_b, depth):
    """Plain-JAX reference mirroring the PyTorch module (for validation)."""
    h = jnp.transpose(x_nchw, (0, 2, 3, 1))
    for i, (w, b) in enumerate(params):
        h = jax.lax.conv_general_dilated(
            h, w, window_strides=(1, 1), padding="SAME",
            dimension_numbers=("NHWC", "HWIO", "NHWC")) + b
        if i != depth - 1:
            h = jnp.maximum(h, 0.0)
        if i < 4:
            N, H, W, C = h.shape
            h = h.reshape(N, H // 2, 2, W // 2, 2, C).max(axis=(2, 4))
    feat = h.mean(axis=(1, 2))
    return feat @ fc_w + fc_b


# ------------------------------------ Main -------------------------------------
if __name__ == "__main__":
    depth = 3
    num_channels = 32
    num_classes = 5

    key = jax.random.PRNGKey(0)
    key, kx = jax.random.split(key)
    x = jax.random.normal(kx, (2, 3, 16, 16), jnp.float32)   # NCHW, like PyTorch
    params, fc_w, fc_b = init_params(key, depth, num_channels, num_classes)

    preds = jax.block_until_ready(convnet_forward(x, params, fc_w, fc_b, depth))
    ref = jax.block_until_ready(reference_forward(x, params, fc_w, fc_b, depth))

    assert preds.shape == (2, num_classes), preds.shape
    assert jnp.allclose(preds, ref, rtol=1e-4, atol=1e-4), (preds, ref)
    print("KERNEL_OK")
</pallas_src>

<mosaic_0001>
module attributes {stable_mosaic.version = 11 : i64} {
  func.func @_convnet_kernel(%arg0: i32, %arg1: memref<1x16x16x32xf32, #tpu.memory_space<vmem>>, %arg2: memref<288x32xf32, #tpu.memory_space<vmem>>, %arg3: memref<1x32xf32, #tpu.memory_space<vmem>>, %arg4: memref<288x32xf32, #tpu.memory_space<vmem>>, %arg5: memref<1x32xf32, #tpu.memory_space<vmem>>, %arg6: memref<288x32xf32, #tpu.memory_space<vmem>>, %arg7: memref<1x32xf32, #tpu.memory_space<vmem>>, %arg8: memref<32x5xf32, #tpu.memory_space<vmem>>, %arg9: memref<1x5xf32, #tpu.memory_space<vmem>>, %arg10: memref<1x1x5xf32, #tpu.memory_space<vmem>>, %arg11: memref<1x18x18x32xf32, #tpu.memory_space<vmem>>) attributes {dimension_semantics = [#tpu.dimension_semantics<parallel>], iteration_bounds = array<i64: 2>, scalar_prefetch = 0 : i64, scratch_operands = 1 : i64, tpu.core_type = #tpu.core_type<tc>, window_params = [{transform_indices = @transform_0, window_bounds = array<i64: 1, 16, 16, 32>}, {pipeline_mode = #tpu.pipeline_mode<synchronous>, transform_indices = @transform_1, window_bounds = array<i64: 288, 32>}, {pipeline_mode = #tpu.pipeline_mode<synchronous>, transform_indices = @transform_2, window_bounds = array<i64: 1, 32>}, {pipeline_mode = #tpu.pipeline_mode<synchronous>, transform_indices = @transform_3, window_bounds = array<i64: 288, 32>}, {pipeline_mode = #tpu.pipeline_mode<synchronous>, transform_indices = @transform_4, window_bounds = array<i64: 1, 32>}, {pipeline_mode = #tpu.pipeline_mode<synchronous>, transform_indices = @transform_5, window_bounds = array<i64: 288, 32>}, {pipeline_mode = #tpu.pipeline_mode<synchronous>, transform_indices = @transform_6, window_bounds = array<i64: 1, 32>}, {pipeline_mode = #tpu.pipeline_mode<synchronous>, transform_indices = @transform_7, window_bounds = array<i64: 32, 5>}, {pipeline_mode = #tpu.pipeline_mode<synchronous>, transform_indices = @transform_8, window_bounds = array<i64: 1, 5>}, {transform_indices = @transform_9, window_bounds = array<i64: 1, 1, 5>}]} {
    %c0 = arith.constant 0 : index
    %c0_0 = arith.constant 0 : index
    %c0_1 = arith.constant 0 : index
    %c0_2 = arith.constant 0 : index
    %0 = vector.load %arg1[%c0, %c0_0, %c0_1, %c0_2] : memref<1x16x16x32xf32, #tpu.memory_space<vmem>>, vector<1x16x16x32xf32>
    %cst = arith.constant 0.000000e+00 : f32
    %1 = vector.broadcast %cst : f32 to vector<1x1x18x32xf32>
    %cst_3 = arith.constant 0.000000e+00 : f32
    %2 = vector.broadcast %cst_3 : f32 to vector<1x16x1x32xf32>
    %c0_4 = arith.constant 0 : index
    %c0_5 = arith.constant 0 : index
    %c0_6 = arith.constant 0 : index
    %c0_7 = arith.constant 0 : index
    %3 = vector.load %arg11[%c0_4, %c0_5, %c0_6, %c0_7] : memref<1x18x18x32xf32, #tpu.memory_space<vmem>>, vector<1x1x18x32xf32>
    tpu.vector_store %arg11[%c0_4, %c0_5, %c0_6, %c0_7], %1 {strides = array<i32>} : memref<1x18x18x32xf32, #tpu.memory_space<vmem>>, vector<1x1x18x32xf32>,
    %c0_8 = arith.constant 0 : index
    %c17 = arith.constant 17 : index
    %c0_9 = arith.constant 0 : index
    %c0_10 = arith.constant 0 : index
    %4 = vector.load %arg11[%c0_8, %c17, %c0_9, %c0_10] : memref<1x18x18x32xf32, #tpu.memory_space<vmem>>, vector<1x1x18x32xf32>
    tpu.vector_store %arg11[%c0_8, %c17, %c0_9, %c0_10], %1 {strides = array<i32>} : memref<1x18x18x32xf32, #tpu.memory_space<vmem>>, vector<1x1x18x32xf32>,
    %c0_11 = arith.constant 0 : index
    %c1 = arith.constant 1 : index
    %c0_12 = arith.constant 0 : index
    %c0_13 = arith.constant 0 : index
    %5 = vector.load %arg11[%c0_11, %c1, %c0_12, %c0_13] : memref<1x18x18x32xf32, #tpu.memory_space<vmem>>, vector<1x16x1x32xf32>
    tpu.vector_store %arg11[%c0_11, %c1, %c0_12, %c0_13], %2 {strides = array<i32>} : memref<1x18x18x32xf32, #tpu.memory_space<vmem>>, vector<1x16x1x32xf32>,
    %c0_14 = arith.constant 0 : index
    %c1_15 = arith.constant 1 : index
    %c17_16 = arith.constant 17 : index
    %c0_17 = arith.constant 0 : index
    %6 = vector.load %arg11[%c0_14, %c1_15, %c17_16, %c0_17] : memref<1x18x18x32xf32, #tpu.memory_space<vmem>>, vector<1x16x1x32xf32>
    tpu.vector_store %arg11[%c0_14, %c1_15, %c17_16, %c0_17], %2 {strides = array<i32>} : memref<1x18x18x32xf32, #tpu.memory_space<vmem>>, vector<1x16x1x32xf32>,
    %c0_18 = arith.constant 0 : index
    %c1_19 = arith.constant 1 : index
    %c1_20 = arith.constant 1 : index
    %c0_21 = arith.constant 0 : index
    %7 = vector.load %arg11[%c0_18, %c1_19, %c1_20, %c0_21] : memref<1x18x18x32xf32, #tpu.memory_space<vmem>>, vector<1x16x16x32xf32>
    tpu.vector_store %arg11[%c0_18, %c1_19, %c1_20, %c0_21], %0 {strides = array<i32>} : memref<1x18x18x32xf32, #tpu.memory_space<vmem>>, vector<1x16x16x32xf32>,
    %c0_22 = arith.constant 0 : index
    %c0_23 = arith.constant 0 : index
    %c0_24 = arith.constant 0 : index
    %c0_25 = arith.constant 0 : index
    %8 = vector.load %arg11[%c0_22, %c0_23, %c0_24, %c0_25] : memref<1x18x18x32xf32, #tpu.memory_space<vmem>>, vector<1x16x16x32xf32>
    %9 = vector.shape_cast %8 : vector<1x16x16x32xf32> to vector<256x32xf32>
    %c0_26 = arith.constant 0 : index
    %c0_27 = arith.constant 0 : index
    %10 = vector.load %arg2[%c0_26, %c0_27] : memref<288x32xf32, #tpu.memory_space<vmem>>, vector<32x32xf32>
    %cst_28 = arith.constant dense<0.000000e+00> : vector<256x32xf32>
    %11 = tpu.matmul %9, %10, %cst_28 {dimension_numbers = #tpu.dot_dimension_numbers<[1], [0], [0], [1], [0, 0, 1, 1], [], []>} : vector<256x32xf32>, vector<32x32xf32>, vector<256x32xf32> -> vector<256x32xf32>
    %c0_29 = arith.constant 0 : index
    %c0_30 = arith.constant 0 : index
    %c1_31 = arith.constant 1 : index
    %c0_32 = arith.constant 0 : index
    %12 = vector.load %arg11[%c0_29, %c0_30, %c1_31, %c0_32] : memref<1x18x18x32xf32, #tpu.memory_space<vmem>>, vector<1x16x16x32xf32>
    %13 = vector.shape_cast %12 : vector<1x16x16x32xf32> to vector<256x32xf32>
    %c32 = arith.constant 32 : index
    %c0_33 = arith.constant 0 : index
    %14 = vector.load %arg2[%c32, %c0_33] : memref<288x32xf32, #tpu.memory_space<vmem>>, vector<32x32xf32>
    %cst_34 = arith.constant dense<0.000000e+00> : vector<256x32xf32>
    %15 = tpu.matmul %13, %14, %cst_34 {dimension_numbers = #tpu.dot_dimension_numbers<[1], [0], [0], [1], [0, 0, 1, 1], [], []>} : vector<256x32xf32>, vector<32x32xf32>, vector<256x32xf32> -> vector<256x32xf32>
    %16 = arith.addf %11, %15 : vector<256x32xf32>
    %c0_35 = arith.constant 0 : index
    %c0_36 = arith.constant 0 : index
    %c2 = arith.constant 2 : index
    %c0_37 = arith.constant 0 : index
    %17 = vector.load %arg11[%c0_35, %c0_36, %c2, %c0_37] : memref<1x18x18x32xf32, #tpu.memory_space<vmem>>, vector<1x16x16x32xf32>
    %18 = vector.shape_cast %17 : vector<1x16x16x32xf32> to vector<256x32xf32>
    %c64 = arith.constant 64 : index
    %c0_38 = arith.constant 0 : index
    %19 = vector.load %arg2[%c64, %c0_38] : memref<288x32xf32, #tpu.memory_space<vmem>>, vector<32x32xf32>
    %cst_39 = arith.constant dense<0.000000e+00> : vector<256x32xf32>
    %20 = tpu.matmul %18, %19, %cst_39 {dimension_numbers = #tpu.dot_dimension_numbers<[1], [0], [0], [1], [0, 0, 1, 1], [], []>} : vector<256x32xf32>, vector<32x32xf32>, vector<256x32xf32> -> vector<256x32xf32>
    %21 = arith.addf %16, %20 : vector<256x32xf32>
    %c0_40 = arith.constant 0 : index
    %c1_41 = arith.constant 1 : index
    %c0_42 = arith.constant 0 : index
    %c0_43 = arith.constant 0 : index
    %22 = vector.load %arg11[%c0_40, %c1_41, %c0_42, %c0_43] : memref<1x18x18x32xf32, #tpu.memory_space<vmem>>, vector<1x16x16x32xf32>
    %23 = vector.shape_cast %22 : vector<1x16x16x32xf32> to vector<256x32xf32>
    %c96 = arith.constant 96 : index
    %c0_44 = arith.constant 0 : index
    %24 = vector.load %arg2[%c96, %c0_44] : memref<288x32xf32, #tpu.memory_space<vmem>>, vector<32x32xf32>
    %cst_45 = arith.constant dense<0.000000e+00> : vector<256x32xf32>
    %25 = tpu.matmul %23, %24, %cst_45 {dimension_numbers = #tpu.dot_dimension_numbers<[1], [0], [0], [1], [0, 0, 1, 1], [], []>} : vector<256x32xf32>, vector<32x32xf32>, vector<256x32xf32> -> vector<256x32xf32>
    %26 = arith.addf %21, %25 : vector<256x32xf32>
    %c0_46 = arith.constant 0 : index
    %c1_47 = arith.constant 1 : index
    %c1_48 = arith.constant 1 : index
    %c0_49 = arith.constant 0 : index
    %27 = vector.load %arg11[%c0_46, %c1_47, %c1_48, %c0_49] : memref<1x18x18x32xf32, #tpu.memory_space<vmem>>, vector<1x16x16x32xf32>
    %28 = vector.shape_cast %27 : vector<1x16x16x32xf32> to vector<256x32xf32>
    %c128 = arith.constant 128 : index
    %c0_50 = arith.constant 0 : index
    %29 = vector.load %arg2[%c128, %c0_50] : memref<288x32xf32, #tpu.memory_space<vmem>>, vector<32x32xf32>
    %cst_51 = arith.constant dense<0.000000e+00> : vector<256x32xf32>
    %30 = tpu.matmul %28, %29, %cst_51 {dimension_numbers = #tpu.dot_dimension_numbers<[1], [0], [0], [1], [0, 0, 1, 1], [], []>} : vector<256x32xf32>, vector<32x32xf32>, vector<256x32xf32> -> vector<256x32xf32>
    %31 = arith.addf %26, %30 : vector<256x32xf32>
    %c0_52 = arith.constant 0 : index
    %c1_53 = arith.constant 1 : index
    %c2_54 = arith.constant 2 : index
    %c0_55 = arith.constant 0 : index
    %32 = vector.load %arg11[%c0_52, %c1_53, %c2_54, %c0_55] : memref<1x18x18x32xf32, #tpu.memory_space<vmem>>, vector<1x16x16x32xf32>
    %33 = vector.shape_cast %32 : vector<1x16x16x32xf32> to vector<256x32xf32>
    %c160 = arith.constant 160 : index
    %c0_56 = arith.constant 0 : index
    %34 = vector.load %arg2[%c160, %c0_56] : memref<288x32xf32, #tpu.memory_space<vmem>>, vector<32x32xf32>
    %cst_57 = arith.constant dense<0.000000e+00> : vector<256x32xf32>
    %35 = tpu.matmul %33, %34, %cst_57 {dimension_numbers = #tpu.dot_dimension_numbers<[1], [0], [0], [1], [0, 0, 1, 1], [], []>} : vector<256x32xf32>, vector<32x32xf32>, vector<256x32xf32> -> vector<256x32xf32>
    %36 = arith.addf %31, %35 : vector<256x32xf32>
    %c0_58 = arith.constant 0 : index
    %c2_59 = arith.constant 2 : index
    %c0_60 = arith.constant 0 : index
    %c0_61 = arith.constant 0 : index
    %37 = vector.load %arg11[%c0_58, %c2_59, %c0_60, %c0_61] : memref<1x18x18x32xf32, #tpu.memory_space<vmem>>, vector<1x16x16x32xf32>
    %38 = vector.shape_cast %37 : vector<1x16x16x32xf32> to vector<256x32xf32>
    %c192 = arith.constant 192 : index
    %c0_62 = arith.constant 0 : index
    %39 = vector.load %arg2[%c192, %c0_62] : memref<288x32xf32, #tpu.memory_space<vmem>>, vector<32x32xf32>
    %cst_63 = arith.constant dense<0.000000e+00> : vector<256x32xf32>
    %40 = tpu.matmul %38, %39, %cst_63 {dimension_numbers = #tpu.dot_dimension_numbers<[1], [0], [0], [1], [0, 0, 1, 1], [], []>} : vector<256x32xf32>, vector<32x32xf32>, vector<256x32xf32> -> vector<256x32xf32>
    %41 = arith.addf %36, %40 : vector<256x32xf32>
    %c0_64 = arith.constant 0 : index
    %c2_65 = arith.constant 2 : index
    %c1_66 = arith.constant 1 : index
    %c0_67 = arith.constant 0 : index
    %42 = vector.load %arg11[%c0_64, %c2_65, %c1_66, %c0_67] : memref<1x18x18x32xf32, #tpu.memory_space<vmem>>, vector<1x16x16x32xf32>
    %43 = vector.shape_cast %42 : vector<1x16x16x32xf32> to vector<256x32xf32>
    %c224 = arith.constant 224 : index
    %c0_68 = arith.constant 0 : index
    %44 = vector.load %arg2[%c224, %c0_68] : memref<288x32xf32, #tpu.memory_space<vmem>>, vector<32x32xf32>
    %cst_69 = arith.constant dense<0.000000e+00> : vector<256x32xf32>
    %45 = tpu.matmul %43, %44, %cst_69 {dimension_numbers = #tpu.dot_dimension_numbers<[1], [0], [0], [1], [0, 0, 1, 1], [], []>} : vector<256x32xf32>, vector<32x32xf32>, vector<256x32xf32> -> vector<256x32xf32>
    %46 = arith.addf %41, %45 : vector<256x32xf32>
    %c0_70 = arith.constant 0 : index
    %c2_71 = arith.constant 2 : index
    %c2_72 = arith.constant 2 : index
    %c0_73 = arith.constant 0 : index
    %47 = vector.load %arg11[%c0_70, %c2_71, %c2_72, %c0_73] : memref<1x18x18x32xf32, #tpu.memory_space<vmem>>, vector<1x16x16x32xf32>
    %48 = vector.shape_cast %47 : vector<1x16x16x32xf32> to vector<256x32xf32>
    %c256 = arith.constant 256 : index
    %c0_74 = arith.constant 0 : index
    %49 = vector.load %arg2[%c256, %c0_74] : memref<288x32xf32, #tpu.memory_space<vmem>>, vector<32x32xf32>
    %cst_75 = arith.constant dense<0.000000e+00> : vector<256x32xf32>
    %50 = tpu.matmul %48, %49, %cst_75 {dimension_numbers = #tpu.dot_dimension_numbers<[1], [0], [0], [1], [0, 0, 1, 1], [], []>} : vector<256x32xf32>, vector<32x32xf32>, vector<256x32xf32> -> vector<256x32xf32>
    %51 = arith.addf %46, %50 : vector<256x32xf32>
    %c0_76 = arith.constant 0 : index
    %c0_77 = arith.constant 0 : index
    %52 = vector.load %arg3[%c0_76, %c0_77] : memref<1x32xf32, #tpu.memory_space<vmem>>, vector<1x32xf32>
    %53 = vector.broadcast %52 : vector<1x32xf32> to vector<256x32xf32>
    %54 = arith.addf %51, %53 : vector<256x32xf32>
    %cst_78 = arith.constant 0.000000e+00 : f32
    %55 = vector.broadcast %cst_78 : f32 to vector<256x32xf32>
    %56 = arith.maximumf %54, %55 : vector<256x32xf32>
    %57 = vector.shape_cast %56 : vector<256x32xf32> to vector<1x16x16x32xf32>
    %c0_79 = arith.constant 0 : index
    %c0_80 = arith.constant 0 : index
    %c0_81 = arith.constant 0 : index
    %c0_82 = arith.constant 0 : index
    %58 = vector.load %arg11[%c0_79, %c0_80, %c0_81, %c0_82] : memref<1x18x18x32xf32, #tpu.memory_space<vmem>>, vector<1x16x16x32xf32>
    tpu.vector_store %arg11[%c0_79, %c0_80, %c0_81, %c0_82], %57 {strides = array<i32>} : memref<1x18x18x32xf32, #tpu.memory_space<vmem>>, vector<1x16x16x32xf32>,
    %c0_83 = arith.constant 0 : index
    %c0_84 = arith.constant 0 : index
    %c0_85 = arith.constant 0 : index
    %c0_86 = arith.constant 0 : index
    %59 = tpu.strided_load %arg11[%c0_83, %c0_84, %c0_85, %c0_86] {strides = array<i32: 1, 2, 2, 1>} : memref<1x18x18x32xf32, #tpu.memory_space<vmem>>, vector<1x8x8x32xf32>
    %c0_87 = arith.constant 0 : index
    %c0_88 = arith.constant 0 : index
    %c1_89 = arith.constant 1 : index
    %c0_90 = arith.constant 0 : index
    %60 = tpu.strided_load %arg11[%c0_87, %c0_88, %c1_89, %c0_90] {strides = array<i32: 1, 2, 2, 1>} : memref<1x18x18x32xf32, #tpu.memory_space<vmem>>, vector<1x8x8x32xf32>
    %c0_91 = arith.constant 0 : index
    %c1_92 = arith.constant 1 : index
    %c0_93 = arith.constant 0 : index
    %c0_94 = arith.constant 0 : index
    %61 = tpu.strided_load %arg11[%c0_91, %c1_92, %c0_93, %c0_94] {strides = array<i32: 1, 2, 2, 1>} : memref<1x18x18x32xf32, #tpu.memory_space<vmem>>, vector<1x8x8x32xf32>
    %c0_95 = arith.constant 0 : index
    %c1_96 = arith.constant 1 : index
    %c1_97 = arith.constant 1 : index
    %c0_98 = arith.constant 0 : index
    %62 = tpu.strided_load %arg11[%c0_95, %c1_96, %c1_97, %c0_98] {strides = array<i32: 1, 2, 2, 1>} : memref<1x18x18x32xf32, #tpu.memory_space<vmem>>, vector<1x8x8x32xf32>
    %63 = arith.maximumf %59, %60 : vector<1x8x8x32xf32>
    %64 = arith.maximumf %61, %62 : vector<1x8x8x32xf32>
    %65 = arith.maximumf %63, %64 : vector<1x8x8x32xf32>
    %cst_99 = arith.constant 0.000000e+00 : f32
    %66 = vector.broadcast %cst_99 : f32 to vector<1x1x10x32xf32>
    %cst_100 = arith.constant 0.000000e+00 : f32
    %67 = vector.broadcast %cst_100 : f32 to vector<1x8x1x32xf32>
    %c0_101 = arith.constant 0 : index
    %c0_102 = arith.constant 0 : index
    %c0_103 = arith.constant 0 : index
    %c0_104 = arith.constant 0 : index
    %68 = vector.load %arg11[%c0_101, %c0_102, %c0_103, %c0_104] : memref<1x18x18x32xf32, #tpu.memory_space<vmem>>, vector<1x1x10x32xf32>
    tpu.vector_store %arg11[%c0_101, %c0_102, %c0_103, %c0_104], %66 {strides = array<i32>} : memref<1x18x18x32xf32, #tpu.memory_space<vmem>>, vector<1x1x10x32xf32>,
    %c0_105 = arith.constant 0 : index
    %c9 = arith.constant 9 : index
    %c0_106 = arith.constant 0 : index
    %c0_107 = arith.constant 0 : index
    %69 = vector.load %arg11[%c0_105, %c9, %c0_106, %c0_107] : memref<1x18x18x32xf32, #tpu.memory_space<vmem>>, vector<1x1x10x32xf32>
    tpu.vector_store %arg11[%c0_105, %c9, %c0_106, %c0_107], %66 {strides = array<i32>} : memref<1x18x18x32xf32, #tpu.memory_space<vmem>>, vector<1x1x10x32xf32>,
    %c0_108 = arith.constant 0 : index
    %c1_109 = arith.constant 1 : index
    %c0_110 = arith.constant 0 : index
    %c0_111 = arith.constant 0 : index
    %70 = vector.load %arg11[%c0_108, %c1_109, %c0_110, %c0_111] : memref<1x18x18x32xf32, #tpu.memory_space<vmem>>, vector<1x8x1x32xf32>
    tpu.vector_store %arg11[%c0_108, %c1_109, %c0_110, %c0_111], %67 {strides = array<i32>} : memref<1x18x18x32xf32, #tpu.memory_space<vmem>>, vector<1x8x1x32xf32>,
    %c0_112 = arith.constant 0 : index
    %c1_113 = arith.constant 1 : index
    %c9_114 = arith.constant 9 : index
    %c0_115 = arith.constant 0 : index
    %71 = vector.load %arg11[%c0_112, %c1_113, %c9_114, %c0_115] : memref<1x18x18x32xf32, #tpu.memory_space<vmem>>, vector<1x8x1x32xf32>
    tpu.vector_store %arg11[%c0_112, %c1_113, %c9_114, %c0_115], %67 {strides = array<i32>} : memref<1x18x18x32xf32, #tpu.memory_space<vmem>>, vector<1x8x1x32xf32>,
    %c0_116 = arith.constant 0 : index
    %c1_117 = arith.constant 1 : index
    %c1_118 = arith.constant 1 : index
    %c0_119 = arith.constant 0 : index
    %72 = vector.load %arg11[%c0_116, %c1_117, %c1_118, %c0_119] : memref<1x18x18x32xf32, #tpu.memory_space<vmem>>, vector<1x8x8x32xf32>
    tpu.vector_store %arg11[%c0_116, %c1_117, %c1_118, %c0_119], %65 {strides = array<i32>} : memref<1x18x18x32xf32, #tpu.memory_space<vmem>>, vector<1x8x8x32xf32>,
    %c0_120 = arith.constant 0 : index
    %c0_121 = arith.constant 0 : index
    %c0_122 = arith.constant 0 : index
    %c0_123 = arith.constant 0 : index
    %73 = vector.load %arg11[%c0_120, %c0_121, %c0_122, %c0_123] : memref<1x18x18x32xf32, #tpu.memory_space<vmem>>, vector<1x8x8x32xf32>
    %74 = vector.shape_cast %73 : vector<1x8x8x32xf32> to vector<64x32xf32>
    %c0_124 = arith.constant 0 : index
    %c0_125 = arith.constant 0 : index
    %75 = vector.load %arg4[%c0_124, %c0_125] : memref<288x32xf32, #tpu.memory_space<vmem>>, vector<32x32xf32>
    %cst_126 = arith.constant dense<0.000000e+00> : vector<64x32xf32>
    %76 = tpu.matmul %74, %75, %cst_126 {dimension_numbers = #tpu.dot_dimension_numbers<[1], [0], [0], [1], [0, 0, 1, 1], [], []>} : vector<64x32xf32>, vector<32x32xf32>, vector<64x32xf32> -> vector<64x32xf32>
    %c0_127 = arith.constant 0 : index
    %c0_128 = arith.constant 0 : index
    %c1_129 = arith.constant 1 : index
    %c0_130 = arith.constant 0 : index
    %77 = vector.load %arg11[%c0_127, %c0_128, %c1_129, %c0_130] : memref<1x18x18x32xf32, #tpu.memory_space<vmem>>, vector<1x8x8x32xf32>
    %78 = vector.shape_cast %77 : vector<1x8x8x32xf32> to vector<64x32xf32>
    %c32_131 = arith.constant 32 : index
    %c0_132 = arith.constant 0 : index
    %79 = vector.load %arg4[%c32_131, %c0_132] : memref<288x32xf32, #tpu.memory_space<vmem>>, vector<32x32xf32>
    %cst_133 = arith.constant dense<0.000000e+00> : vector<64x32xf32>
    %80 = tpu.matmul %78, %79, %cst_133 {dimension_numbers = #tpu.dot_dimension_numbers<[1], [0], [0], [1], [0, 0, 1, 1], [], []>} : vector<64x32xf32>, vector<32x32xf32>, vector<64x32xf32> -> vector<64x32xf32>
    %81 = arith.addf %76, %80 : vector<64x32xf32>
    %c0_134 = arith.constant 0 : index
    %c0_135 = arith.constant 0 : index
    %c2_136 = arith.constant 2 : index
    %c0_137 = arith.constant 0 : index
    %82 = vector.load %arg11[%c0_134, %c0_135, %c2_136, %c0_137] : memref<1x18x18x32xf32, #tpu.memory_space<vmem>>, vector<1x8x8x32xf32>
    %83 = vector.shape_cast %82 : vector<1x8x8x32xf32> to vector<64x32xf32>
    %c64_138 = arith.constant 64 : index
    %c0_139 = arith.constant 0 : index
    %84 = vector.load %arg4[%c64_138, %c0_139] : memref<288x32xf32, #tpu.memory_space<vmem>>, vector<32x32xf32>
    %cst_140 = arith.constant dense<0.000000e+00> : vector<64x32xf32>
    %85 = tpu.matmul %83, %84, %cst_140 {dimension_numbers = #tpu.dot_dimension_numbers<[1], [0], [0], [1], [0, 0, 1, 1], [], []>} : vector<64x32xf32>, vector<32x32xf32>, vector<64x32xf32> -> vector<64x32xf32>
    %86 = arith.addf %81, %85 : vector<64x32xf32>
    %c0_141 = arith.constant 0 : index
    %c1_142 = arith.constant 1 : index
    %c0_143 = arith.constant 0 : index
    %c0_144 = arith.constant 0 : index
    %87 = vector.load %arg11[%c0_141, %c1_142, %c0_143, %c0_144] : memref<1x18x18x32xf32, #tpu.memory_space<vmem>>, vector<1x8x8x32xf32>
    %88 = vector.shape_cast %87 : vector<1x8x8x32xf32> to vector<64x32xf32>
    %c96_145 = arith.constant 96 : index
    %c0_146 = arith.constant 0 : index
    %89 = vector.load %arg4[%c96_145, %c0_146] : memref<288x32xf32, #tpu.memory_space<vmem>>, vector<32x32xf32>
    %cst_147 = arith.constant dense<0.000000e+00> : vector<64x32xf32>
    %90 = tpu.matmul %88, %89, %cst_147 {dimension_numbers = #tpu.dot_dimension_numbers<[1], [0], [0], [1], [0, 0, 1, 1], [], []>} : vector<64x32xf32>, vector<32x32xf32>, vector<64x32xf32> -> vector<64x32xf32>
    %91 = arith.addf %86, %90 : vector<64x32xf32>
    %c0_148 = arith.constant 0 : index
    %c1_149 = arith.constant 1 : index
    %c1_150 = arith.constant 1 : index
    %c0_151 = arith.constant 0 : index
    %92 = vector.load %arg11[%c0_148, %c1_149, %c1_150, %c0_151] : memref<1x18x18x32xf32, #tpu.memory_space<vmem>>, vector<1x8x8x32xf32>
    %93 = vector.shape_cast %92 : vector<1x8x8x32xf32> to vector<64x32xf32>
    %c128_152 = arith.constant 128 : index
    %c0_153 = arith.constant 0 : index
    %94 = vector.load %arg4[%c128_152, %c0_153] : memref<288x32xf32, #tpu.memory_space<vmem>>, vector<32x32xf32>
    %cst_154 = arith.constant dense<0.000000e+00> : vector<64x32xf32>
    %95 = tpu.matmul %93, %94, %cst_154 {dimension_numbers = #tpu.dot_dimension_numbers<[1], [0], [0], [1], [0, 0, 1, 1], [], []>} : vector<64x32xf32>, vector<32x32xf32>, vector<64x32xf32> -> vector<64x32xf32>
    %96 = arith.addf %91, %95 : vector<64x32xf32>
    %c0_155 = arith.constant 0 : index
    %c1_156 = arith.constant 1 : index
    %c2_157 = arith.constant 2 : index
    %c0_158 = arith.constant 0 : index
    %97 = vector.load %arg11[%c0_155, %c1_156, %c2_157, %c0_158] : memref<1x18x18x32xf32, #tpu.memory_space<vmem>>, vector<1x8x8x32xf32>
    %98 = vector.shape_cast %97 : vector<1x8x8x32xf32> to vector<64x32xf32>
    %c160_159 = arith.constant 160 : index
    %c0_160 = arith.constant 0 : index
    %99 = vector.load %arg4[%c160_159, %c0_160] : memref<288x32xf32, #tpu.memory_space<vmem>>, vector<32x32xf32>
    %cst_161 = arith.constant dense<0.000000e+00> : vector<64x32xf32>
    %100 = tpu.matmul %98, %99, %cst_161 {dimension_numbers = #tpu.dot_dimension_numbers<[1], [0], [0], [1], [0, 0, 1, 1], [], []>} : vector<64x32xf32>, vector<32x32xf32>, vector<64x32xf32> -> vector<64x32xf32>
    %101 = arith.addf %96, %100 : vector<64x32xf32>
    %c0_162 = arith.constant 0 : index
    %c2_163 = arith.constant 2 : index
    %c0_164 = arith.constant 0 : index
    %c0_165 = arith.constant 0 : index
    %102 = vector.load %arg11[%c0_162, %c2_163, %c0_164, %c0_165] : memref<1x18x18x32xf32, #tpu.memory_space<vmem>>, vector<1x8x8x32xf32>
    %103 = vector.shape_cast %102 : vector<1x8x8x32xf32> to vector<64x32xf32>
    %c192_166 = arith.constant 192 : index
    %c0_167 = arith.constant 0 : index
    %104 = vector.load %arg4[%c192_166, %c0_167] : memref<288x32xf32, #tpu.memory_space<vmem>>, vector<32x32xf32>
    %cst_168 = arith.constant dense<0.000000e+00> : vector<64x32xf32>
    %105 = tpu.matmul %103, %104, %cst_168 {dimension_numbers = #tpu.dot_dimension_numbers<[1], [0], [0], [1], [0, 0, 1, 1], [], []>} : vector<64x32xf32>, vector<32x32xf32>, vector<64x32xf32> -> vector<64x32xf32>
    %106 = arith.addf %101, %105 : vector<64x32xf32>
    %c0_169 = arith.constant 0 : index
    %c2_170 = arith.constant 2 : index
    %c1_171 = arith.constant 1 : index
    %c0_172 = arith.constant 0 : index
    %107 = vector.load %arg11[%c0_169, %c2_170, %c1_171, %c0_172] : memref<1x18x18x32xf32, #tpu.memory_space<vmem>>, vector<1x8x8x32xf32>
    %108 = vector.shape_cast %107 : vector<1x8x8x32xf32> to vector<64x32xf32>
    %c224_173 = arith.constant 224 : index
    %c0_174 = arith.constant 0 : index
    %109 = vector.load %arg4[%c224_173, %c0_174] : memref<288x32xf32, #tpu.memory_space<vmem>>, vector<32x32xf32>
    %cst_175 = arith.constant dense<0.000000e+00> : vector<64x32xf32>
    %110 = tpu.matmul %108, %109, %cst_175 {dimension_numbers = #tpu.dot_dimension_numbers<[1], [0], [0], [1], [0, 0, 1, 1], [], []>} : vector<64x32xf32>, vector<32x32xf32>, vector<64x32xf32> -> vector<64x32xf32>
    %111 = arith.addf %106, %110 : vector<64x32xf32>
    %c0_176 = arith.constant 0 : index
    %c2_177 = arith.constant 2 : index
    %c2_178 = arith.constant 2 : index
    %c0_179 = arith.constant 0 : index
    %112 = vector.load %arg11[%c0_176, %c2_177, %c2_178, %c0_179] : memref<1x18x18x32xf32, #tpu.memory_space<vmem>>, vector<1x8x8x32xf32>
    %113 = vector.shape_cast %112 : vector<1x8x8x32xf32> to vector<64x32xf32>
    %c256_180 = arith.constant 256 : index
    %c0_181 = arith.constant 0 : index
    %114 = vector.load %arg4[%c256_180, %c0_181] : memref<288x32xf32, #tpu.memory_space<vmem>>, vector<32x32xf32>
    %cst_182 = arith.constant dense<0.000000e+00> : vector<64x32xf32>
    %115 = tpu.matmul %113, %114, %cst_182 {dimension_numbers = #tpu.dot_dimension_numbers<[1], [0], [0], [1], [0, 0, 1, 1], [], []>} : vector<64x32xf32>, vector<32x32xf32>, vector<64x32xf32> -> vector<64x32xf32>
    %116 = arith.addf %111, %115 : vector<64x32xf32>
    %c0_183 = arith.constant 0 : index
    %c0_184 = arith.constant 0 : index
    %117 = vector.load %arg5[%c0_183, %c0_184] : memref<1x32xf32, #tpu.memory_space<vmem>>, vector<1x32xf32>
    %118 = vector.broadcast %117 : vector<1x32xf32> to vector<64x32xf32>
    %119 = arith.addf %116, %118 : vector<64x32xf32>
    %cst_185 = arith.constant 0.000000e+00 : f32
    %120 = vector.broadcast %cst_185 : f32 to vector<64x32xf32>
    %121 = arith.maximumf %119, %120 : vector<64x32xf32>
    %122 = vector.shape_cast %121 : vector<64x32xf32> to vector<1x8x8x32xf32>
    %c0_186 = arith.constant 0 : index
    %c0_187 = arith.constant 0 : index
    %c0_188 = arith.constant 0 : index
    %c0_189 = arith.constant 0 : index
    %123 = vector.load %arg11[%c0_186, %c0_187, %c0_188, %c0_189] : memref<1x18x18x32xf32, #tpu.memory_space<vmem>>, vector<1x8x8x32xf32>
    tpu.vector_store %arg11[%c0_186, %c0_187, %c0_188, %c0_189], %122 {strides = array<i32>} : memref<1x18x18x32xf32, #tpu.memory_space<vmem>>, vector<1x8x8x32xf32>,
    %c0_190 = arith.constant 0 : index
    %c0_191 = arith.constant 0 : index
    %c0_192 = arith.constant 0 : index
    %c0_193 = arith.constant 0 : index
    %124 = tpu.strided_load %arg11[%c0_190, %c0_191, %c0_192, %c0_193] {strides = array<i32: 1, 2, 2, 1>} : memref<1x18x18x32xf32, #tpu.memory_space<vmem>>, vector<1x4x4x32xf32>
    %c0_194 = arith.constant 0 : index
    %c0_195 = arith.constant 0 : index
    %c1_196 = arith.constant 1 : index
    %c0_197 = arith.constant 0 : index
    %125 = tpu.strided_load %arg11[%c0_194, %c0_195, %c1_196, %c0_197] {strides = array<i32: 1, 2, 2, 1>} : memref<1x18x18x32xf32, #tpu.memory_space<vmem>>, vector<1x4x4x32xf32>
    %c0_198 = arith.constant 0 : index
    %c1_199 = arith.constant 1 : index
    %c0_200 = arith.constant 0 : index
    %c0_201 = arith.constant 0 : index
    %126 = tpu.strided_load %arg11[%c0_198, %c1_199, %c0_200, %c0_201] {strides = array<i32: 1, 2, 2, 1>} : memref<1x18x18x32xf32, #tpu.memory_space<vmem>>, vector<1x4x4x32xf32>
    %c0_202 = arith.constant 0 : index
    %c1_203 = arith.constant 1 : index
    %c1_204 = arith.constant 1 : index
    %c0_205 = arith.constant 0 : index
    %127 = tpu.strided_load %arg11[%c0_202, %c1_203, %c1_204, %c0_205] {strides = array<i32: 1, 2, 2, 1>} : memref<1x18x18x32xf32, #tpu.memory_space<vmem>>, vector<1x4x4x32xf32>
    %128 = arith.maximumf %124, %125 : vector<1x4x4x32xf32>
    %129 = arith.maximumf %126, %127 : vector<1x4x4x32xf32>
    %130 = arith.maximumf %128, %129 : vector<1x4x4x32xf32>
    %cst_206 = arith.constant 0.000000e+00 : f32
    %131 = vector.broadcast %cst_206 : f32 to vector<1x1x6x32xf32>
    %cst_207 = arith.constant 0.000000e+00 : f32
    %132 = vector.broadcast %cst_207 : f32 to vector<1x4x1x32xf32>
    %c0_208 = arith.constant 0 : index
    %c0_209 = arith.constant 0 : index
    %c0_210 = arith.constant 0 : index
    %c0_211 = arith.constant 0 : index
    %133 = vector.load %arg11[%c0_208, %c0_209, %c0_210, %c0_211] : memref<1x18x18x32xf32, #tpu.memory_space<vmem>>, vector<1x1x6x32xf32>
    tpu.vector_store %arg11[%c0_208, %c0_209, %c0_210, %c0_211], %131 {strides = array<i32>} : memref<1x18x18x32xf32, #tpu.memory_space<vmem>>, vector<1x1x6x32xf32>,
    %c0_212 = arith.constant 0 : index
    %c5 = arith.constant 5 : index
    %c0_213 = arith.constant 0 : index
    %c0_214 = arith.constant 0 : index
    %134 = vector.load %arg11[%c0_212, %c5, %c0_213, %c0_214] : memref<1x18x18x32xf32, #tpu.memory_space<vmem>>, vector<1x1x6x32xf32>
    tpu.vector_store %arg11[%c0_212, %c5, %c0_213, %c0_214], %131 {strides = array<i32>} : memref<1x18x18x32xf32, #tpu.memory_space<vmem>>, vector<1x1x6x32xf32>,
    %c0_215 = arith.constant 0 : index
    %c1_216 = arith.constant 1 : index
    %c0_217 = arith.constant 0 : index
    %c0_218 = arith.constant 0 : index
    %135 = vector.load %arg11[%c0_215, %c1_216, %c0_217, %c0_218] : memref<1x18x18x32xf32, #tpu.memory_space<vmem>>, vector<1x4x1x32xf32>
    tpu.vector_store %arg11[%c0_215, %c1_216, %c0_217, %c0_218], %132 {strides = array<i32>} : memref<1x18x18x32xf32, #tpu.memory_space<vmem>>, vector<1x4x1x32xf32>,
    %c0_219 = arith.constant 0 : index
    %c1_220 = arith.constant 1 : index
    %c5_221 = arith.constant 5 : index
    %c0_222 = arith.constant 0 : index
    %136 = vector.load %arg11[%c0_219, %c1_220, %c5_221, %c0_222] : memref<1x18x18x32xf32, #tpu.memory_space<vmem>>, vector<1x4x1x32xf32>
    tpu.vector_store %arg11[%c0_219, %c1_220, %c5_221, %c0_222], %132 {strides = array<i32>} : memref<1x18x18x32xf32, #tpu.memory_space<vmem>>, vector<1x4x1x32xf32>,
    %c0_223 = arith.constant 0 : index
    %c1_224 = arith.constant 1 : index
    %c1_225 = arith.constant 1 : index
    %c0_226 = arith.constant 0 : index
    %137 = vector.load %arg11[%c0_223, %c1_224, %c1_225, %c0_226] : memref<1x18x18x32xf32, #tpu.memory_space<vmem>>, vector<1x4x4x32xf32>
    tpu.vector_store %arg11[%c0_223, %c1_224, %c1_225, %c0_226], %130 {strides = array<i32>} : memref<1x18x18x32xf32, #tpu.memory_space<vmem>>, vector<1x4x4x32xf32>,
    %c0_227 = arith.constant 0 : index
    %c0_228 = arith.constant 0 : index
    %c0_229 = arith.constant 0 : index
    %c0_230 = arith.constant 0 : index
    %138 = vector.load %arg11[%c0_227, %c0_228, %c0_229, %c0_230] : memref<1x18x18x32xf32, #tpu.memory_space<vmem>>, vector<1x4x4x32xf32>
    %139 = vector.shape_cast %138 : vector<1x4x4x32xf32> to vector<16x32xf32>
    %c0_231 = arith.constant 0 : index
    %c0_232 = arith.constant 0 : index
    %140 = vector.load %arg6[%c0_231, %c0_232] : memref<288x32xf32, #tpu.memory_space<vmem>>, vector<32x32xf32>
    %cst_233 = arith.constant dense<0.000000e+00> : vector<16x32xf32>
    %141 = tpu.matmul %139, %140, %cst_233 {dimension_numbers = #tpu.dot_dimension_numbers<[1], [0], [0], [1], [0, 0, 1, 1], [], []>} : vector<16x32xf32>, vector<32x32xf32>, vector<16x32xf32> -> vector<16x32xf32>
    %c0_234 = arith.constant 0 : index
    %c0_235 = arith.constant 0 : index
    %c1_236 = arith.constant 1 : index
    %c0_237 = arith.constant 0 : index
    %142 = vector.load %arg11[%c0_234, %c0_235, %c1_236, %c0_237] : memref<1x18x18x32xf32, #tpu.memory_space<vmem>>, vector<1x4x4x32xf32>
    %143 = vector.shape_cast %142 : vector<1x4x4x32xf32> to vector<16x32xf32>
    %c32_238 = arith.constant 32 : index
    %c0_239 = arith.constant 0 : index
    %144 = vector.load %arg6[%c32_238, %c0_239] : memref<288x32xf32, #tpu.memory_space<vmem>>, vector<32x32xf32>
    %cst_240 = arith.constant dense<0.000000e+00> : vector<16x32xf32>
    %145 = tpu.matmul %143, %144, %cst_240 {dimension_numbers = #tpu.dot_dimension_numbers<[1], [0], [0], [1], [0, 0, 1, 1], [], []>} : vector<16x32xf32>, vector<32x32xf32>, vector<16x32xf32> -> vector<16x32xf32>
    %146 = arith.addf %141, %145 : vector<16x32xf32>
    %c0_241 = arith.constant 0 : index
    %c0_242 = arith.constant 0 : index
    %c2_243 = arith.constant 2 : index
    %c0_244 = arith.constant 0 : index
    %147 = vector.load %arg11[%c0_241, %c0_242, %c2_243, %c0_244] : memref<1x18x18x32xf32, #tpu.memory_space<vmem>>, vector<1x4x4x32xf32>
    %148 = vector.shape_cast %147 : vector<1x4x4x32xf32> to vector<16x32xf32>
    %c64_245 = arith.constant 64 : index
    %c0_246 = arith.constant 0 : index
    %149 = vector.load %arg6[%c64_245, %c0_246] : memref<288x32xf32, #tpu.memory_space<vmem>>, vector<32x32xf32>
    %cst_247 = arith.constant dense<0.000000e+00> : vector<16x32xf32>
    %150 = tpu.matmul %148, %149, %cst_247 {dimension_numbers = #tpu.dot_dimension_numbers<[1], [0], [0], [1], [0, 0, 1, 1], [], []>} : vector<16x32xf32>, vector<32x32xf32>, vector<16x32xf32> -> vector<16x32xf32>
    %151 = arith.addf %146, %150 : vector<16x32xf32>
    %c0_248 = arith.constant 0 : index
    %c1_249 = arith.constant 1 : index
    %c0_250 = arith.constant 0 : index
    %c0_251 = arith.constant 0 : index
    %152 = vector.load %arg11[%c0_248, %c1_249, %c0_250, %c0_251] : memref<1x18x18x32xf32, #tpu.memory_space<vmem>>, vector<1x4x4x32xf32>
    %153 = vector.shape_cast %152 : vector<1x4x4x32xf32> to vector<16x32xf32>
    %c96_252 = arith.constant 96 : index
    %c0_253 = arith.constant 0 : index
    %154 = vector.load %arg6[%c96_252, %c0_253] : memref<288x32xf32, #tpu.memory_space<vmem>>, vector<32x32xf32>
    %cst_254 = arith.constant dense<0.000000e+00> : vector<16x32xf32>
    %155 = tpu.matmul %153, %154, %cst_254 {dimension_numbers = #tpu.dot_dimension_numbers<[1], [0], [0], [1], [0, 0, 1, 1], [], []>} : vector<16x32xf32>, vector<32x32xf32>, vector<16x32xf32> -> vector<16x32xf32>
    %156 = arith.addf %151, %155 : vector<16x32xf32>
    %c0_255 = arith.constant 0 : index
    %c1_256 = arith.constant 1 : index
    %c1_257 = arith.constant 1 : index
    %c0_258 = arith.constant 0 : index
    %157 = vector.load %arg11[%c0_255, %c1_256, %c1_257, %c0_258] : memref<1x18x18x32xf32, #tpu.memory_space<vmem>>, vector<1x4x4x32xf32>
    %158 = vector.shape_cast %157 : vector<1x4x4x32xf32> to vector<16x32xf32>
    %c128_259 = arith.constant 128 : index
    %c0_260 = arith.constant 0 : index
    %159 = vector.load %arg6[%c128_259, %c0_260] : memref<288x32xf32, #tpu.memory_space<vmem>>, vector<32x32xf32>
    %cst_261 = arith.constant dense<0.000000e+00> : vector<16x32xf32>
    %160 = tpu.matmul %158, %159, %cst_261 {dimension_numbers = #tpu.dot_dimension_numbers<[1], [0], [0], [1], [0, 0, 1, 1], [], []>} : vector<16x32xf32>, vector<32x32xf32>, vector<16x32xf32> -> vector<16x32xf32>
    %161 = arith.addf %156, %160 : vector<16x32xf32>
    %c0_262 = arith.constant 0 : index
    %c1_263 = arith.constant 1 : index
    %c2_264 = arith.constant 2 : index
    %c0_265 = arith.constant 0 : index
    %162 = vector.load %arg11[%c0_262, %c1_263, %c2_264, %c0_265] : memref<1x18x18x32xf32, #tpu.memory_space<vmem>>, vector<1x4x4x32xf32>
    %163 = vector.shape_cast %162 : vector<1x4x4x32xf32> to vector<16x32xf32>
    %c160_266 = arith.constant 160 : index
    %c0_267 = arith.constant 0 : index
    %164 = vector.load %arg6[%c160_266, %c0_267] : memref<288x32xf32, #tpu.memory_space<vmem>>, vector<32x32xf32>
    %cst_268 = arith.constant dense<0.000000e+00> : vector<16x32xf32>
    %165 = tpu.matmul %163, %164, %cst_268 {dimension_numbers = #tpu.dot_dimension_numbers<[1], [0], [0], [1], [0, 0, 1, 1], [], []>} : vector<16x32xf32>, vector<32x32xf32>, vector<16x32xf32> -> vector<16x32xf32>
    %166 = arith.addf %161, %165 : vector<16x32xf32>
    %c0_269 = arith.constant 0 : index
    %c2_270 = arith.constant 2 : index
    %c0_271 = arith.constant 0 : index
    %c0_272 = arith.constant 0 : index
    %167 = vector.load %arg11[%c0_269, %c2_270, %c0_271, %c0_272] : memref<1x18x18x32xf32, #tpu.memory_space<vmem>>, vector<1x4x4x32xf32>
    %168 = vector.shape_cast %167 : vector<1x4x4x32xf32> to vector<16x32xf32>
    %c192_273 = arith.constant 192 : index
    %c0_274 = arith.constant 0 : index
    %169 = vector.load %arg6[%c192_273, %c0_274] : memref<288x32xf32, #tpu.memory_space<vmem>>, vector<32x32xf32>
    %cst_275 = arith.constant dense<0.000000e+00> : vector<16x32xf32>
    %170 = tpu.matmul %168, %169, %cst_275 {dimension_numbers = #tpu.dot_dimension_numbers<[1], [0], [0], [1], [0, 0, 1, 1], [], []>} : vector<16x32xf32>, vector<32x32xf32>, vector<16x32xf32> -> vector<16x32xf32>
    %171 = arith.addf %166, %170 : vector<16x32xf32>
    %c0_276 = arith.constant 0 : index
    %c2_277 = arith.constant 2 : index
    %c1_278 = arith.constant 1 : index
    %c0_279 = arith.constant 0 : index
    %172 = vector.load %arg11[%c0_276, %c2_277, %c1_278, %c0_279] : memref<1x18x18x32xf32, #tpu.memory_space<vmem>>, vector<1x4x4x32xf32>
    %173 = vector.shape_cast %172 : vector<1x4x4x32xf32> to vector<16x32xf32>
    %c224_280 = arith.constant 224 : index
    %c0_281 = arith.constant 0 : index
    %174 = vector.load %arg6[%c224_280, %c0_281] : memref<288x32xf32, #tpu.memory_space<vmem>>, vector<32x32xf32>
    %cst_282 = arith.constant dense<0.000000e+00> : vector<16x32xf32>
    %175 = tpu.matmul %173, %174, %cst_282 {dimension_numbers = #tpu.dot_dimension_numbers<[1], [0], [0], [1], [0, 0, 1, 1], [], []>} : vector<16x32xf32>, vector<32x32xf32>, vector<16x32xf32> -> vector<16x32xf32>
    %176 = arith.addf %171, %175 : vector<16x32xf32>
    %c0_283 = arith.constant 0 : index
    %c2_284 = arith.constant 2 : index
    %c2_285 = arith.constant 2 : index
    %c0_286 = arith.constant 0 : index
    %177 = vector.load %arg11[%c0_283, %c2_284, %c2_285, %c0_286] : memref<1x18x18x32xf32, #tpu.memory_space<vmem>>, vector<1x4x4x32xf32>
    %178 = vector.shape_cast %177 : vector<1x4x4x32xf32> to vector<16x32xf32>
    %c256_287 = arith.constant 256 : index
    %c0_288 = arith.constant 0 : index
    %179 = vector.load %arg6[%c256_287, %c0_288] : memref<288x32xf32, #tpu.memory_space<vmem>>, vector<32x32xf32>
    %cst_289 = arith.constant dense<0.000000e+00> : vector<16x32xf32>
    %180 = tpu.matmul %178, %179, %cst_289 {dimension_numbers = #tpu.dot_dimension_numbers<[1], [0], [0], [1], [0, 0, 1, 1], [], []>} : vector<16x32xf32>, vector<32x32xf32>, vector<16x32xf32> -> vector<16x32xf32>
    %181 = arith.addf %176, %180 : vector<16x32xf32>
    %c0_290 = arith.constant 0 : index
    %c0_291 = arith.constant 0 : index
    %182 = vector.load %arg7[%c0_290, %c0_291] : memref<1x32xf32, #tpu.memory_space<vmem>>, vector<1x32xf32>
    %183 = vector.broadcast %182 : vector<1x32xf32> to vector<16x32xf32>
    %184 = arith.addf %181, %183 : vector<16x32xf32>
    %185 = vector.shape_cast %184 : vector<16x32xf32> to vector<1x4x4x32xf32>
    %c0_292 = arith.constant 0 : index
    %c0_293 = arith.constant 0 : index
    %c0_294 = arith.constant 0 : index
    %c0_295 = arith.constant 0 : index
    %186 = vector.load %arg11[%c0_292, %c0_293, %c0_294, %c0_295] : memref<1x18x18x32xf32, #tpu.memory_space<vmem>>, vector<1x4x4x32xf32>
    tpu.vector_store %arg11[%c0_292, %c0_293, %c0_294, %c0_295], %185 {strides = array<i32>} : memref<1x18x18x32xf32, #tpu.memory_space<vmem>>, vector<1x4x4x32xf32>,
    %c0_296 = arith.constant 0 : index
    %c0_297 = arith.constant 0 : index
    %c0_298 = arith.constant 0 : index
    %c0_299 = arith.constant 0 : index
    %187 = tpu.strided_load %arg11[%c0_296, %c0_297, %c0_298, %c0_299] {strides = array<i32: 1, 2, 2, 1>} : memref<1x18x18x32xf32, #tpu.memory_space<vmem>>, vector<1x2x2x32xf32>
    %c0_300 = arith.constant 0 : index
    %c0_301 = arith.constant 0 : index
    %c1_302 = arith.constant 1 : index
    %c0_303 = arith.constant 0 : index
    %188 = tpu.strided_load %arg11[%c0_300, %c0_301, %c1_302, %c0_303] {strides = array<i32: 1, 2, 2, 1>} : memref<1x18x18x32xf32, #tpu.memory_space<vmem>>, vector<1x2x2x32xf32>
    %c0_304 = arith.constant 0 : index
    %c1_305 = arith.constant 1 : index
    %c0_306 = arith.constant 0 : index
    %c0_307 = arith.constant 0 : index
    %189 = tpu.strided_load %arg11[%c0_304, %c1_305, %c0_306, %c0_307] {strides = array<i32: 1, 2, 2, 1>} : memref<1x18x18x32xf32, #tpu.memory_space<vmem>>, vector<1x2x2x32xf32>
    %c0_308 = arith.constant 0 : index
    %c1_309 = arith.constant 1 : index
    %c1_310 = arith.constant 1 : index
    %c0_311 = arith.constant 0 : index
    %190 = tpu.strided_load %arg11[%c0_308, %c1_309, %c1_310, %c0_311] {strides = array<i32: 1, 2, 2, 1>} : memref<1x18x18x32xf32, #tpu.memory_space<vmem>>, vector<1x2x2x32xf32>
    %191 = arith.maximumf %187, %188 : vector<1x2x2x32xf32>
    %192 = arith.maximumf %189, %190 : vector<1x2x2x32xf32>
    %193 = arith.maximumf %191, %192 : vector<1x2x2x32xf32>
    %194 = vector.shape_cast %193 : vector<1x2x2x32xf32> to vector<4x32xf32>
    %cst_312 = arith.constant dense<0.000000e+00> : vector<32xf32>
    %195 = vector.multi_reduction <add>, %194, %cst_312 [0] : vector<4x32xf32> to vector<32xf32>
    %196 = vector.shape_cast %195 : vector<32xf32> to vector<1x32xf32>
    %cst_313 = arith.constant 2.500000e-01 : f32
    %197 = vector.broadcast %cst_313 : f32 to vector<1x32xf32>
    %198 = arith.mulf %196, %197 : vector<1x32xf32>
    %c0_314 = arith.constant 0 : index
    %c0_315 = arith.constant 0 : index
    %199 = vector.load %arg8[%c0_314, %c0_315] : memref<32x5xf32, #tpu.memory_space<vmem>>, vector<32x5xf32>
    %cst_316 = arith.constant dense<0.000000e+00> : vector<1x5xf32>
    %200 = tpu.matmul %198, %199, %cst_316 {dimension_numbers = #tpu.dot_dimension_numbers<[1], [0], [0], [1], [0, 0, 1, 1], [], []>} : vector<1x32xf32>, vector<32x5xf32>, vector<1x5xf32> -> vector<1x5xf32>
    %c0_317 = arith.constant 0 : index
    %c0_318 = arith.constant 0 : index
    %201 = vector.load %arg9[%c0_317, %c0_318] : memref<1x5xf32, #tpu.memory_space<vmem>>, vector<1x5xf32>
    %202 = arith.addf %200, %201 : vector<1x5xf32>
    %203 = vector.shape_cast %202 : vector<1x5xf32> to vector<1x1x5xf32>
    %c0_319 = arith.constant 0 : index
    %c0_320 = arith.constant 0 : index
    %c0_321 = arith.constant 0 : index
    %204 = vector.load %arg10[%c0_319, %c0_320, %c0_321] : memref<1x1x5xf32, #tpu.memory_space<vmem>>, vector<1x1x5xf32>
    tpu.vector_store %arg10[%c0_319, %c0_320, %c0_321], %203 {strides = array<i32>} : memref<1x1x5xf32, #tpu.memory_space<vmem>>, vector<1x1x5xf32>,
    return
  }
  func.func @transform_0(%arg0: i32) -> (i32, i32, i32, i32) {
    %c0_i32 = arith.constant 0 : i32
    %c0_i32_0 = arith.constant 0 : i32
    %c0_i32_1 = arith.constant 0 : i32
    %c0_i32_2 = arith.constant 0 : i32
    return %arg0, %c0_i32, %c0_i32_0, %c0_i32_1 : i32, i32, i32, i32
  }
  func.func @transform_1(%arg0: i32) -> (i32, i32) {
    %c0_i32 = arith.constant 0 : i32
    %c0_i32_0 = arith.constant 0 : i32
    %c0_i32_1 = arith.constant 0 : i32
    return %c0_i32, %c0_i32_0 : i32, i32
  }
  func.func @transform_2(%arg0: i32) -> (i32, i32) {
    %c0_i32 = arith.constant 0 : i32
    %c0_i32_0 = arith.constant 0 : i32
    %c0_i32_1 = arith.constant 0 : i32
    return %c0_i32, %c0_i32_0 : i32, i32
  }
  func.func @transform_3(%arg0: i32) -> (i32, i32) {
    %c0_i32 = arith.constant 0 : i32
    %c0_i32_0 = arith.constant 0 : i32
    %c0_i32_1 = arith.constant 0 : i32
    return %c0_i32, %c0_i32_0 : i32, i32
  }
  func.func @transform_4(%arg0: i32) -> (i32, i32) {
    %c0_i32 = arith.constant 0 : i32
    %c0_i32_0 = arith.constant 0 : i32
    %c0_i32_1 = arith.constant 0 : i32
    return %c0_i32, %c0_i32_0 : i32, i32
  }
  func.func @transform_5(%arg0: i32) -> (i32, i32) {
    %c0_i32 = arith.constant 0 : i32
    %c0_i32_0 = arith.constant 0 : i32
    %c0_i32_1 = arith.constant 0 : i32
    return %c0_i32, %c0_i32_0 : i32, i32
  }
  func.func @transform_6(%arg0: i32) -> (i32, i32) {
    %c0_i32 = arith.constant 0 : i32
    %c0_i32_0 = arith.constant 0 : i32
    %c0_i32_1 = arith.constant 0 : i32
    return %c0_i32, %c0_i32_0 : i32, i32
  }
  func.func @transform_7(%arg0: i32) -> (i32, i32) {
    %c0_i32 = arith.constant 0 : i32
    %c0_i32_0 = arith.constant 0 : i32
    %c0_i32_1 = arith.constant 0 : i32
    return %c0_i32, %c0_i32_0 : i32, i32
  }
  func.func @transform_8(%arg0: i32) -> (i32, i32) {
    %c0_i32 = arith.constant 0 : i32
    %c0_i32_0 = arith.constant 0 : i32
    %c0_i32_1 = arith.constant 0 : i32
    return %c0_i32, %c0_i32_0 : i32, i32
  }
  func.func @transform_9(%arg0: i32) -> (i32, i32, i32) {
    %c0_i32 = arith.constant 0 : i32
    %c0_i32_0 = arith.constant 0 : i32
    %c0_i32_1 = arith.constant 0 : i32
    return %arg0, %c0_i32, %c0_i32_0 : i32, i32, i32
  }
}

</mosaic_0001>

<llo_original>
// kernel: tpu_custom_call.1
$region0: #{tpu_custom_call.1}
  #allocation0 [shape = 'u32[]', space=smem, size = 0x4, offset = 0x4, fixed_abs, tag = 'smem constant byte address 0x4 - core index']
  #allocation1 [shape = 'u32[72,128]{1,0:T(1,128)}', space=vmem, size = 0x9000, scoped, tag = 'internal scratch']
  #allocation2 [shape = 'f32[1,18,18,32]{3,2,1,0:T(8,128)}', space=vmem, size = 0x36000, scoped, tag = 'scratch operand']
  %s0 = inlined_call_operand.vmem [shape: f32[2,16,16,32], index: 0, kind: input, shape index: {}]
  %s1 = inlined_call_operand.vmem [shape: f32[288,32], index: 1, kind: input, shape index: {}]
  %s2 = inlined_call_operand.vmem [shape: f32[1,32], index: 2, kind: input, shape index: {}]
  %s3 = inlined_call_operand.vmem [shape: f32[288,32], index: 3, kind: input, shape index: {}]
  %s4 = inlined_call_operand.vmem [shape: f32[1,32], index: 4, kind: input, shape index: {}]
  %s5 = inlined_call_operand.vmem [shape: f32[288,32], index: 5, kind: input, shape index: {}]
  %s6 = inlined_call_operand.vmem [shape: f32[1,32], index: 6, kind: input, shape index: {}]
  %s7 = inlined_call_operand.vmem [shape: f32[32,5], index: 7, kind: input, shape index: {}]
  %s8 = inlined_call_operand.vmem [shape: f32[1,5], index: 8, kind: input, shape index: {}]
  %s9 = inlined_call_operand.hbm [shape: f32[2,1,5], index: 9, kind: output, shape index: {}]
  %s10 = sld [smem:[#allocation0]]
  $region69: #{tpu_custom_call.1} parent=0
    _
  %s12 = ssub.s32 1, %s10
  %s13 = scalar_select 0, %s12, %s10
  $region1: #{tpu_custom_call.1} parent=0
    #allocation3 [shape = 'u8[1024]{0}', space=vmem, size = 0x400, scoped, tag = 'output window, operand 0']
    #allocation4 [shape = 's32[2]{0}', space=sflag, size = 0x8, scoped, tag = 'scoped memory for tpu_custom_call.1']
    %14 = vsyncpa [#allocation4], 0
    %s15 = scalar_lea.sflag [#allocation4], 1
    %16 = vsyncpa %s15, 0
    loop: start=0, step=1, limit=4
    $region2: #{tpu_custom_call.1} parent=1 // loop_pre_header
      _
    $region3: #{tpu_custom_call.1} parent=1 // loop_header
      %s18 = sphi 0, %s22
      %p19 = scmp.ge.s32.totalorder %s18, 4
      %s28 = sphi 0, %s30
      %s31 = sphi 0, %s28
      %s32 = sphi 0, %s31
      %s48 = sphi 0, %s32
      %s52 = sphi 0, %s52
      %s54 = sphi 0, %s52
      %s55 = sphi 0, %s54
      %s69 = sphi 0, %s55
      %s73 = sphi 0, %s73
      %s75 = sphi 0, %s73
      %s76 = sphi 0, %s75
      %s90 = sphi 0, %s76
      %s94 = sphi 0, %s94
      %s96 = sphi 0, %s94
      %s97 = sphi 0, %s96
      %s111 = sphi 0, %s97
      %s115 = sphi 0, %s115
      %s117 = sphi 0, %s115
      %s118 = sphi 0, %s117
      %s132 = sphi 0, %s118
      %s136 = sphi 0, %s136
      %s138 = sphi 0, %s136
      %s139 = sphi 0, %s138
      %s153 = sphi 0, %s139
      %s157 = sphi 0, %s157
      %s159 = sphi 0, %s157
      %s160 = sphi 0, %s159
      %s174 = sphi 0, %s160
      %s178 = sphi 0, %s178
      %s180 = sphi 0, %s178
      %s181 = sphi 0, %s180
      %s195 = sphi 0, %s181
      %s199 = sphi 0, %s199
      %s201 = sphi 0, %s199
      %s202 = sphi 0, %s201
      %s216 = sphi 0, %s202
      %s222 = sphi 0, %s224
      %s225 = sphi 0, %s222
      %s226 = sphi 0, %s225
      %s242 = sphi 0, %s226
    $region4: #{tpu_custom_call.1} parent=1 // loop_header_branch
      %21 = sbr.rel (%p19) target = $region8
    $region5: #{tpu_custom_call.1} parent=1 // loop_body
      %s23 = ssub.s32 %s18, 1
      %s24 = ssub.s32 %s18, 2
      %s25 = sadd.s32 %s18, 1
      %s26 = ssub.s32 %s18, %s25
      %p27 = scmp.eq.s32.totalorder %s26, 0
      %s29 = sadd.s32 %s28, 1
      %s30 = scalar_select %p27, %s28, %s29
      %p33 = pneg %p27
      %p34 = scmp.eq.s32.totalorder %s18, 1
      %p35 = por %p33, %p34
      %p36 = scmp.ne.s32.totalorder %s28, %s31
      %p37 = scmp.eq.s32.totalorder %s18, 0
      %p38 = por %p36, %p37
      %p39 = scmp.ne.s32.totalorder %s28, %s31
      %p40 = scmp.eq.s32.totalorder %s23, 1
      %p41 = por %p39, %p40
      %p42 = scmp.ne.s32.totalorder %s31, %s32
      %p43 = scmp.eq.s32.totalorder %s23, 0
      %p44 = por %p42, %p43
      %p45 = scmp.ne.s32.totalorder %s31, %s32
      %p46 = scmp.eq.s32.totalorder %s24, 1
      %p47 = por %p45, %p46
      %p49 = scmp.ne.s32.totalorder %s32, %s48
      %p50 = scmp.eq.s32.totalorder %s24, 0
      %p51 = por %p49, %p50
      %s53 = sadd.s32 %s52, 1
      %p56 = scmp.eq.s32.totalorder %s18, 1
      %p57 = scmp.ne.s32.totalorder %s52, %s54
      %p58 = scmp.eq.s32.totalorder %s18, 0
      %p59 = por %p57, %p58
      %p60 = scmp.ne.s32.totalorder %s52, %s54
      %p61 = scmp.eq.s32.totalorder %s23, 1
      %p62 = por %p60, %p61
      %p63 = scmp.ne.s32.totalorder %s54, %s55
      %p64 = scmp.eq.s32.totalorder %s23, 0
      %p65 = por %p63, %p64
      %p66 = scmp.ne.s32.totalorder %s54, %s55
      %p67 = scmp.eq.s32.totalorder %s24, 1
      %p68 = por %p66, %p67
      %p70 = scmp.ne.s32.totalorder %s55, %s69
      %p71 = scmp.eq.s32.totalorder %s24, 0
      %p72 = por %p70, %p71
      %s74 = sadd.s32 %s73, 1
      %p77 = scmp.eq.s32.totalorder %s18, 1
      %p78 = scmp.ne.s32.totalorder %s73, %s75
      %p79 = scmp.eq.s32.totalorder %s18, 0
      %p80 = por %p78, %p79
      %p81 = scmp.ne.s32.totalorder %s73, %s75
      %p82 = scmp.eq.s32.totalorder %s23, 1
      %p83 = por %p81, %p82
      %p84 = scmp.ne.s32.totalorder %s75, %s76
      %p85 = scmp.eq.s32.totalorder %s23, 0
      %p86 = por %p84, %p85
      %p87 = scmp.ne.s32.totalorder %s75, %s76
      %p88 = scmp.eq.s32.totalorder %s24, 1
      %p89 = por %p87, %p88
      %p91 = scmp.ne.s32.totalorder %s76, %s90
      %p92 = scmp.eq.s32.totalorder %s24, 0
      %p93 = por %p91, %p92
      %s95 = sadd.s32 %s94, 1
      %p98 = scmp.eq.s32.totalorder %s18, 1
      %p99 = scmp.ne.s32.totalorder %s94, %s96
      %p100 = scmp.eq.s32.totalorder %s18, 0
      %p101 = por %p99, %p100
      %p102 = scmp.ne.s32.totalorder %s94, %s96
      %p103 = scmp.eq.s32.totalorder %s23, 1
      %p104 = por %p102, %p103
      %p105 = scmp.ne.s32.totalorder %s96, %s97
      %p106 = scmp.eq.s32.totalorder %s23, 0
      %p107 = por %p105, %p106
      %p108 = scmp.ne.s32.totalorder %s96, %s97
      %p109 = scmp.eq.s32.totalorder %s24, 1
      %p110 = por %p108, %p109
      %p112 = scmp.ne.s32.totalorder %s97, %s111
      %p113 = scmp.eq.s32.totalorder %s24, 0
      %p114 = por %p112, %p113
      %s116 = sadd.s32 %s115, 1
      %p119 = scmp.eq.s32.totalorder %s18, 1
      %p120 = scmp.ne.s32.totalorder %s115, %s117
      %p121 = scmp.eq.s32.totalorder %s18, 0
      %p122 = por %p120, %p121
      %p123 = scmp.ne.s32.totalorder %s115, %s117
      %p124 = scmp.eq.s32.totalorder %s23, 1
      %p125 = por %p123, %p124
      %p126 = scmp.ne.s32.totalorder %s117, %s118
      %p127 = scmp.eq.s32.totalorder %s23, 0
      %p128 = por %p126, %p127
      %p129 = scmp.ne.s32.totalorder %s117, %s118
      %p130 = scmp.eq.s32.totalorder %s24, 1
      %p131 = por %p129, %p130
      %p133 = scmp.ne.s32.totalorder %s118, %s132
      %p134 = scmp.eq.s32.totalorder %s24, 0
      %p135 = por %p133, %p134
      %s137 = sadd.s32 %s136, 1
      %p140 = scmp.eq.s32.totalorder %s18, 1
      %p141 = scmp.ne.s32.totalorder %s136, %s138
      %p142 = scmp.eq.s32.totalorder %s18, 0
      %p143 = por %p141, %p142
      %p144 = scmp.ne.s32.totalorder %s136, %s138
      %p145 = scmp.eq.s32.totalorder %s23, 1
      %p146 = por %p144, %p145
      %p147 = scmp.ne.s32.totalorder %s138, %s139
      %p148 = scmp.eq.s32.totalorder %s23, 0
      %p149 = por %p147, %p148
      %p150 = scmp.ne.s32.totalorder %s138, %s139
      %p151 = scmp.eq.s32.totalorder %s24, 1
      %p152 = por %p150, %p151
      %p154 = scmp.ne.s32.totalorder %s139, %s153
      %p155 = scmp.eq.s32.totalorder %s24, 0
      %p156 = por %p154, %p155
      %s158 = sadd.s32 %s157, 1
      %p161 = scmp.eq.s32.totalorder %s18, 1
      %p162 = scmp.ne.s32.totalorder %s157, %s159
      %p163 = scmp.eq.s32.totalorder %s18, 0
      %p164 = por %p162, %p163
      %p165 = scmp.ne.s32.totalorder %s157, %s159
      %p166 = scmp.eq.s32.totalorder %s23, 1
      %p167 = por %p165, %p166
      %p168 = scmp.ne.s32.totalorder %s159, %s160
      %p169 = scmp.eq.s32.totalorder %s23, 0
      %p170 = por %p168, %p169
      %p171 = scmp.ne.s32.totalorder %s159, %s160
      %p172 = scmp.eq.s32.totalorder %s24, 1
      %p173 = por %p171, %p172
      %p175 = scmp.ne.s32.totalorder %s160, %s174
      %p176 = scmp.eq.s32.totalorder %s24, 0
      %p177 = por %p175, %p176
      %s179 = sadd.s32 %s178, 1
      %p182 = scmp.eq.s32.totalorder %s18, 1
      %p183 = scmp.ne.s32.totalorder %s178, %s180
      %p184 = scmp.eq.s32.totalorder %s18, 0
      %p185 = por %p183, %p184
      %p186 = scmp.ne.s32.totalorder %s178, %s180
      %p187 = scmp.eq.s32.totalorder %s23, 1
      %p188 = por %p186, %p187
      %p189 = scmp.ne.s32.totalorder %s180, %s181
      %p190 = scmp.eq.s32.totalorder %s23, 0
      %p191 = por %p189, %p190
      %p192 = scmp.ne.s32.totalorder %s180, %s181
      %p193 = scmp.eq.s32.totalorder %s24, 1
      %p194 = por %p192, %p193
      %p196 = scmp.ne.s32.totalorder %s181, %s195
      %p197 = scmp.eq.s32.totalorder %s24, 0
      %p198 = por %p196, %p197
      %s200 = sadd.s32 %s199, 1
      %p203 = scmp.eq.s32.totalorder %s18, 1
      %p204 = scmp.ne.s32.totalorder %s199, %s201
      %p205 = scmp.eq.s32.totalorder %s18, 0
      %p206 = por %p204, %p205
      %p207 = scmp.ne.s32.totalorder %s199, %s201
      %p208 = scmp.eq.s32.totalorder %s23, 1
      %p209 = por %p207, %p208
      %p210 = scmp.ne.s32.totalorder %s201, %s202
      %p211 = scmp.eq.s32.totalorder %s23, 0
      %p212 = por %p210, %p211
      %p213 = scmp.ne.s32.totalorder %s201, %s202
      %p214 = scmp.eq.s32.totalorder %s24, 1
      %p215 = por %p213, %p214
      %p217 = scmp.ne.s32.totalorder %s202, %s216
      %p218 = scmp.eq.s32.totalorder %s24, 0
      %p219 = por %p217, %p218
      %s220 = ssub.s32 %s18, %s25
      %p221 = scmp.eq.s32.totalorder %s220, 0
      %s223 = sadd.s32 %s222, 1
      %s224 = scalar_select %p221, %s222, %s223
      %p227 = pneg %p221
      %p228 = scmp.eq.s32.totalorder %s18, 1
      %p229 = por %p227, %p228
      %p230 = scmp.ne.s32.totalorder %s222, %s225
      %p231 = scmp.eq.s32.totalorder %s18, 0
      %p232 = por %p230, %p231
      %p233 = scmp.ne.s32.totalorder %s222, %s225
      %p234 = scmp.eq.s32.totalorder %s23, 1
      %p235 = por %p233, %p234
      %p236 = scmp.ne.s32.totalorder %s225, %s226
      %p237 = scmp.eq.s32.totalorder %s23, 0
      %p238 = por %p236, %p237
      %p239 = scmp.ne.s32.totalorder %s225, %s226
      %p240 = scmp.eq.s32.totalorder %s24, 1
      %p241 = por %p239, %p240
      %p243 = scmp.ne.s32.totalorder %s226, %s242
      %p244 = scmp.eq.s32.totalorder %s24, 0
      %p245 = por %p243, %p244
      %p246 = scmp.le.s32.totalorder 1, %s18
      %p247 = scmp.lt.s32.totalorder %s18, 3
      %p248 = pnand %p246, %p247
      %p249 = pneg %p248
      // Predicated region
      $region9: #{tpu_custom_call.1} parent=5 // pred_check
        _
      $region10: #{tpu_custom_call.1} parent=5 // pred_check_branch
        %251 = sbr.rel (%p248) target = $region12
      $region11: #{tpu_custom_call.1} parent=5 // pred_region
        %s252 = ssub.s32 %s18, 1
        // Predicated region
        $region13: #{tpu_custom_call.1} parent=11 // pred_check
          %p253 = pneg %p65
        $region14: #{tpu_custom_call.1} parent=11 // pred_check_branch
          %255 = sbr.rel (%p253) target = $region16
        $region15: #{tpu_custom_call.1} parent=11 // pred_region
          _
        $region16: #{tpu_custom_call.1} parent=11 // pred_fallthru
          _
        // Predicated region
        $region17: #{tpu_custom_call.1} parent=11 // pred_check
          %p256 = pneg %p86
        $region18: #{tpu_custom_call.1} parent=11 // pred_check_branch
          %258 = sbr.rel (%p256) target = $region20
        $region19: #{tpu_custom_call.1} parent=11 // pred_region
          _
        $region20: #{tpu_custom_call.1} parent=11 // pred_fallthru
          _
        // Predicated region
        $region21: #{tpu_custom_call.1} parent=11 // pred_check
          %p259 = pneg %p107
        $region22: #{tpu_custom_call.1} parent=11 // pred_check_branch
          %261 = sbr.rel (%p259) target = $region24
        $region23: #{tpu_custom_call.1} parent=11 // pred_region
          _
        $region24: #{tpu_custom_call.1} parent=11 // pred_fallthru
          _
        // Predicated region
        $region25: #{tpu_custom_call.1} parent=11 // pred_check
          %p262 = pneg %p128
        $region26: #{tpu_custom_call.1} parent=11 // pred_check_branch
          %264 = sbr.rel (%p262) target = $region28
        $region27: #{tpu_custom_call.1} parent=11 // pred_region
          _
        $region28: #{tpu_custom_call.1} parent=11 // pred_fallthru
          _
        // Predicated region
        $region29: #{tpu_custom_call.1} parent=11 // pred_check
          %p265 = pneg %p149
        $region30: #{tpu_custom_call.1} parent=11 // pred_check_branch
          %267 = sbr.rel (%p265) target = $region32
        $region31: #{tpu_custom_call.1} parent=11 // pred_region
          _
        $region32: #{tpu_custom_call.1} parent=11 // pred_fallthru
          _
        // Predicated region
        $region33: #{tpu_custom_call.1} parent=11 // pred_check
          %p268 = pneg %p170
        $region34: #{tpu_custom_call.1} parent=11 // pred_check_branch
          %270 = sbr.rel (%p268) target = $region36
        $region35: #{tpu_custom_call.1} parent=11 // pred_region
          _
        $region36: #{tpu_custom_call.1} parent=11 // pred_fallthru
          _
        // Predicated region
        $region37: #{tpu_custom_call.1} parent=11 // pred_check
          %p271 = pneg %p191
        $region38: #{tpu_custom_call.1} parent=11 // pred_check_branch
          %273 = sbr.rel (%p271) target = $region40
        $region39: #{tpu_custom_call.1} parent=11 // pred_region
          _
        $region40: #{tpu_custom_call.1} parent=11 // pred_fallthru
          _
        // Predicated region
        $region41: #{tpu_custom_call.1} parent=11 // pred_check
          %p274 = pneg %p212
        $region42: #{tpu_custom_call.1} parent=11 // pred_check_branch
          %276 = sbr.rel (%p274) target = $region44
        $region43: #{tpu_custom_call.1} parent=11 // pred_region
          _
        $region44: #{tpu_custom_call.1} parent=11 // pred_fallthru
          _
      $region12: #{tpu_custom_call.1} parent=5 // pred_fallthru
        _
      %p277 = scmp.lt.s32.totalorder %s18, 2
      // Predicated region
      $region45: #{tpu_custom_call.1} parent=5 // pred_check
        %p278 = pneg %p277
      $region46: #{tpu_custom_call.1} parent=5 // pred_check_branch
        %280 = sbr.rel (%p278) target = $region48
      $region47: #{tpu_custom_call.1} parent=5 // pred_region
        // Predicated region
        $region49: #{tpu_custom_call.1} parent=47 // pred_check
          %p281 = pneg %p38
        $region50: #{tpu_custom_call.1} parent=47 // pred_check_branch
          %283 = sbr.rel (%p281) target = $region52
        $region51: #{tpu_custom_call.1} parent=47 // pred_region
          %p284 = scmp.lt.s32.totalorder %s18, 1
          %s285 = scalar_select %p284, %s18, 1
          %s286 = smul.addr %s285, 32
          %s287 = smul.addr %s286, 8
          %s288 = scalar_lea.vmem %s0, %s287
        $region52: #{tpu_custom_call.1} parent=47 // pred_fallthru
          _
      $region48: #{tpu_custom_call.1} parent=5 // pred_fallthru
        _
      %p289 = scmp.le.s32.totalorder 1, %s18
      %p290 = scmp.lt.s32.totalorder %s18, 3
      %p291 = pnand %p289, %p290
      %p292 = pneg %p291
      // Predicated region
      $region53: #{tpu_custom_call.1} parent=5 // pred_check
        _
      $region54: #{tpu_custom_call.1} parent=5 // pred_check_branch
        %294 = sbr.rel (%p291) target = $region56
      $region55: #{tpu_custom_call.1} parent=5 // pred_region
        %s295 = ssub.s32 %s18, 1
        %p296 = scmp.lt.s32.totalorder %s23, 1
        %s297 = scalar_select %p296, %s23, 1
        %s298 = smul.addr %s297, 32
        %s299 = smul.addr %s298, 8
        %s300 = scalar_lea.vmem %s0, %s299
        %p301 = pneg %p44
        %p302 = pneg %p41
        %p303 = pneg %p65
        %p304 = pneg %p62
        %p305 = pneg %p86
        %p306 = pneg %p83
        %p307 = pneg %p107
        %p308 = pneg %p104
        %p309 = pneg %p128
        %p310 = pneg %p125
        %p311 = pneg %p149
        %p312 = pneg %p146
        %p313 = pneg %p170
        %p314 = pneg %p167
        %p315 = pneg %p191
        %p316 = pneg %p188
        %p317 = pneg %p212
        %p318 = pneg %p209
        %p319 = pneg %p238
        %p320 = pneg %p235
        %s321 = sand.u32 %s225, 1
        %s322 = scalar_lea.sflag [#allocation4], %s321
        %s323 = sand.u32 %s225, 1
        %s324 = scalar_lea.vmem [#allocation3], %s323
        %p325 = scmp.lt.s32.totalorder %s23, 1
        %s326 = scalar_select %p325, %s23, 1
        %s327 = smul.addr %s326, 32
        %s328 = smul.addr %s327, 8
        %s329 = scalar_lea.vmem %s0, %s328
        %v330 = vld [vmem:[%s329] sm:$0xff]
        %v331 = vld [vmem:[%s329 + $0x8] sm:$0xff]
        %v332 = vld [vmem:[%s329 + $0x10] sm:$0xff]
        %v333 = vld [vmem:[%s329 + $0x18] sm:$0xff]
        %v334 = vld [vmem:[%s329 + $0x20] sm:$0xff]
        %v335 = vld [vmem:[%s329 + $0x28] sm:$0xff]
        %v336 = vld [vmem:[%s329 + $0x30] sm:$0xff]
        %v337 = vld [vmem:[%s329 + $0x38] sm:$0xff]
        %v338 = vld [vmem:[%s329 + $0x40] sm:$0xff]
        %v339 = vld [vmem:[%s329 + $0x48] sm:$0xff]
        %v340 = vld [vmem:[%s329 + $0x50] sm:$0xff]
        %v341 = vld [vmem:[%s329 + $0x58] sm:$0xff]
        %v342 = vld [vmem:[%s329 + $0x60] sm:$0xff]
        %v343 = vld [vmem:[%s329 + $0x68] sm:$0xff]
        %v344 = vld [vmem:[%s329 + $0x70] sm:$0xff]
        %v345 = vld [vmem:[%s329 + $0x78] sm:$0xff]
        %v346 = vld [vmem:[%s329 + $0x80] sm:$0xff]
        %v347 = vld [vmem:[%s329 + $0x88] sm:$0xff]
        %v348 = vld [vmem:[%s329 + $0x90] sm:$0xff]
        %v349 = vld [vmem:[%s329 + $0x98] sm:$0xff]
        %v350 = vld [vmem:[%s329 + $0xa0] sm:$0xff]
        %v351 = vld [vmem:[%s329 + $0xa8] sm:$0xff]
        %v352 = vld [vmem:[%s329 + $0xb0] sm:$0xff]
        %v353 = vld [vmem:[%s329 + $0xb8] sm:$0xff]
        %v354 = vld [vmem:[%s329 + $0xc0] sm:$0xff]
        %v355 = vld [vmem:[%s329 + $0xc8] sm:$0xff]
        %v356 = vld [vmem:[%s329 + $0xd0] sm:$0xff]
        %v357 = vld [vmem:[%s329 + $0xd8] sm:$0xff]
        %v358 = vld [vmem:[%s329 + $0xe0] sm:$0xff]
        %v359 = vld [vmem:[%s329 + $0xe8] sm:$0xff]
        %v360 = vld [vmem:[%s329 + $0xf0] sm:$0xff]
        %v361 = vld [vmem:[%s329 + $0xf8] sm:$0xff]
        %vm362 = vcmask 261120
        %363 = vst.msk [vmem:[#allocation2] sm:$0xff] %vm362, 0.0
        %364 = vst.msk [vmem:[#allocation2 + $0x8] sm:$0xff] %vm362, 0.0
        %vm365 = vcmask 254976
        %366 = vst.msk [vmem:[#allocation2 + $0x10] sm:$0x3] %vm365, 0.0
        %s367 = scalar_lea.vmem [#allocation2], 408
        %368 = vst.msk [vmem:[%s367] sm:$0xff] %vm362, 0.0
        %369 = vst.msk [vmem:[%s367 + $0x8] sm:$0xff] %vm362, 0.0
        %370 = vst.msk [vmem:[%s367 + $0x10] sm:$0x3] %vm365, 0.0
        %s371 = scalar_lea.vmem [#allocation2], 24
        %vm372 = vcmask 253952
        %373 = vst.msk [vmem:[%s371] sm:$0x1] %vm372, 0.0
        %374 = vst.msk [vmem:[%s371 + $0x18] sm:$0x1] %vm372, 0.0
        %375 = vst.msk [vmem:[%s371 + $0x30] sm:$0x1] %vm372, 0.0
        %376 = vst.msk [vmem:[%s371 + $0x48] sm:$0x1] %vm372, 0.0
        %377 = vst.msk [vmem:[%s371 + $0x60] sm:$0x1] %vm372, 0.0
        %378 = vst.msk [vmem:[%s371 + $0x78] sm:$0x1] %vm372, 0.0
        %379 = vst.msk [vmem:[%s371 + $0x90] sm:$0x1] %vm372, 0.0
        %380 = vst.msk [vmem:[%s371 + $0xa8] sm:$0x1] %vm372, 0.0
        %381 = vst.msk [vmem:[%s371 + $0xc0] sm:$0x1] %vm372, 0.0
        %382 = vst.msk [vmem:[%s371 + $0xd8] sm:$0x1] %vm372, 0.0
        %383 = vst.msk [vmem:[%s371 + $0xf0] sm:$0x1] %vm372, 0.0
        %384 = vst.msk [vmem:[%s371 + $0x108] sm:$0x1] %vm372, 0.0
        %385 = vst.msk [vmem:[%s371 + $0x120] sm:$0x1] %vm372, 0.0
        %386 = vst.msk [vmem:[%s371 + $0x138] sm:$0x1] %vm372, 0.0
        %387 = vst.msk [vmem:[%s371 + $0x150] sm:$0x1] %vm372, 0.0
        %388 = vst.msk [vmem:[%s371 + $0x168] sm:$0x1] %vm372, 0.0
        %389 = vst.msk [vmem:[%s371 + $0x11] sm:$0x1] %vm372, 0.0
        %390 = vst.msk [vmem:[%s371 + $0x29] sm:$0x1] %vm372, 0.0
        %391 = vst.msk [vmem:[%s371 + $0x41] sm:$0x1] %vm372, 0.0
        %392 = vst.msk [vmem:[%s371 + $0x59] sm:$0x1] %vm372, 0.0
        %393 = vst.msk [vmem:[%s371 + $0x71] sm:$0x1] %vm372, 0.0
        %394 = vst.msk [vmem:[%s371 + $0x89] sm:$0x1] %vm372, 0.0
        %395 = vst.msk [vmem:[%s371 + $0xa1] sm:$0x1] %vm372, 0.0
        %396 = vst.msk [vmem:[%s371 + $0xb9] sm:$0x1] %vm372, 0.0
        %397 = vst.msk [vmem:[%s371 + $0xd1] sm:$0x1] %vm372, 0.0
        %398 = vst.msk [vmem:[%s371 + $0xe9] sm:$0x1] %vm372, 0.0
        %399 = vst.msk [vmem:[%s371 + $0x101] sm:$0x1] %vm372, 0.0
        %400 = vst.msk [vmem:[%s371 + $0x119] sm:$0x1] %vm372, 0.0
        %401 = vst.msk [vmem:[%s371 + $0x131] sm:$0x1] %vm372, 0.0
        %402 = vst.msk [vmem:[%s371 + $0x149] sm:$0x1] %vm372, 0.0
        %403 = vst.msk [vmem:[%s371 + $0x161] sm:$0x1] %vm372, 0.0
        %404 = vst.msk [vmem:[%s371 + $0x179] sm:$0x1] %vm372, 0.0
        %405 = vst.msk [vmem:[%s371 + $0x1] sm:$0xff] %vm362, %v330
        %406 = vst.msk [vmem:[%s371 + $0x9] sm:$0xff] %vm362, %v331
        %407 = vst.msk [vmem:[%s371 + $0x19] sm:$0xff] %vm362, %v332
        %408 = vst.msk [vmem:[%s371 + $0x21] sm:$0xff] %vm362, %v333
        %409 = vst.msk [vmem:[%s371 + $0x31] sm:$0xff] %vm362, %v334
        %410 = vst.msk [vmem:[%s371 + $0x39] sm:$0xff] %vm362, %v335
        %411 = vst.msk [vmem:[%s371 + $0x49] sm:$0xff] %vm362, %v336
        %412 = vst.msk [vmem:[%s371 + $0x51] sm:$0xff] %vm362, %v337
        %413 = vst.msk [vmem:[%s371 + $0x61] sm:$0xff] %vm362, %v338
        %414 = vst.msk [vmem:[%s371 + $0x69] sm:$0xff] %vm362, %v339
        %415 = vst.msk [vmem:[%s371 + $0x79] sm:$0xff] %vm362, %v340
        %416 = vst.msk [vmem:[%s371 + $0x81] sm:$0xff] %vm362, %v341
        %417 = vst.msk [vmem:[%s371 + $0x91] sm:$0xff] %vm362, %v342
        %418 = vst.msk [vmem:[%s371 + $0x99] sm:$0xff] %vm362, %v343
        %419 = vst.msk [vmem:[%s371 + $0xa9] sm:$0xff] %vm362, %v344
        %420 = vst.msk [vmem:[%s371 + $0xb1] sm:$0xff] %vm362, %v345
        %421 = vst.msk [vmem:[%s371 + $0xc1] sm:$0xff] %vm362, %v346
        %422 = vst.msk [vmem:[%s371 + $0xc9] sm:$0xff] %vm362, %v347
        %423 = vst.msk [vmem:[%s371 + $0xd9] sm:$0xff] %vm362, %v348
        %424 = vst.msk [vmem:[%s371 + $0xe1] sm:$0xff] %vm362, %v349
        %425 = vst.msk [vmem:[%s371 + $0xf1] sm:$0xff] %vm362, %v350
        %426 = vst.msk [vmem:[%s371 + $0xf9] sm:$0xff] %vm362, %v351
        %427 = vst.msk [vmem:[%s371 + $0x109] sm:$0xff] %vm362, %v352
        %428 = vst.msk [vmem:[%s371 + $0x111] sm:$0xff] %vm362, %v353
        %429 = vst.msk [vmem:[%s371 + $0x121] sm:$0xff] %vm362, %v354
        %430 = vst.msk [vmem:[%s371 + $0x129] sm:$0xff] %vm362, %v355
        %431 = vst.msk [vmem:[%s371 + $0x139] sm:$0xff] %vm362, %v356
        %432 = vst.msk [vmem:[%s371 + $0x141] sm:$0xff] %vm362, %v357
        %433 = vst.msk [vmem:[%s371 + $0x151] sm:$0xff] %vm362, %v358
        %434 = vst.msk [vmem:[%s371 + $0x159] sm:$0xff] %vm362, %v359
        %435 = vst.msk [vmem:[%s371 + $0x169] sm:$0xff] %vm362, %v360
        %436 = vst.msk [vmem:[%s371 + $0x171] sm:$0xff] %vm362, %v361
        %v437 = vld [vmem:[#allocation2] sm:$0xff]
        %v438 = vld [vmem:[#allocation2 + $0x8] sm:$0xff]
        %v439 = vld [vmem:[#allocation2 + $0x18] sm:$0xff]
        %v440 = vld [vmem:[#allocation2 + $0x20] sm:$0xff]
        %v441 = vld [vmem:[#allocation2 + $0x30] sm:$0xff]
        %v442 = vld [vmem:[#allocation2 + $0x38] sm:$0xff]
        %v443 = vld [vmem:[#allocation2 + $0x48] sm:$0xff]
        %v444 = vld [vmem:[#allocation2 + $0x50] sm:$0xff]
        %v445 = vld [vmem:[#allocation2 + $0x60] sm:$0xff]
        %v446 = vld [vmem:[#allocation2 + $0x68] sm:$0xff]
        %v447 = vld [vmem:[#allocation2 + $0x78] sm:$0xff]
        %v448 = vld [vmem:[#allocation2 + $0x80] sm:$0xff]
        %v449 = vld [vmem:[#allocation2 + $0x90] sm:$0xff]
        %v450 = vld [vmem:[#allocation2 + $0x98] sm:$0xff]
        %v451 = vld [vmem:[#allocation2 + $0xa8] sm:$0xff]
        %v452 = vld [vmem:[#allocation2 + $0xb0] sm:$0xff]
        %v453 = vld [vmem:[#allocation2 + $0xc0] sm:$0xff]
        %v454 = vld [vmem:[#allocation2 + $0xc8] sm:$0xff]
        %v455 = vld [vmem:[#allocation2 + $0xd8] sm:$0xff]
        %v456 = vld [vmem:[#allocation2 + $0xe0] sm:$0xff]
        %v457 = vld [vmem:[#allocation2 + $0xf0] sm:$0xff]
        %v458 = vld [vmem:[#allocation2 + $0xf8] sm:$0xff]
        %v459 = vld [vmem:[#allocation2 + $0x108] sm:$0xff]
        %v460 = vld [vmem:[#allocation2 + $0x110] sm:$0xff]
        %v461 = vld [vmem:[#allocation2 + $0x120] sm:$0xff]
        %v462 = vld [vmem:[#allocation2 + $0x128] sm:$0xff]
        %v463 = vld [vmem:[#allocation2 + $0x138] sm:$0xff]
        %v464 = vld [vmem:[#allocation2 + $0x140] sm:$0xff]
        %v465 = vld [vmem:[#allocation2 + $0x150] sm:$0xff]
        %v466 = vld [vmem:[#allocation2 + $0x158] sm:$0xff]
        %v467 = vld [vmem:[#allocation2 + $0x168] sm:$0xff]
        %v468 = vld [vmem:[#allocation2 + $0x170] sm:$0xff]
        %v469 = vld [vmem:[%s1] sm:$0xff]
        %v470 = vld [vmem:[%s1 + $0x8] sm:$0xff]
        %v471 = vld [vmem:[%s1 + $0x10] sm:$0xff]
        %v472 = vld [vmem:[%s1 + $0x18] sm:$0xff]
        %v473 = vld [vmem:[#allocation2 + $0x1] sm:$0xff]
        %v474 = vld [vmem:[#allocation2 + $0x9] sm:$0xff]
        %v475 = vld [vmem:[#allocation2 + $0x19] sm:$0xff]
        %v476 = vld [vmem:[#allocation2 + $0x21] sm:$0xff]
        %v477 = vld [vmem:[#allocation2 + $0x31] sm:$0xff]
        %v478 = vld [vmem:[#allocation2 + $0x39] sm:$0xff]
        %v479 = vld [vmem:[#allocation2 + $0x49] sm:$0xff]
        %v480 = vld [vmem:[#allocation2 + $0x51] sm:$0xff]
        %v481 = vld [vmem:[#allocation2 + $0x61] sm:$0xff]
        %v482 = vld [vmem:[#allocation2 + $0x69] sm:$0xff]
        %v483 = vld [vmem:[#allocation2 + $0x79] sm:$0xff]
        %v484 = vld [vmem:[#allocation2 + $0x81] sm:$0xff]
        %v485 = vld [vmem:[#allocation2 + $0x91] sm:$0xff]
        %v486 = vld [vmem:[#allocation2 + $0x99] sm:$0xff]
        %v487 = vld [vmem:[#allocation2 + $0xa9] sm:$0xff]
        %v488 = vld [vmem:[#allocation2 + $0xb1] sm:$0xff]
        %v489 = vld [vmem:[#allocation2 + $0xc1] sm:$0xff]
        %v490 = vld [vmem:[#allocation2 + $0xc9] sm:$0xff]
        %v491 = vld [vmem:[#allocation2 + $0xd9] sm:$0xff]
        %v492 = vld [vmem:[#allocation2 + $0xe1] sm:$0xff]
        %v493 = vld [vmem:[#allocation2 + $0xf1] sm:$0xff]
        %v494 = vld [vmem:[#allocation2 + $0xf9] sm:$0xff]
        %v495 = vld [vmem:[#allocation2 + $0x109] sm:$0xff]
        %v496 = vld [vmem:[#allocation2 + $0x111] sm:$0xff]
        %v497 = vld [vmem:[#allocation2 + $0x121] sm:$0xff]
        %v498 = vld [vmem:[#allocation2 + $0x129] sm:$0xff]
        %v499 = vld [vmem:[#allocation2 + $0x139] sm:$0xff]
        %v500 = vld [vmem:[#allocation2 + $0x141] sm:$0xff]
        %v501 = vld [vmem:[#allocation2 + $0x151] sm:$0xff]
        %v502 = vld [vmem:[#allocation2 + $0x159] sm:$0xff]
        %v503 = vld [vmem:[#allocation2 + $0x169] sm:$0xff]
        %v504 = vld [vmem:[#allocation2 + $0x171] sm:$0xff]
        %v505 = vld [vmem:[%s1 + $0x20] sm:$0xff]
        %v506 = vld [vmem:[%s1 + $0x28] sm:$0xff]
        %v507 = vld [vmem:[%s1 + $0x30] sm:$0xff]
        %v508 = vld [vmem:[%s1 + $0x38] sm:$0xff]
        %v510 = vsel %vm362, %v473, 0
        %v513 = vsel %vm362, %v474, 0
        %v516 = vsel %vm362, %v475, 0
        %v519 = vsel %vm362, %v476, 0
        %v522 = vsel %vm362, %v477, 0
        %v525 = vsel %vm362, %v478, 0
        %v528 = vsel %vm362, %v479, 0
        %v531 = vsel %vm362, %v480, 0
        %v534 = vsel %vm362, %v481, 0
        %v537 = vsel %vm362, %v482, 0
        %v540 = vsel %vm362, %v483, 0
        %v543 = vsel %vm362, %v484, 0
        %v546 = vsel %vm362, %v485, 0
        %v549 = vsel %vm362, %v486, 0
        %v552 = vsel %vm362, %v487, 0
        %v555 = vsel %vm362, %v488, 0
        %v558 = vsel %vm362, %v489, 0
        %v561 = vsel %vm362, %v490, 0
        %v564 = vsel %vm362, %v491, 0
        %v567 = vsel %vm362, %v492, 0
        %v570 = vsel %vm362, %v493, 0
        %v573 = vsel %vm362, %v494, 0
        %v576 = vsel %vm362, %v495, 0
        %v579 = vsel %vm362, %v496, 0
        %v582 = vsel %vm362, %v497, 0
        %v585 = vsel %vm362, %v498, 0
        %v588 = vsel %vm362, %v499, 0
        %v591 = vsel %vm362, %v500, 0
        %v594 = vsel %vm362, %v501, 0
        %v597 = vsel %vm362, %v502, 0
        %v600 = vsel %vm362, %v503, 0
        %v603 = vsel %vm362, %v504, 0
        %605 = vmatpush.msra.mxu0 0.0
        %606 = vmatpush.msra.mxu0 0.0
        %607 = vmatpush.msra.mxu0 0.0
        %608 = vmatpush.msra.mxu0 0.0
        %609 = vmatpush.msra.mxu0 0.0
        %610 = vmatpush.msra.mxu0 0.0
        %611 = vmatpush.msra.mxu0 0.0
        %612 = vmatpush.msra.mxu0 0.0
        %613 = vmatpush.msra.mxu0 0.0
        %614 = vmatpush.msra.mxu0 0.0
        %615 = vmatpush.msra.mxu0 0.0
        %616 = vmatpush.msra.mxu0 0.0
        %617 = vmatpush.msra.mxu0 %v508
        %618 = vmatpush.msra.mxu0 %v507
        %619 = vmatpush.msra.mxu0 %v506
        %620 = vmatpush.msra.mxu0 %v505
        %621 = vmatmul.f32.gmra.mxu0 %v510
        %v622 = vpop.f32.mrf.mxu0
        %v623 = vadd.f32 0.0, %v622
        %624 = vmatmul.f32.gmra.mxu0 %v513
        %v625 = vpop.f32.mrf.mxu0
        %v626 = vadd.f32 0.0, %v625
        %627 = vmatmul.f32.gmra.mxu0 %v516
        %v628 = vpop.f32.mrf.mxu0
        %v629 = vadd.f32 0.0, %v628
        %630 = vmatmul.f32.gmra.mxu0 %v519
        %v631 = vpop.f32.mrf.mxu0
        %v632 = vadd.f32 0.0, %v631
        %633 = vmatmul.f32.gmra.mxu0 %v522
        %v634 = vpop.f32.mrf.mxu0
        %v635 = vadd.f32 0.0, %v634
        %636 = vmatmul.f32.gmra.mxu0 %v525
        %v637 = vpop.f32.mrf.mxu0
        %v638 = vadd.f32 0.0, %v637
        %639 = vmatmul.f32.gmra.mxu0 %v528
        %v640 = vpop.f32.mrf.mxu0
        %v641 = vadd.f32 0.0, %v640
        %642 = vmatmul.f32.gmra.mxu0 %v531
        %v643 = vpop.f32.mrf.mxu0
        %v644 = vadd.f32 0.0, %v643
        %645 = vmatmul.f32.gmra.mxu0 %v534
        %v646 = vpop.f32.mrf.mxu0
        %v647 = vadd.f32 0.0, %v646
        %648 = vmatmul.f32.gmra.mxu0 %v537
        %v649 = vpop.f32.mrf.mxu0
        %v650 = vadd.f32 0.0, %v649
        %651 = vmatmul.f32.gmra.mxu0 %v540
        %v652 = vpop.f32.mrf.mxu0
        %v653 = vadd.f32 0.0, %v652
        %654 = vmatmul.f32.gmra.mxu0 %v543
        %v655 = vpop.f32.mrf.mxu0
        %v656 = vadd.f32 0.0, %v655
        %657 = vmatmul.f32.gmra.mxu0 %v546
        %v658 = vpop.f32.mrf.mxu0
        %v659 = vadd.f32 0.0, %v658
        %660 = vmatmul.f32.gmra.mxu0 %v549
        %v661 = vpop.f32.mrf.mxu0
        %v662 = vadd.f32 0.0, %v661
        %663 = vmatmul.f32.gmra.mxu0 %v552
        %v664 = vpop.f32.mrf.mxu0
        %v665 = vadd.f32 0.0, %v664
        %666 = vmatmul.f32.gmra.mxu0 %v555
        %v667 = vpop.f32.mrf.mxu0
        %v668 = vadd.f32 0.0, %v667
        %669 = vmatmul.f32.gmra.mxu0 %v558
        %v670 = vpop.f32.mrf.mxu0
        %v671 = vadd.f32 0.0, %v670
        %672 = vmatmul.f32.gmra.mxu0 %v561
        %v673 = vpop.f32.mrf.mxu0
        %v674 = vadd.f32 0.0, %v673
        %675 = vmatmul.f32.gmra.mxu0 %v564
        %v676 = vpop.f32.mrf.mxu0
        %v677 = vadd.f32 0.0, %v676
        %678 = vmatmul.f32.gmra.mxu0 %v567
        %v679 = vpop.f32.mrf.mxu0
        %v680 = vadd.f32 0.0, %v679
        %681 = vmatmul.f32.gmra.mxu0 %v570
        %v682 = vpop.f32.mrf.mxu0
        %v683 = vadd.f32 0.0, %v682
        %684 = vmatmul.f32.gmra.mxu0 %v573
        %v685 = vpop.f32.mrf.mxu0
        %v686 = vadd.f32 0.0, %v685
        %687 = vmatmul.f32.gmra.mxu0 %v576
        %v688 = vpop.f32.mrf.mxu0
        %v689 = vadd.f32 0.0, %v688
        %690 = vmatmul.f32.gmra.mxu0 %v579
        %v691 = vpop.f32.mrf.mxu0
        %v692 = vadd.f32 0.0, %v691
        %693 = vmatmul.f32.gmra.mxu0 %v582
        %v694 = vpop.f32.mrf.mxu0
        %v695 = vadd.f32 0.0, %v694
        %696 = vmatmul.f32.gmra.mxu0 %v585
        %v697 = vpop.f32.mrf.mxu0
        %v698 = vadd.f32 0.0, %v697
        %699 = vmatmul.f32.gmra.mxu0 %v588
        %v700 = vpop.f32.mrf.mxu0
        %v701 = vadd.f32 0.0, %v700
        %702 = vmatmul.f32.gmra.mxu0 %v591
        %v703 = vpop.f32.mrf.mxu0
        %v704 = vadd.f32 0.0, %v703
        %705 = vmatmul.f32.gmra.mxu0 %v594
        %v706 = vpop.f32.mrf.mxu0
        %v707 = vadd.f32 0.0, %v706
        %708 = vmatmul.f32.gmra.mxu0 %v597
        %v709 = vpop.f32.mrf.mxu0
        %v710 = vadd.f32 0.0, %v709
        %711 = vmatmul.f32.gmra.mxu0 %v600
        %v712 = vpop.f32.mrf.mxu0
        %v713 = vadd.f32 0.0, %v712
        %714 = vmatmul.f32.gmra.mxu0 %v603
        %v715 = vpop.f32.mrf.mxu0
        %v716 = vadd.f32 0.0, %v715
        %717 = vdwg.mxu0
        %v719 = vsel %vm362, %v437, 0
        %v722 = vsel %vm362, %v438, 0
        %v725 = vsel %vm362, %v439, 0
        %v728 = vsel %vm362, %v440, 0
        %v731 = vsel %vm362, %v441, 0
        %v734 = vsel %vm362, %v442, 0
        %v737 = vsel %vm362, %v443, 0
        %v740 = vsel %vm362, %v444, 0
        %v743 = vsel %vm362, %v445, 0
        %v746 = vsel %vm362, %v446, 0
        %v749 = vsel %vm362, %v447, 0
        %v752 = vsel %vm362, %v448, 0
        %v755 = vsel %vm362, %v449, 0
        %v758 = vsel %vm362, %v450, 0
        %v761 = vsel %vm362, %v451, 0
        %v764 = vsel %vm362, %v452, 0
        %v767 = vsel %vm362, %v453, 0
        %v770 = vsel %vm362, %v454, 0
        %v773 = vsel %vm362, %v455, 0
        %v776 = vsel %vm362, %v456, 0
        %v779 = vsel %vm362, %v457, 0
        %v782 = vsel %vm362, %v458, 0
        %v785 = vsel %vm362, %v459, 0
        %v788 = vsel %vm362, %v460, 0
        %v791 = vsel %vm362, %v461, 0
        %v794 = vsel %vm362, %v462, 0
        %v797 = vsel %vm362, %v463, 0
        %v800 = vsel %vm362, %v464, 0
        %v803 = vsel %vm362, %v465, 0
        %v806 = vsel %vm362, %v466, 0
        %v809 = vsel %vm362, %v467, 0
        %v812 = vsel %vm362, %v468, 0
        %814 = vmatpush.msra.mxu0 0.0
        %815 = vmatpush.msra.mxu0 0.0
        %816 = vmatpush.msra.mxu0 0.0
        %817 = vmatpush.msra.mxu0 0.0
        %818 = vmatpush.msra.mxu0 0.0
        %819 = vmatpush.msra.mxu0 0.0
        %820 = vmatpush.msra.mxu0 0.0
        %821 = vmatpush.msra.mxu0 0.0
        %822 = vmatpush.msra.mxu0 0.0
        %823 = vmatpush.msra.mxu0 0.0
        %824 = vmatpush.msra.mxu0 0.0
        %825 = vmatpush.msra.mxu0 0.0
        %826 = vmatpush.msra.mxu0 %v472
        %827 = vmatpush.msra.mxu0 %v471
        %828 = vmatpush.msra.mxu0 %v470
        %829 = vmatpush.msra.mxu0 %v469
        %830 = vmatmul.f32.gmra.mxu0 %v719
        %v831 = vpop.f32.mrf.mxu0
        %v832 = vadd.f32 %v623, %v831
        %833 = vmatmul.f32.gmra.mxu0 %v722
        %v834 = vpop.f32.mrf.mxu0
        %v835 = vadd.f32 %v626, %v834
        %836 = vmatmul.f32.gmra.mxu0 %v725
        %v837 = vpop.f32.mrf.mxu0
        %v838 = vadd.f32 %v629, %v837
        %839 = vmatmul.f32.gmra.mxu0 %v728
        %v840 = vpop.f32.mrf.mxu0
        %v841 = vadd.f32 %v632, %v840
        %842 = vmatmul.f32.gmra.mxu0 %v731
        %v843 = vpop.f32.mrf.mxu0
        %v844 = vadd.f32 %v635, %v843
        %845 = vmatmul.f32.gmra.mxu0 %v734
        %v846 = vpop.f32.mrf.mxu0
        %v847 = vadd.f32 %v638, %v846
        %848 = vmatmul.f32.gmra.mxu0 %v737
        %v849 = vpop.f32.mrf.mxu0
        %v850 = vadd.f32 %v641, %v849
        %851 = vmatmul.f32.gmra.mxu0 %v740
        %v852 = vpop.f32.mrf.mxu0
        %v853 = vadd.f32 %v644, %v852
        %854 = vmatmul.f32.gmra.mxu0 %v743
        %v855 = vpop.f32.mrf.mxu0
        %v856 = vadd.f32 %v647, %v855
        %857 = vmatmul.f32.gmra.mxu0 %v746
        %v858 = vpop.f32.mrf.mxu0
        %v859 = vadd.f32 %v650, %v858
        %860 = vmatmul.f32.gmra.mxu0 %v749
        %v861 = vpop.f32.mrf.mxu0
        %v862 = vadd.f32 %v653, %v861
        %863 = vmatmul.f32.gmra.mxu0 %v752
        %v864 = vpop.f32.mrf.mxu0
        %v865 = vadd.f32 %v656, %v864
        %866 = vmatmul.f32.gmra.mxu0 %v755
        %v867 = vpop.f32.mrf.mxu0
        %v868 = vadd.f32 %v659, %v867
        %869 = vmatmul.f32.gmra.mxu0 %v758
        %v870 = vpop.f32.mrf.mxu0
        %v871 = vadd.f32 %v662, %v870
        %872 = vmatmul.f32.gmra.mxu0 %v761
        %v873 = vpop.f32.mrf.mxu0
        %v874 = vadd.f32 %v665, %v873
        %875 = vmatmul.f32.gmra.mxu0 %v764
        %v876 = vpop.f32.mrf.mxu0
        %v877 = vadd.f32 %v668, %v876
        %878 = vmatmul.f32.gmra.mxu0 %v767
        %v879 = vpop.f32.mrf.mxu0
        %v880 = vadd.f32 %v671, %v879
        %881 = vmatmul.f32.gmra.mxu0 %v770
        %v882 = vpop.f32.mrf.mxu0
        %v883 = vadd.f32 %v674, %v882
        %884 = vmatmul.f32.gmra.mxu0 %v773
        %v885 = vpop.f32.mrf.mxu0
        %v886 = vadd.f32 %v677, %v885
        %887 = vmatmul.f32.gmra.mxu0 %v776
        %v888 = vpop.f32.mrf.mxu0
        %v889 = vadd.f32 %v680, %v888
        %890 = vmatmul.f32.gmra.mxu0 %v779
        %v891 = vpop.f32.mrf.mxu0
        %v892 = vadd.f32 %v683, %v891
        %893 = vmatmul.f32.gmra.mxu0 %v782
        %v894 = vpop.f32.mrf.mxu0
        %v895 = vadd.f32 %v686, %v894
        %896 = vmatmul.f32.gmra.mxu0 %v785
        %v897 = vpop.f32.mrf.mxu0
        %v898 = vadd.f32 %v689, %v897
        %899 = vmatmul.f32.gmra.mxu0 %v788
        %v900 = vpop.f32.mrf.mxu0
        %v901 = vadd.f32 %v692, %v900
        %902 = vmatmul.f32.gmra.mxu0 %v791
        %v903 = vpop.f32.mrf.mxu0
        %v904 = vadd.f32 %v695, %v903
        %905 = vmatmul.f32.gmra.mxu0 %v794
        %v906 = vpop.f32.mrf.mxu0
        %v907 = vadd.f32 %v698, %v906
        %908 = vmatmul.f32.gmra.mxu0 %v797
        %v909 = vpop.f32.mrf.mxu0
        %v910 = vadd.f32 %v701, %v909
        %911 = vmatmul.f32.gmra.mxu0 %v800
        %v912 = vpop.f32.mrf.mxu0
        %v913 = vadd.f32 %v704, %v912
        %914 = vmatmul.f32.gmra.mxu0 %v803
        %v915 = vpop.f32.mrf.mxu0
        %v916 = vadd.f32 %v707, %v915
        %917 = vmatmul.f32.gmra.mxu0 %v806
        %v918 = vpop.f32.mrf.mxu0
        %v919 = vadd.f32 %v710, %v918
        %920 = vmatmul.f32.gmra.mxu0 %v809
        %v921 = vpop.f32.mrf.mxu0
        %v922 = vadd.f32 %v713, %v921
        %923 = vmatmul.f32.gmra.mxu0 %v812
        %v924 = vpop.f32.mrf.mxu0
        %v925 = vadd.f32 %v716, %v924
        %926 = vdwg.mxu0
        %v927 = vld [vmem:[#allocation2 + $0x2] sm:$0xff]
        %v928 = vld [vmem:[#allocation2 + $0xa] sm:$0xff]
        %v929 = vld [vmem:[#allocation2 + $0x1a] sm:$0xff]
        %v930 = vld [vmem:[#allocation2 + $0x22] sm:$0xff]
        %v931 = vld [vmem:[#allocation2 + $0x32] sm:$0xff]
        %v932 = vld [vmem:[#allocation2 + $0x3a] sm:$0xff]
        %v933 = vld [vmem:[#allocation2 + $0x4a] sm:$0xff]
        %v934 = vld [vmem:[#allocation2 + $0x52] sm:$0xff]
        %v935 = vld [vmem:[#allocation2 + $0x62] sm:$0xff]
        %v936 = vld [vmem:[#allocation2 + $0x6a] sm:$0xff]
        %v937 = vld [vmem:[#allocation2 + $0x7a] sm:$0xff]
        %v938 = vld [vmem:[#allocation2 + $0x82] sm:$0xff]
        %v939 = vld [vmem:[#allocation2 + $0x92] sm:$0xff]
        %v940 = vld [vmem:[#allocation2 + $0x9a] sm:$0xff]
        %v941 = vld [vmem:[#allocation2 + $0xaa] sm:$0xff]
        %v942 = vld [vmem:[#allocation2 + $0xb2] sm:$0xff]
        %v943 = vld [vmem:[#allocation2 + $0xc2] sm:$0xff]
        %v944 = vld [vmem:[#allocation2 + $0xca] sm:$0xff]
        %v945 = vld [vmem:[#allocation2 + $0xda] sm:$0xff]
        %v946 = vld [vmem:[#allocation2 + $0xe2] sm:$0xff]
        %v947 = vld [vmem:[#allocation2 + $0xf2] sm:$0xff]
        %v948 = vld [vmem:[#allocation2 + $0xfa] sm:$0xff]
        %v949 = vld [vmem:[#allocation2 + $0x10a] sm:$0xff]
        %v950 = vld [vmem:[#allocation2 + $0x112] sm:$0xff]
        %v951 = vld [vmem:[#allocation2 + $0x122] sm:$0xff]
        %v952 = vld [vmem:[#allocation2 + $0x12a] sm:$0xff]
        %v953 = vld [vmem:[#allocation2 + $0x13a] sm:$0xff]
        %v954 = vld [vmem:[#allocation2 + $0x142] sm:$0xff]
        %v955 = vld [vmem:[#allocation2 + $0x152] sm:$0xff]
        %v956 = vld [vmem:[#allocation2 + $0x15a] sm:$0xff]
        %v957 = vld [vmem:[#allocation2 + $0x16a] sm:$0xff]
        %v958 = vld [vmem:[#allocation2 + $0x172] sm:$0xff]
        %v959 = vld [vmem:[%s1 + $0x40] sm:$0xff]
        %v960 = vld [vmem:[%s1 + $0x48] sm:$0xff]
        %v961 = vld [vmem:[%s1 + $0x50] sm:$0xff]
        %v962 = vld [vmem:[%s1 + $0x58] sm:$0xff]
        %v964 = vsel %vm362, %v927, 0
        %v967 = vsel %vm362, %v928, 0
        %v970 = vsel %vm362, %v929, 0
        %v973 = vsel %vm362, %v930, 0
        %v976 = vsel %vm362, %v931, 0
        %v979 = vsel %vm362, %v932, 0
        %v982 = vsel %vm362, %v933, 0
        %v985 = vsel %vm362, %v934, 0
        %v988 = vsel %vm362, %v935, 0
        %v991 = vsel %vm362, %v936, 0
        %v994 = vsel %vm362, %v937, 0
        %v997 = vsel %vm362, %v938, 0
        %v1000 = vsel %vm362, %v939, 0
        %v1003 = vsel %vm362, %v940, 0
        %v1006 = vsel %vm362, %v941, 0
        %v1009 = vsel %vm362, %v942, 0
        %v1012 = vsel %vm362, %v943, 0
        %v1015 = vsel %vm362, %v944, 0
        %v1018 = vsel %vm362, %v945, 0
        %v1021 = vsel %vm362, %v946, 0
        %v1024 = vsel %vm362, %v947, 0
        %v1027 = vsel %vm362, %v948, 0
        %v1030 = vsel %vm362, %v949, 0
        %v1033 = vsel %vm362, %v950, 0
        %v1036 = vsel %vm362, %v951, 0
        %v1039 = vsel %vm362, %v952, 0
        %v1042 = vsel %vm362, %v953, 0
        %v1045 = vsel %vm362, %v954, 0
        %v1048 = vsel %vm362, %v955, 0
        %v1051 = vsel %vm362, %v956, 0
        %v1054 = vsel %vm362, %v957, 0
        %v1057 = vsel %vm362, %v958, 0
        %1059 = vmatpush.msra.mxu0 0.0
        %1060 = vmatpush.msra.mxu0 0.0
        %1061 = vmatpush.msra.mxu0 0.0
        %1062 = vmatpush.msra.mxu0 0.0
        %1063 = vmatpush.msra.mxu0 0.0
        %1064 = vmatpush.msra.mxu0 0.0
        %1065 = vmatpush.msra.mxu0 0.0
        %1066 = vmatpush.msra.mxu0 0.0
        %1067 = vmatpush.msra.mxu0 0.0
        %1068 = vmatpush.msra.mxu0 0.0
        %1069 = vmatpush.msra.mxu0 0.0
        %1070 = vmatpush.msra.mxu0 0.0
        %1071 = vmatpush.msra.mxu0 %v962
        %1072 = vmatpush.msra.mxu0 %v961
        %1073 = vmatpush.msra.mxu0 %v960
        %1074 = vmatpush.msra.mxu0 %v959
        %1075 = vmatmul.f32.gmra.mxu0 %v964
        %v1076 = vpop.f32.mrf.mxu0
        %v1077 = vadd.f32 0.0, %v1076
        %1078 = vmatmul.f32.gmra.mxu0 %v967
        %v1079 = vpop.f32.mrf.mxu0
        %v1080 = vadd.f32 0.0, %v1079
        %1081 = vmatmul.f32.gmra.mxu0 %v970
        %v1082 = vpop.f32.mrf.mxu0
        %v1083 = vadd.f32 0.0, %v1082
        %1084 = vmatmul.f32.gmra.mxu0 %v973
        %v1085 = vpop.f32.mrf.mxu0
        %v1086 = vadd.f32 0.0, %v1085
        %1087 = vmatmul.f32.gmra.mxu0 %v976
        %v1088 = vpop.f32.mrf.mxu0
        %v1089 = vadd.f32 0.0, %v1088
        %1090 = vmatmul.f32.gmra.mxu0 %v979
        %v1091 = vpop.f32.mrf.mxu0
        %v1092 = vadd.f32 0.0, %v1091
        %1093 = vmatmul.f32.gmra.mxu0 %v982
        %v1094 = vpop.f32.mrf.mxu0
        %v1095 = vadd.f32 0.0, %v1094
        %1096 = vmatmul.f32.gmra.mxu0 %v985
        %v1097 = vpop.f32.mrf.mxu0
        %v1098 = vadd.f32 0.0, %v1097
        %1099 = vmatmul.f32.gmra.mxu0 %v988
        %v1100 = vpop.f32.mrf.mxu0
        %v1101 = vadd.f32 0.0, %v1100
        %1102 = vmatmul.f32.gmra.mxu0 %v991
        %v1103 = vpop.f32.mrf.mxu0
        %v1104 = vadd.f32 0.0, %v1103
        %1105 = vmatmul.f32.gmra.mxu0 %v994
        %v1106 = vpop.f32.mrf.mxu0
        %v1107 = vadd.f32 0.0, %v1106
        %1108 = vmatmul.f32.gmra.mxu0 %v997
        %v1109 = vpop.f32.mrf.mxu0
        %v1110 = vadd.f32 0.0, %v1109
        %1111 = vmatmul.f32.gmra.mxu0 %v1000
        %v1112 = vpop.f32.mrf.mxu0
        %v1113 = vadd.f32 0.0, %v1112
        %1114 = vmatmul.f32.gmra.mxu0 %v1003
        %v1115 = vpop.f32.mrf.mxu0
        %v1116 = vadd.f32 0.0, %v1115
        %1117 = vmatmul.f32.gmra.mxu0 %v1006
        %v1118 = vpop.f32.mrf.mxu0
        %v1119 = vadd.f32 0.0, %v1118
        %1120 = vmatmul.f32.gmra.mxu0 %v1009
        %v1121 = vpop.f32.mrf.mxu0
        %v1122 = vadd.f32 0.0, %v1121
        %1123 = vmatmul.f32.gmra.mxu0 %v1012
        %v1124 = vpop.f32.mrf.mxu0
        %v1125 = vadd.f32 0.0, %v1124
        %1126 = vmatmul.f32.gmra.mxu0 %v1015
        %v1127 = vpop.f32.mrf.mxu0
        %v1128 = vadd.f32 0.0, %v1127
        %1129 = vmatmul.f32.gmra.mxu0 %v1018
        %v1130 = vpop.f32.mrf.mxu0
        %v1131 = vadd.f32 0.0, %v1130
        %1132 = vmatmul.f32.gmra.mxu0 %v1021
        %v1133 = vpop.f32.mrf.mxu0
        %v1134 = vadd.f32 0.0, %v1133
        %1135 = vmatmul.f32.gmra.mxu0 %v1024
        %v1136 = vpop.f32.mrf.mxu0
        %v1137 = vadd.f32 0.0, %v1136
        %1138 = vmatmul.f32.gmra.mxu0 %v1027
        %v1139 = vpop.f32.mrf.mxu0
        %v1140 = vadd.f32 0.0, %v1139
        %1141 = vmatmul.f32.gmra.mxu0 %v1030
        %v1142 = vpop.f32.mrf.mxu0
        %v1143 = vadd.f32 0.0, %v1142
        %1144 = vmatmul.f32.gmra.mxu0 %v1033
        %v1145 = vpop.f32.mrf.mxu0
        %v1146 = vadd.f32 0.0, %v1145
        %1147 = vmatmul.f32.gmra.mxu0 %v1036
        %v1148 = vpop.f32.mrf.mxu0
        %v1149 = vadd.f32 0.0, %v1148
        %1150 = vmatmul.f32.gmra.mxu0 %v1039
        %v1151 = vpop.f32.mrf.mxu0
        %v1152 = vadd.f32 0.0, %v1151
        %1153 = vmatmul.f32.gmra.mxu0 %v1042
        %v1154 = vpop.f32.mrf.mxu0
        %v1155 = vadd.f32 0.0, %v1154
        %1156 = vmatmul.f32.gmra.mxu0 %v1045
        %v1157 = vpop.f32.mrf.mxu0
        %v1158 = vadd.f32 0.0, %v1157
        %1159 = vmatmul.f32.gmra.mxu0 %v1048
        %v1160 = vpop.f32.mrf.mxu0
        %v1161 = vadd.f32 0.0, %v1160
        %1162 = vmatmul.f32.gmra.mxu0 %v1051
        %v1163 = vpop.f32.mrf.mxu0
        %v1164 = vadd.f32 0.0, %v1163
        %1165 = vmatmul.f32.gmra.mxu0 %v1054
        %v1166 = vpop.f32.mrf.mxu0
        %v1167 = vadd.f32 0.0, %v1166
        %1168 = vmatmul.f32.gmra.mxu0 %v1057
        %v1169 = vpop.f32.mrf.mxu0
        %v1170 = vadd.f32 0.0, %v1169
        %1171 = vdwg.mxu0
        %v1172 = vadd.f32 %v832, %v1077
        %v1173 = vadd.f32 %v835, %v1080
        %v1174 = vadd.f32 %v838, %v1083
        %v1175 = vadd.f32 %v841, %v1086
        %v1176 = vadd.f32 %v844, %v1089
        %v1177 = vadd.f32 %v847, %v1092
        %v1178 = vadd.f32 %v850, %v1095
        %v1179 = vadd.f32 %v853, %v1098
        %v1180 = vadd.f32 %v856, %v1101
        %v1181 = vadd.f32 %v859, %v1104
        %v1182 = vadd.f32 %v862, %v1107
        %v1183 = vadd.f32 %v865, %v1110
        %v1184 = vadd.f32 %v868, %v1113
        %v1185 = vadd.f32 %v871, %v1116
        %v1186 = vadd.f32 %v874, %v1119
        %v1187 = vadd.f32 %v877, %v1122
        %v1188 = vadd.f32 %v880, %v1125
        %v1189 = vadd.f32 %v883, %v1128
        %v1190 = vadd.f32 %v886, %v1131
        %v1191 = vadd.f32 %v889, %v1134
        %v1192 = vadd.f32 %v892, %v1137
        %v1193 = vadd.f32 %v895, %v1140
        %v1194 = vadd.f32 %v898, %v1143
        %v1195 = vadd.f32 %v901, %v1146
        %v1196 = vadd.f32 %v904, %v1149
        %v1197 = vadd.f32 %v907, %v1152
        %v1198 = vadd.f32 %v910, %v1155
        %v1199 = vadd.f32 %v913, %v1158
        %v1200 = vadd.f32 %v916, %v1161
        %v1201 = vadd.f32 %v919, %v1164
        %v1202 = vadd.f32 %v922, %v1167
        %v1203 = vadd.f32 %v925, %v1170
        %v1204 = vld [vmem:[%s371] sm:$0xff]
        %v1205 = vld [vmem:[%s371 + $0x8] sm:$0xff]
        %v1206 = vld [vmem:[%s371 + $0x18] sm:$0xff]
        %v1207 = vld [vmem:[%s371 + $0x20] sm:$0xff]
        %v1208 = vld [vmem:[%s371 + $0x30] sm:$0xff]
        %v1209 = vld [vmem:[%s371 + $0x38] sm:$0xff]
        %v1210 = vld [vmem:[%s371 + $0x48] sm:$0xff]
        %v1211 = vld [vmem:[%s371 + $0x50] sm:$0xff]
        %v1212 = vld [vmem:[%s371 + $0x60] sm:$0xff]
        %v1213 = vld [vmem:[%s371 + $0x68] sm:$0xff]
        %v1214 = vld [vmem:[%s371 + $0x78] sm:$0xff]
        %v1215 = vld [vmem:[%s371 + $0x80] sm:$0xff]
        %v1216 = vld [vmem:[%s371 + $0x90] sm:$0xff]
        %v1217 = vld [vmem:[%s371 + $0x98] sm:$0xff]
        %v1218 = vld [vmem:[%s371 + $0xa8] sm:$0xff]
        %v1219 = vld [vmem:[%s371 + $0xb0] sm:$0xff]
        %v1220 = vld [vmem:[%s371 + $0xc0] sm:$0xff]
        %v1221 = vld [vmem:[%s371 + $0xc8] sm:$0xff]
        %v1222 = vld [vmem:[%s371 + $0xd8] sm:$0xff]
        %v1223 = vld [vmem:[%s371 + $0xe0] sm:$0xff]
        %v1224 = vld [vmem:[%s371 + $0xf0] sm:$0xff]
        %v1225 = vld [vmem:[%s371 + $0xf8] sm:$0xff]
        %v1226 = vld [vmem:[%s371 + $0x108] sm:$0xff]
        %v1227 = vld [vmem:[%s371 + $0x110] sm:$0xff]
        %v1228 = vld [vmem:[%s371 + $0x120] sm:$0xff]
        %v1229 = vld [vmem:[%s371 + $0x128] sm:$0xff]
        %v1230 = vld [vmem:[%s371 + $0x138] sm:$0xff]
        %v1231 = vld [vmem:[%s371 + $0x140] sm:$0xff]
        %v1232 = vld [vmem:[%s371 + $0x150] sm:$0xff]
        %v1233 = vld [vmem:[%s371 + $0x158] sm:$0xff]
        %v1234 = vld [vmem:[%s371 + $0x168] sm:$0xff]
        %v1235 = vld [vmem:[%s371 + $0x170] sm:$0xff]
        %v1236 = vld [vmem:[%s1 + $0x60] sm:$0xff]
        %v1237 = vld [vmem:[%s1 + $0x68] sm:$0xff]
        %v1238 = vld [vmem:[%s1 + $0x70] sm:$0xff]
        %v1239 = vld [vmem:[%s1 + $0x78] sm:$0xff]
        %v1241 = vsel %vm362, %v1204, 0
        %v1244 = vsel %vm362, %v1205, 0
        %v1247 = vsel %vm362, %v1206, 0
        %v1250 = vsel %vm362, %v1207, 0
        %v1253 = vsel %vm362, %v1208, 0
        %v1256 = vsel %vm362, %v1209, 0
        %v1259 = vsel %vm362, %v1210, 0
        %v1262 = vsel %vm362, %v1211, 0
        %v1265 = vsel %vm362, %v1212, 0
        %v1268 = vsel %vm362, %v1213, 0
        %v1271 = vsel %vm362, %v1214, 0
        %v1274 = vsel %vm362, %v1215, 0
        %v1277 = vsel %vm362, %v1216, 0
        %v1280 = vsel %vm362, %v1217, 0
        %v1283 = vsel %vm362, %v1218, 0
        %v1286 = vsel %vm362, %v1219, 0
        %v1289 = vsel %vm362, %v1220, 0
        %v1292 = vsel %vm362, %v1221, 0
        %v1295 = vsel %vm362, %v1222, 0
        %v1298 = vsel %vm362, %v1223, 0
        %v1301 = vsel %vm362, %v1224, 0
        %v1304 = vsel %vm362, %v1225, 0
        %v1307 = vsel %vm362, %v1226, 0
        %v1310 = vsel %vm362, %v1227, 0
        %v1313 = vsel %vm362, %v1228, 0
        %v1316 = vsel %vm362, %v1229, 0
        %v1319 = vsel %vm362, %v1230, 0
        %v1322 = vsel %vm362, %v1231, 0
        %v1325 = vsel %vm362, %v1232, 0
        %v1328 = vsel %vm362, %v1233, 0
        %v1331 = vsel %vm362, %v1234, 0
        %v1334 = vsel %vm362, %v1235, 0
        %1336 = vmatpush.msra.mxu0 0.0
        %1337 = vmatpush.msra.mxu0 0.0
        %1338 = vmatpush.msra.mxu0 0.0
        %1339 = vmatpush.msra.mxu0 0.0
        %1340 = vmatpush.msra.mxu0 0.0
        %1341 = vmatpush.msra.mxu0 0.0
        %1342 = vmatpush.msra.mxu0 0.0
        %1343 = vmatpush.msra.mxu0 0.0
        %1344 = vmatpush.msra.mxu0 0.0
        %1345 = vmatpush.msra.mxu0 0.0
        %1346 = vmatpush.msra.mxu0 0.0
        %1347 = vmatpush.msra.mxu0 0.0
        %1348 = vmatpush.msra.mxu0 %v1239
        %1349 = vmatpush.msra.mxu0 %v1238
        %1350 = vmatpush.msra.mxu0 %v1237
        %1351 = vmatpush.msra.mxu0 %v1236
        %1352 = vmatmul.f32.gmra.mxu0 %v1241
        %v1353 = vpop.f32.mrf.mxu0
        %v1354 = vadd.f32 0.0, %v1353
        %1355 = vmatmul.f32.gmra.mxu0 %v1244
        %v1356 = vpop.f32.mrf.mxu0
        %v1357 = vadd.f32 0.0, %v1356
        %1358 = vmatmul.f32.gmra.mxu0 %v1247
        %v1359 = vpop.f32.mrf.mxu0
        %v1360 = vadd.f32 0.0, %v1359
        %1361 = vmatmul.f32.gmra.mxu0 %v1250
        %v1362 = vpop.f32.mrf.mxu0
        %v1363 = vadd.f32 0.0, %v1362
        %1364 = vmatmul.f32.gmra.mxu0 %v1253
        %v1365 = vpop.f32.mrf.mxu0
        %v1366 = vadd.f32 0.0, %v1365
        %1367 = vmatmul.f32.gmra.mxu0 %v1256
        %v1368 = vpop.f32.mrf.mxu0
        %v1369 = vadd.f32 0.0, %v1368
        %1370 = vmatmul.f32.gmra.mxu0 %v1259
        %v1371 = vpop.f32.mrf.mxu0
        %v1372 = vadd.f32 0.0, %v1371
        %1373 = vmatmul.f32.gmra.mxu0 %v1262
        %v1374 = vpop.f32.mrf.mxu0
        %v1375 = vadd.f32 0.0, %v1374
        %1376 = vmatmul.f32.gmra.mxu0 %v1265
        %v1377 = vpop.f32.mrf.mxu0
        %v1378 = vadd.f32 0.0, %v1377
        %1379 = vmatmul.f32.gmra.mxu0 %v1268
        %v1380 = vpop.f32.mrf.mxu0
        %v1381 = vadd.f32 0.0, %v1380
        %1382 = vmatmul.f32.gmra.mxu0 %v1271
        %v1383 = vpop.f32.mrf.mxu0
        %v1384 = vadd.f32 0.0, %v1383
        %1385 = vmatmul.f32.gmra.mxu0 %v1274
        %v1386 = vpop.f32.mrf.mxu0
        %v1387 = vadd.f32 0.0, %v1386
        %1388 = vmatmul.f32.gmra.mxu0 %v1277
        %v1389 = vpop.f32.mrf.mxu0
        %v1390 = vadd.f32 0.0, %v1389
        %1391 = vmatmul.f32.gmra.mxu0 %v1280
        %v1392 = vpop.f32.mrf.mxu0
        %v1393 = vadd.f32 0.0, %v1392
        %1394 = vmatmul.f32.gmra.mxu0 %v1283
        %v1395 = vpop.f32.mrf.mxu0
        %v1396 = vadd.f32 0.0, %v1395
        %1397 = vmatmul.f32.gmra.mxu0 %v1286
        %v1398 = vpop.f32.mrf.mxu0
        %v1399 = vadd.f32 0.0, %v1398
        %1400 = vmatmul.f32.gmra.mxu0 %v1289
        %v1401 = vpop.f32.mrf.mxu0
        %v1402 = vadd.f32 0.0, %v1401
        %1403 = vmatmul.f32.gmra.mxu0 %v1292
        %v1404 = vpop.f32.mrf.mxu0
        %v1405 = vadd.f32 0.0, %v1404
        %1406 = vmatmul.f32.gmra.mxu0 %v1295
        %v1407 = vpop.f32.mrf.mxu0
        %v1408 = vadd.f32 0.0, %v1407
        %1409 = vmatmul.f32.gmra.mxu0 %v1298
        %v1410 = vpop.f32.mrf.mxu0
        %v1411 = vadd.f32 0.0, %v1410
        %1412 = vmatmul.f32.gmra.mxu0 %v1301
        %v1413 = vpop.f32.mrf.mxu0
        %v1414 = vadd.f32 0.0, %v1413
        %1415 = vmatmul.f32.gmra.mxu0 %v1304
        %v1416 = vpop.f32.mrf.mxu0
        %v1417 = vadd.f32 0.0, %v1416
        %1418 = vmatmul.f32.gmra.mxu0 %v1307
        %v1419 = vpop.f32.mrf.mxu0
        %v1420 = vadd.f32 0.0, %v1419
        %1421 = vmatmul.f32.gmra.mxu0 %v1310
        %v1422 = vpop.f32.mrf.mxu0
        %v1423 = vadd.f32 0.0, %v1422
        %1424 = vmatmul.f32.gmra.mxu0 %v1313
        %v1425 = vpop.f32.mrf.mxu0
        %v1426 = vadd.f32 0.0, %v1425
        %1427 = vmatmul.f32.gmra.mxu0 %v1316
        %v1428 = vpop.f32.mrf.mxu0
        %v1429 = vadd.f32 0.0, %v1428
        %1430 = vmatmul.f32.gmra.mxu0 %v1319
        %v1431 = vpop.f32.mrf.mxu0
        %v1432 = vadd.f32 0.0, %v1431
        %1433 = vmatmul.f32.gmra.mxu0 %v1322
        %v1434 = vpop.f32.mrf.mxu0
        %v1435 = vadd.f32 0.0, %v1434
        %1436 = vmatmul.f32.gmra.mxu0 %v1325
        %v1437 = vpop.f32.mrf.mxu0
        %v1438 = vadd.f32 0.0, %v1437
        %1439 = vmatmul.f32.gmra.mxu0 %v1328
        %v1440 = vpop.f32.mrf.mxu0
        %v1441 = vadd.f32 0.0, %v1440
        %1442 = vmatmul.f32.gmra.mxu0 %v1331
        %v1443 = vpop.f32.mrf.mxu0
        %v1444 = vadd.f32 0.0, %v1443
        %1445 = vmatmul.f32.gmra.mxu0 %v1334
        %v1446 = vpop.f32.mrf.mxu0
        %v1447 = vadd.f32 0.0, %v1446
        %1448 = vdwg.mxu0
        %v1449 = vadd.f32 %v1172, %v1354
        %v1450 = vadd.f32 %v1173, %v1357
        %v1451 = vadd.f32 %v1174, %v1360
        %v1452 = vadd.f32 %v1175, %v1363
        %v1453 = vadd.f32 %v1176, %v1366
        %v1454 = vadd.f32 %v1177, %v1369
        %v1455 = vadd.f32 %v1178, %v1372
        %v1456 = vadd.f32 %v1179, %v1375
        %v1457 = vadd.f32 %v1180, %v1378
        %v1458 = vadd.f32 %v1181, %v1381
        %v1459 = vadd.f32 %v1182, %v1384
        %v1460 = vadd.f32 %v1183, %v1387
        %v1461 = vadd.f32 %v1184, %v1390
        %v1462 = vadd.f32 %v1185, %v1393
        %v1463 = vadd.f32 %v1186, %v1396
        %v1464 = vadd.f32 %v1187, %v1399
        %v1465 = vadd.f32 %v1188, %v1402
        %v1466 = vadd.f32 %v1189, %v1405
        %v1467 = vadd.f32 %v1190, %v1408
        %v1468 = vadd.f32 %v1191, %v1411
        %v1469 = vadd.f32 %v1192, %v1414
        %v1470 = vadd.f32 %v1193, %v1417
        %v1471 = vadd.f32 %v1194, %v1420
        %v1472 = vadd.f32 %v1195, %v1423
        %v1473 = vadd.f32 %v1196, %v1426
        %v1474 = vadd.f32 %v1197, %v1429
        %v1475 = vadd.f32 %v1198, %v1432
        %v1476 = vadd.f32 %v1199, %v1435
        %v1477 = vadd.f32 %v1200, %v1438
        %v1478 = vadd.f32 %v1201, %v1441
        %v1479 = vadd.f32 %v1202, %v1444
        %v1480 = vadd.f32 %v1203, %v1447
        %v1481 = vld [vmem:[%s371 + $0x1] sm:$0xff]
        %v1482 = vld [vmem:[%s371 + $0x9] sm:$0xff]
        %v1483 = vld [vmem:[%s371 + $0x19] sm:$0xff]
        %v1484 = vld [vmem:[%s371 + $0x21] sm:$0xff]
        %v1485 = vld [vmem:[%s371 + $0x31] sm:$0xff]
        %v1486 = vld [vmem:[%s371 + $0x39] sm:$0xff]
        %v1487 = vld [vmem:[%s371 + $0x49] sm:$0xff]
        %v1488 = vld [vmem:[%s371 + $0x51] sm:$0xff]
        %v1489 = vld [vmem:[%s371 + $0x61] sm:$0xff]
        %v1490 = vld [vmem:[%s371 + $0x69] sm:$0xff]
        %v1491 = vld [vmem:[%s371 + $0x79] sm:$0xff]
        %v1492 = vld [vmem:[%s371 + $0x81] sm:$0xff]
        %v1493 = vld [vmem:[%s371 + $0x91] sm:$0xff]
        %v1494 = vld [vmem:[%s371 + $0x99] sm:$0xff]
        %v1495 = vld [vmem:[%s371 + $0xa9] sm:$0xff]
        %v1496 = vld [vmem:[%s371 + $0xb1] sm:$0xff]
        %v1497 = vld [vmem:[%s371 + $0xc1] sm:$0xff]
        %v1498 = vld [vmem:[%s371 + $0xc9] sm:$0xff]
        %v1499 = vld [vmem:[%s371 + $0xd9] sm:$0xff]
        %v1500 = vld [vmem:[%s371 + $0xe1] sm:$0xff]
        %v1501 = vld [vmem:[%s371 + $0xf1] sm:$0xff]
        %v1502 = vld [vmem:[%s371 + $0xf9] sm:$0xff]
        %v1503 = vld [vmem:[%s371 + $0x109] sm:$0xff]
        %v1504 = vld [vmem:[%s371 + $0x111] sm:$0xff]
        %v1505 = vld [vmem:[%s371 + $0x121] sm:$0xff]
        %v1506 = vld [vmem:[%s371 + $0x129] sm:$0xff]
        %v1507 = vld [vmem:[%s371 + $0x139] sm:$0xff]
        %v1508 = vld [vmem:[%s371 + $0x141] sm:$0xff]
        %v1509 = vld [vmem:[%s371 + $0x151] sm:$0xff]
        %v1510 = vld [vmem:[%s371 + $0x159] sm:$0xff]
        %v1511 = vld [vmem:[%s371 + $0x169] sm:$0xff]
        %v1512 = vld [vmem:[%s371 + $0x171] sm:$0xff]
        %v1513 = vld [vmem:[%s1 + $0x80] sm:$0xff]
        %v1514 = vld [vmem:[%s1 + $0x88] sm:$0xff]
        %v1515 = vld [vmem:[%s1 + $0x90] sm:$0xff]
        %v1516 = vld [vmem:[%s1 + $0x98] sm:$0xff]
        %v1518 = vsel %vm362, %v1481, 0
        %v1521 = vsel %vm362, %v1482, 0
        %v1524 = vsel %vm362, %v1483, 0
        %v1527 = vsel %vm362, %v1484, 0
        %v1530 = vsel %vm362, %v1485, 0
        %v1533 = vsel %vm362, %v1486, 0
        %v1536 = vsel %vm362, %v1487, 0
        %v1539 = vsel %vm362, %v1488, 0
        %v1542 = vsel %vm362, %v1489, 0
        %v1545 = vsel %vm362, %v1490, 0
        %v1548 = vsel %vm362, %v1491, 0
        %v1551 = vsel %vm362, %v1492, 0
        %v1554 = vsel %vm362, %v1493, 0
        %v1557 = vsel %vm362, %v1494, 0
        %v1560 = vsel %vm362, %v1495, 0
        %v1563 = vsel %vm362, %v1496, 0
        %v1566 = vsel %vm362, %v1497, 0
        %v1569 = vsel %vm362, %v1498, 0
        %v1572 = vsel %vm362, %v1499, 0
        %v1575 = vsel %vm362, %v1500, 0
        %v1578 = vsel %vm362, %v1501, 0
        %v1581 = vsel %vm362, %v1502, 0
        %v1584 = vsel %vm362, %v1503, 0
        %v1587 = vsel %vm362, %v1504, 0
        %v1590 = vsel %vm362, %v1505, 0
        %v1593 = vsel %vm362, %v1506, 0
        %v1596 = vsel %vm362, %v1507, 0
        %v1599 = vsel %vm362, %v1508, 0
        %v1602 = vsel %vm362, %v1509, 0
        %v1605 = vsel %vm362, %v1510, 0
        %v1608 = vsel %vm362, %v1511, 0
        %v1611 = vsel %vm362, %v1512, 0
        %1613 = vmatpush.msra.mxu0 0.0
        %1614 = vmatpush.msra.mxu0 0.0
        %1615 = vmatpush.msra.mxu0 0.0
        %1616 = vmatpush.msra.mxu0 0.0
        %1617 = vmatpush.msra.mxu0 0.0
        %1618 = vmatpush.msra.mxu0 0.0
        %1619 = vmatpush.msra.mxu0 0.0
        %1620 = vmatpush.msra.mxu0 0.0
        %1621 = vmatpush.msra.mxu0 0.0
        %1622 = vmatpush.msra.mxu0 0.0
        %1623 = vmatpush.msra.mxu0 0.0
        %1624 = vmatpush.msra.mxu0 0.0
        %1625 = vmatpush.msra.mxu0 %v1516
        %1626 = vmatpush.msra.mxu0 %v1515
        %1627 = vmatpush.msra.mxu0 %v1514
        %1628 = vmatpush.msra.mxu0 %v1513
        %1629 = vmatmul.f32.gmra.mxu0 %v1518
        %v1630 = vpop.f32.mrf.mxu0
        %v1631 = vadd.f32 0.0, %v1630
        %1632 = vmatmul.f32.gmra.mxu0 %v1521
        %v1633 = vpop.f32.mrf.mxu0
        %v1634 = vadd.f32 0.0, %v1633
        %1635 = vmatmul.f32.gmra.mxu0 %v1524
        %v1636 = vpop.f32.mrf.mxu0
        %v1637 = vadd.f32 0.0, %v1636
        %1638 = vmatmul.f32.gmra.mxu0 %v1527
        %v1639 = vpop.f32.mrf.mxu0
        %v1640 = vadd.f32 0.0, %v1639
        %1641 = vmatmul.f32.gmra.mxu0 %v1530
        %v1642 = vpop.f32.mrf.mxu0
        %v1643 = vadd.f32 0.0, %v1642
        %1644 = vmatmul.f32.gmra.mxu0 %v1533
        %v1645 = vpop.f32.mrf.mxu0
        %v1646 = vadd.f32 0.0, %v1645
        %1647 = vmatmul.f32.gmra.mxu0 %v1536
        %v1648 = vpop.f32.mrf.mxu0
        %v1649 = vadd.f32 0.0, %v1648
        %1650 = vmatmul.f32.gmra.mxu0 %v1539
        %v1651 = vpop.f32.mrf.mxu0
        %v1652 = vadd.f32 0.0, %v1651
        %1653 = vmatmul.f32.gmra.mxu0 %v1542
        %v1654 = vpop.f32.mrf.mxu0
        %v1655 = vadd.f32 0.0, %v1654
        %1656 = vmatmul.f32.gmra.mxu0 %v1545
        %v1657 = vpop.f32.mrf.mxu0
        %v1658 = vadd.f32 0.0, %v1657
        %1659 = vmatmul.f32.gmra.mxu0 %v1548
        %v1660 = vpop.f32.mrf.mxu0
        %v1661 = vadd.f32 0.0, %v1660
        %1662 = vmatmul.f32.gmra.mxu0 %v1551
        %v1663 = vpop.f32.mrf.mxu0
        %v1664 = vadd.f32 0.0, %v1663
        %1665 = vmatmul.f32.gmra.mxu0 %v1554
        %v1666 = vpop.f32.mrf.mxu0
        %v1667 = vadd.f32 0.0, %v1666
        %1668 = vmatmul.f32.gmra.mxu0 %v1557
        %v1669 = vpop.f32.mrf.mxu0
        %v1670 = vadd.f32 0.0, %v1669
        %1671 = vmatmul.f32.gmra.mxu0 %v1560
        %v1672 = vpop.f32.mrf.mxu0
        %v1673 = vadd.f32 0.0, %v1672
        %1674 = vmatmul.f32.gmra.mxu0 %v1563
        %v1675 = vpop.f32.mrf.mxu0
        %v1676 = vadd.f32 0.0, %v1675
        %1677 = vmatmul.f32.gmra.mxu0 %v1566
        %v1678 = vpop.f32.mrf.mxu0
        %v1679 = vadd.f32 0.0, %v1678
        %1680 = vmatmul.f32.gmra.mxu0 %v1569
        %v1681 = vpop.f32.mrf.mxu0
        %v1682 = vadd.f32 0.0, %v1681
        %1683 = vmatmul.f32.gmra.mxu0 %v1572
        %v1684 = vpop.f32.mrf.mxu0
        %v1685 = vadd.f32 0.0, %v1684
        %1686 = vmatmul.f32.gmra.mxu0 %v1575
        %v1687 = vpop.f32.mrf.mxu0
        %v1688 = vadd.f32 0.0, %v1687
        %1689 = vmatmul.f32.gmra.mxu0 %v1578
        %v1690 = vpop.f32.mrf.mxu0
        %v1691 = vadd.f32 0.0, %v1690
        %1692 = vmatmul.f32.gmra.mxu0 %v1581
        %v1693 = vpop.f32.mrf.mxu0
        %v1694 = vadd.f32 0.0, %v1693
        %1695 = vmatmul.f32.gmra.mxu0 %v1584
        %v1696 = vpop.f32.mrf.mxu0
        %v1697 = vadd.f32 0.0, %v1696
        %1698 = vmatmul.f32.gmra.mxu0 %v1587
        %v1699 = vpop.f32.mrf.mxu0
        %v1700 = vadd.f32 0.0, %v1699
        %1701 = vmatmul.f32.gmra.mxu0 %v1590
        %v1702 = vpop.f32.mrf.mxu0
        %v1703 = vadd.f32 0.0, %v1702
        %1704 = vmatmul.f32.gmra.mxu0 %v1593
        %v1705 = vpop.f32.mrf.mxu0
        %v1706 = vadd.f32 0.0, %v1705
        %1707 = vmatmul.f32.gmra.mxu0 %v1596
        %v1708 = vpop.f32.mrf.mxu0
        %v1709 = vadd.f32 0.0, %v1708
        %1710 = vmatmul.f32.gmra.mxu0 %v1599
        %v1711 = vpop.f32.mrf.mxu0
        %v1712 = vadd.f32 0.0, %v1711
        %1713 = vmatmul.f32.gmra.mxu0 %v1602
        %v1714 = vpop.f32.mrf.mxu0
        %v1715 = vadd.f32 0.0, %v1714
        %1716 = vmatmul.f32.gmra.mxu0 %v1605
        %v1717 = vpop.f32.mrf.mxu0
        %v1718 = vadd.f32 0.0, %v1717
        %1719 = vmatmul.f32.gmra.mxu0 %v1608
        %v1720 = vpop.f32.mrf.mxu0
        %v1721 = vadd.f32 0.0, %v1720
        %1722 = vmatmul.f32.gmra.mxu0 %v1611
        %v1723 = vpop.f32.mrf.mxu0
        %v1724 = vadd.f32 0.0, %v1723
        %1725 = vdwg.mxu0
        %v1726 = vadd.f32 %v1449, %v1631
        %v1727 = vadd.f32 %v1450, %v1634
        %v1728 = vadd.f32 %v1451, %v1637
        %v1729 = vadd.f32 %v1452, %v1640
        %v1730 = vadd.f32 %v1453, %v1643
        %v1731 = vadd.f32 %v1454, %v1646
        %v1732 = vadd.f32 %v1455, %v1649
        %v1733 = vadd.f32 %v1456, %v1652
        %v1734 = vadd.f32 %v1457, %v1655
        %v1735 = vadd.f32 %v1458, %v1658
        %v1736 = vadd.f32 %v1459, %v1661
        %v1737 = vadd.f32 %v1460, %v1664
        %v1738 = vadd.f32 %v1461, %v1667
        %v1739 = vadd.f32 %v1462, %v1670
        %v1740 = vadd.f32 %v1463, %v1673
        %v1741 = vadd.f32 %v1464, %v1676
        %v1742 = vadd.f32 %v1465, %v1679
        %v1743 = vadd.f32 %v1466, %v1682
        %v1744 = vadd.f32 %v1467, %v1685
        %v1745 = vadd.f32 %v1468, %v1688
        %v1746 = vadd.f32 %v1469, %v1691
        %v1747 = vadd.f32 %v1470, %v1694
        %v1748 = vadd.f32 %v1471, %v1697
        %v1749 = vadd.f32 %v1472, %v1700
        %v1750 = vadd.f32 %v1473, %v1703
        %v1751 = vadd.f32 %v1474, %v1706
        %v1752 = vadd.f32 %v1475, %v1709
        %v1753 = vadd.f32 %v1476, %v1712
        %v1754 = vadd.f32 %v1477, %v1715
        %v1755 = vadd.f32 %v1478, %v1718
        %v1756 = vadd.f32 %v1479, %v1721
        %v1757 = vadd.f32 %v1480, %v1724
        %v1758 = vld [vmem:[%s371 + $0x2] sm:$0xff]
        %v1759 = vld [vmem:[%s371 + $0xa] sm:$0xff]
        %v1760 = vld [vmem:[%s371 + $0x1a] sm:$0xff]
        %v1761 = vld [vmem:[%s371 + $0x22] sm:$0xff]
        %v1762 = vld [vmem:[%s371 + $0x32] sm:$0xff]
        %v1763 = vld [vmem:[%s371 + $0x3a] sm:$0xff]
        %v1764 = vld [vmem:[%s371 + $0x4a] sm:$0xff]
        %v1765 = vld [vmem:[%s371 + $0x52] sm:$0xff]
        %v1766 = vld [vmem:[%s371 + $0x62] sm:$0xff]
        %v1767 = vld [vmem:[%s371 + $0x6a] sm:$0xff]
        %v1768 = vld [vmem:[%s371 + $0x7a] sm:$0xff]
        %v1769 = vld [vmem:[%s371 + $0x82] sm:$0xff]
        %v1770 = vld [vmem:[%s371 + $0x92] sm:$0xff]
        %v1771 = vld [vmem:[%s371 + $0x9a] sm:$0xff]
        %v1772 = vld [vmem:[%s371 + $0xaa] sm:$0xff]
        %v1773 = vld [vmem:[%s371 + $0xb2] sm:$0xff]
        %v1774 = vld [vmem:[%s371 + $0xc2] sm:$0xff]
        %v1775 = vld [vmem:[%s371 + $0xca] sm:$0xff]
        %v1776 = vld [vmem:[%s371 + $0xda] sm:$0xff]
        %v1777 = vld [vmem:[%s371 + $0xe2] sm:$0xff]
        %v1778 = vld [vmem:[%s371 + $0xf2] sm:$0xff]
        %v1779 = vld [vmem:[%s371 + $0xfa] sm:$0xff]
        %v1780 = vld [vmem:[%s371 + $0x10a] sm:$0xff]
        %v1781 = vld [vmem:[%s371 + $0x112] sm:$0xff]
        %v1782 = vld [vmem:[%s371 + $0x122] sm:$0xff]
        %v1783 = vld [vmem:[%s371 + $0x12a] sm:$0xff]
        %v1784 = vld [vmem:[%s371 + $0x13a] sm:$0xff]
        %v1785 = vld [vmem:[%s371 + $0x142] sm:$0xff]
        %v1786 = vld [vmem:[%s371 + $0x152] sm:$0xff]
        %v1787 = vld [vmem:[%s371 + $0x15a] sm:$0xff]
        %v1788 = vld [vmem:[%s371 + $0x16a] sm:$0xff]
        %v1789 = vld [vmem:[%s371 + $0x172] sm:$0xff]
        %v1790 = vld [vmem:[%s1 + $0xa0] sm:$0xff]
        %v1791 = vld [vmem:[%s1 + $0xa8] sm:$0xff]
        %v1792 = vld [vmem:[%s1 + $0xb0] sm:$0xff]
        %v1793 = vld [vmem:[%s1 + $0xb8] sm:$0xff]
        %v1795 = vsel %vm362, %v1758, 0
        %v1798 = vsel %vm362, %v1759, 0
        %v1801 = vsel %vm362, %v1760, 0
        %v1804 = vsel %vm362, %v1761, 0
        %v1807 = vsel %vm362, %v1762, 0
        %v1810 = vsel %vm362, %v1763, 0
        %v1813 = vsel %vm362, %v1764, 0
        %v1816 = vsel %vm362, %v1765, 0
        %v1819 = vsel %vm362, %v1766, 0
        %v1822 = vsel %vm362, %v1767, 0
        %v1825 = vsel %vm362, %v1768, 0
        %v1828 = vsel %vm362, %v1769, 0
        %v1831 = vsel %vm362, %v1770, 0
        %v1834 = vsel %vm362, %v1771, 0
        %v1837 = vsel %vm362, %v1772, 0
        %v1840 = vsel %vm362, %v1773, 0
        %v1843 = vsel %vm362, %v1774, 0
        %v1846 = vsel %vm362, %v1775, 0
        %v1849 = vsel %vm362, %v1776, 0
        %v1852 = vsel %vm362, %v1777, 0
        %v1855 = vsel %vm362, %v1778, 0
        %v1858 = vsel %vm362, %v1779, 0
        %v1861 = vsel %vm362, %v1780, 0
        %v1864 = vsel %vm362, %v1781, 0
        %v1867 = vsel %vm362, %v1782, 0
        %v1870 = vsel %vm362, %v1783, 0
        %v1873 = vsel %vm362, %v1784, 0
        %v1876 = vsel %vm362, %v1785, 0
        %v1879 = vsel %vm362, %v1786, 0
        %v1882 = vsel %vm362, %v1787, 0
        %v1885 = vsel %vm362, %v1788, 0
        %v1888 = vsel %vm362, %v1789, 0
        %1890 = vmatpush.msra.mxu0 0.0
        %1891 = vmatpush.msra.mxu0 0.0
        %1892 = vmatpush.msra.mxu0 0.0
        %1893 = vmatpush.msra.mxu0 0.0
        %1894 = vmatpush.msra.mxu0 0.0
        %1895 = vmatpush.msra.mxu0 0.0
        %1896 = vmatpush.msra.mxu0 0.0
        %1897 = vmatpush.msra.mxu0 0.0
        %1898 = vmatpush.msra.mxu0 0.0
        %1899 = vmatpush.msra.mxu0 0.0
        %1900 = vmatpush.msra.mxu0 0.0
        %1901 = vmatpush.msra.mxu0 0.0
        %1902 = vmatpush.msra.mxu0 %v1793
        %1903 = vmatpush.msra.mxu0 %v1792
        %1904 = vmatpush.msra.mxu0 %v1791
        %1905 = vmatpush.msra.mxu0 %v1790
        %1906 = vmatmul.f32.gmra.mxu0 %v1795
        %v1907 = vpop.f32.mrf.mxu0
        %v1908 = vadd.f32 0.0, %v1907
        %1909 = vmatmul.f32.gmra.mxu0 %v1798
        %v1910 = vpop.f32.mrf.mxu0
        %v1911 = vadd.f32 0.0, %v1910
        %1912 = vmatmul.f32.gmra.mxu0 %v1801
        %v1913 = vpop.f32.mrf.mxu0
        %v1914 = vadd.f32 0.0, %v1913
        %1915 = vmatmul.f32.gmra.mxu0 %v1804
        %v1916 = vpop.f32.mrf.mxu0
        %v1917 = vadd.f32 0.0, %v1916
        %1918 = vmatmul.f32.gmra.mxu0 %v1807
        %v1919 = vpop.f32.mrf.mxu0
        %v1920 = vadd.f32 0.0, %v1919
        %1921 = vmatmul.f32.gmra.mxu0 %v1810
        %v1922 = vpop.f32.mrf.mxu0
        %v1923 = vadd.f32 0.0, %v1922
        %1924 = vmatmul.f32.gmra.mxu0 %v1813
        %v1925 = vpop.f32.mrf.mxu0
        %v1926 = vadd.f32 0.0, %v1925
        %1927 = vmatmul.f32.gmra.mxu0 %v1816
        %v1928 = vpop.f32.mrf.mxu0
        %v1929 = vadd.f32 0.0, %v1928
        %1930 = vmatmul.f32.gmra.mxu0 %v1819
        %v1931 = vpop.f32.mrf.mxu0
        %v1932 = vadd.f32 0.0, %v1931
        %1933 = vmatmul.f32.gmra.mxu0 %v1822
        %v1934 = vpop.f32.mrf.mxu0
        %v1935 = vadd.f32 0.0, %v1934
        %1936 = vmatmul.f32.gmra.mxu0 %v1825
        %v1937 = vpop.f32.mrf.mxu0
        %v1938 = vadd.f32 0.0, %v1937
        %1939 = vmatmul.f32.gmra.mxu0 %v1828
        %v1940 = vpop.f32.mrf.mxu0
        %v1941 = vadd.f32 0.0, %v1940
        %1942 = vmatmul.f32.gmra.mxu0 %v1831
        %v1943 = vpop.f32.mrf.mxu0
        %v1944 = vadd.f32 0.0, %v1943
        %1945 = vmatmul.f32.gmra.mxu0 %v1834
        %v1946 = vpop.f32.mrf.mxu0
        %v1947 = vadd.f32 0.0, %v1946
        %1948 = vmatmul.f32.gmra.mxu0 %v1837
        %v1949 = vpop.f32.mrf.mxu0
        %v1950 = vadd.f32 0.0, %v1949
        %1951 = vmatmul.f32.gmra.mxu0 %v1840
        %v1952 = vpop.f32.mrf.mxu0
        %v1953 = vadd.f32 0.0, %v1952
        %1954 = vmatmul.f32.gmra.mxu0 %v1843
        %v1955 = vpop.f32.mrf.mxu0
        %v1956 = vadd.f32 0.0, %v1955
        %1957 = vmatmul.f32.gmra.mxu0 %v1846
        %v1958 = vpop.f32.mrf.mxu0
        %v1959 = vadd.f32 0.0, %v1958
        %1960 = vmatmul.f32.gmra.mxu0 %v1849
        %v1961 = vpop.f32.mrf.mxu0
        %v1962 = vadd.f32 0.0, %v1961
        %1963 = vmatmul.f32.gmra.mxu0 %v1852
        %v1964 = vpop.f32.mrf.mxu0
        %v1965 = vadd.f32 0.0, %v1964
        %1966 = vmatmul.f32.gmra.mxu0 %v1855
        %v1967 = vpop.f32.mrf.mxu0
        %v1968 = vadd.f32 0.0, %v1967
        %1969 = vmatmul.f32.gmra.mxu0 %v1858
        %v1970 = vpop.f32.mrf.mxu0
        %v1971 = vadd.f32 0.0, %v1970
        %1972 = vmatmul.f32.gmra.mxu0 %v1861
        %v1973 = vpop.f32.mrf.mxu0
        %v1974 = vadd.f32 0.0, %v1973
        %1975 = vmatmul.f32.gmra.mxu0 %v1864
        %v1976 = vpop.f32.mrf.mxu0
        %v1977 = vadd.f32 0.0, %v1976
        %1978 = vmatmul.f32.gmra.mxu0 %v1867
        %v1979 = vpop.f32.mrf.mxu0
        %v1980 = vadd.f32 0.0, %v1979
        %1981 = vmatmul.f32.gmra.mxu0 %v1870
        %v1982 = vpop.f32.mrf.mxu0
        %v1983 = vadd.f32 0.0, %v1982
        %1984 = vmatmul.f32.gmra.mxu0 %v1873
        %v1985 = vpop.f32.mrf.mxu0
        %v1986 = vadd.f32 0.0, %v1985
        %1987 = vmatmul.f32.gmra.mxu0 %v1876
        %v1988 = vpop.f32.mrf.mxu0
        %v1989 = vadd.f32 0.0, %v1988
        %1990 = vmatmul.f32.gmra.mxu0 %v1879
        %v1991 = vpop.f32.mrf.mxu0
        %v1992 = vadd.f32 0.0, %v1991
        %1993 = vmatmul.f32.gmra.mxu0 %v1882
        %v1994 = vpop.f32.mrf.mxu0
        %v1995 = vadd.f32 0.0, %v1994
        %1996 = vmatmul.f32.gmra.mxu0 %v1885
        %v1997 = vpop.f32.mrf.mxu0
        %v1998 = vadd.f32 0.0, %v1997
        %1999 = vmatmul.f32.gmra.mxu0 %v1888
        %v2000 = vpop.f32.mrf.mxu0
        %v2001 = vadd.f32 0.0, %v2000
        %2002 = vdwg.mxu0
        %v2003 = vadd.f32 %v1726, %v1908
        %v2004 = vadd.f32 %v1727, %v1911
        %v2005 = vadd.f32 %v1728, %v1914
        %v2006 = vadd.f32 %v1729, %v1917
        %v2007 = vadd.f32 %v1730, %v1920
        %v2008 = vadd.f32 %v1731, %v1923
        %v2009 = vadd.f32 %v1732, %v1926
        %v2010 = vadd.f32 %v1733, %v1929
        %v2011 = vadd.f32 %v1734, %v1932
        %v2012 = vadd.f32 %v1735, %v1935
        %v2013 = vadd.f32 %v1736, %v1938
        %v2014 = vadd.f32 %v1737, %v1941
        %v2015 = vadd.f32 %v1738, %v1944
        %v2016 = vadd.f32 %v1739, %v1947
        %v2017 = vadd.f32 %v1740, %v1950
        %v2018 = vadd.f32 %v1741, %v1953
        %v2019 = vadd.f32 %v1742, %v1956
        %v2020 = vadd.f32 %v1743, %v1959
        %v2021 = vadd.f32 %v1744, %v1962
        %v2022 = vadd.f32 %v1745, %v1965
        %v2023 = vadd.f32 %v1746, %v1968
        %v2024 = vadd.f32 %v1747, %v1971
        %v2025 = vadd.f32 %v1748, %v1974
        %v2026 = vadd.f32 %v1749, %v1977
        %v2027 = vadd.f32 %v1750, %v1980
        %v2028 = vadd.f32 %v1751, %v1983
        %v2029 = vadd.f32 %v1752, %v1986
        %v2030 = vadd.f32 %v1753, %v1989
        %v2031 = vadd.f32 %v1754, %v1992
        %v2032 = vadd.f32 %v1755, %v1995
        %v2033 = vadd.f32 %v1756, %v1998
        %v2034 = vadd.f32 %v1757, %v2001
        %s2035 = scalar_lea.vmem [#allocation2], 48
        %v2036 = vld [vmem:[%s2035] sm:$0xff]
        %v2037 = vld [vmem:[%s2035 + $0x8] sm:$0xff]
        %v2038 = vld [vmem:[%s2035 + $0x18] sm:$0xff]
        %v2039 = vld [vmem:[%s2035 + $0x20] sm:$0xff]
        %v2040 = vld [vmem:[%s2035 + $0x30] sm:$0xff]
        %v2041 = vld [vmem:[%s2035 + $0x38] sm:$0xff]
        %v2042 = vld [vmem:[%s2035 + $0x48] sm:$0xff]
        %v2043 = vld [vmem:[%s2035 + $0x50] sm:$0xff]
        %v2044 = vld [vmem:[%s2035 + $0x60] sm:$0xff]
        %v2045 = vld [vmem:[%s2035 + $0x68] sm:$0xff]
        %v2046 = vld [vmem:[%s2035 + $0x78] sm:$0xff]
        %v2047 = vld [vmem:[%s2035 + $0x80] sm:$0xff]
        %v2048 = vld [vmem:[%s2035 + $0x90] sm:$0xff]
        %v2049 = vld [vmem:[%s2035 + $0x98] sm:$0xff]
        %v2050 = vld [vmem:[%s2035 + $0xa8] sm:$0xff]
        %v2051 = vld [vmem:[%s2035 + $0xb0] sm:$0xff]
        %v2052 = vld [vmem:[%s2035 + $0xc0] sm:$0xff]
        %v2053 = vld [vmem:[%s2035 + $0xc8] sm:$0xff]
        %v2054 = vld [vmem:[%s2035 + $0xd8] sm:$0xff]
        %v2055 = vld [vmem:[%s2035 + $0xe0] sm:$0xff]
        %v2056 = vld [vmem:[%s2035 + $0xf0] sm:$0xff]
        %v2057 = vld [vmem:[%s2035 + $0xf8] sm:$0xff]
        %v2058 = vld [vmem:[%s2035 + $0x108] sm:$0xff]
        %v2059 = vld [vmem:[%s2035 + $0x110] sm:$0xff]
        %v2060 = vld [vmem:[%s2035 + $0x120] sm:$0xff]
        %v2061 = vld [vmem:[%s2035 + $0x128] sm:$0xff]
        %v2062 = vld [vmem:[%s2035 + $0x138] sm:$0xff]
        %v2063 = vld [vmem:[%s2035 + $0x140] sm:$0xff]
        %v2064 = vld [vmem:[%s2035 + $0x150] sm:$0xff]
        %v2065 = vld [vmem:[%s2035 + $0x158] sm:$0xff]
        %v2066 = vld [vmem:[%s2035 + $0x168] sm:$0xff]
        %v2067 = vld [vmem:[%s2035 + $0x170] sm:$0xff]
        %v2068 = vld [vmem:[%s1 + $0xc0] sm:$0xff]
        %v2069 = vld [vmem:[%s1 + $0xc8] sm:$0xff]
        %v2070 = vld [vmem:[%s1 + $0xd0] sm:$0xff]
        %v2071 = vld [vmem:[%s1 + $0xd8] sm:$0xff]
        %v2073 = vsel %vm362, %v2036, 0
        %v2076 = vsel %vm362, %v2037, 0
        %v2079 = vsel %vm362, %v2038, 0
        %v2082 = vsel %vm362, %v2039, 0
        %v2085 = vsel %vm362, %v2040, 0
        %v2088 = vsel %vm362, %v2041, 0
        %v2091 = vsel %vm362, %v2042, 0
        %v2094 = vsel %vm362, %v2043, 0
        %v2097 = vsel %vm362, %v2044, 0
        %v2100 = vsel %vm362, %v2045, 0
        %v2103 = vsel %vm362, %v2046, 0
        %v2106 = vsel %vm362, %v2047, 0
        %v2109 = vsel %vm362, %v2048, 0
        %v2112 = vsel %vm362, %v2049, 0
        %v2115 = vsel %vm362, %v2050, 0
        %v2118 = vsel %vm362, %v2051, 0
        %v2121 = vsel %vm362, %v2052, 0
        %v2124 = vsel %vm362, %v2053, 0
        %v2127 = vsel %vm362, %v2054, 0
        %v2130 = vsel %vm362, %v2055, 0
        %v2133 = vsel %vm362, %v2056, 0
        %v2136 = vsel %vm362, %v2057, 0
        %v2139 = vsel %vm362, %v2058, 0
        %v2142 = vsel %vm362, %v2059, 0
        %v2145 = vsel %vm362, %v2060, 0
        %v2148 = vsel %vm362, %v2061, 0
        %v2151 = vsel %vm362, %v2062, 0
        %v2154 = vsel %vm362, %v2063, 0
        %v2157 = vsel %vm362, %v2064, 0
        %v2160 = vsel %vm362, %v2065, 0
        %v2163 = vsel %vm362, %v2066, 0
        %v2166 = vsel %vm362, %v2067, 0
        %2168 = vmatpush.msra.mxu0 0.0
        %2169 = vmatpush.msra.mxu0 0.0
        %2170 = vmatpush.msra.mxu0 0.0
        %2171 = vmatpush.msra.mxu0 0.0
        %2172 = vmatpush.msra.mxu0 0.0
        %2173 = vmatpush.msra.mxu0 0.0
        %2174 = vmatpush.msra.mxu0 0.0
        %2175 = vmatpush.msra.mxu0 0.0
        %2176 = vmatpush.msra.mxu0 0.0
        %2177 = vmatpush.msra.mxu0 0.0
        %2178 = vmatpush.msra.mxu0 0.0
        %2179 = vmatpush.msra.mxu0 0.0
        %2180 = vmatpush.msra.mxu0 %v2071
        %2181 = vmatpush.msra.mxu0 %v2070
        %2182 = vmatpush.msra.mxu0 %v2069
        %2183 = vmatpush.msra.mxu0 %v2068
        %2184 = vmatmul.f32.gmra.mxu0 %v2073
        %v2185 = vpop.f32.mrf.mxu0
        %v2186 = vadd.f32 0.0, %v2185
        %2187 = vmatmul.f32.gmra.mxu0 %v2076
        %v2188 = vpop.f32.mrf.mxu0
        %v2189 = vadd.f32 0.0, %v2188
        %2190 = vmatmul.f32.gmra.mxu0 %v2079
        %v2191 = vpop.f32.mrf.mxu0
        %v2192 = vadd.f32 0.0, %v2191
        %2193 = vmatmul.f32.gmra.mxu0 %v2082
        %v2194 = vpop.f32.mrf.mxu0
        %v2195 = vadd.f32 0.0, %v2194
        %2196 = vmatmul.f32.gmra.mxu0 %v2085
        %v2197 = vpop.f32.mrf.mxu0
        %v2198 = vadd.f32 0.0, %v2197
        %2199 = vmatmul.f32.gmra.mxu0 %v2088
        %v2200 = vpop.f32.mrf.mxu0
        %v2201 = vadd.f32 0.0, %v2200
        %2202 = vmatmul.f32.gmra.mxu0 %v2091
        %v2203 = vpop.f32.mrf.mxu0
        %v2204 = vadd.f32 0.0, %v2203
        %2205 = vmatmul.f32.gmra.mxu0 %v2094
        %v2206 = vpop.f32.mrf.mxu0
        %v2207 = vadd.f32 0.0, %v2206
        %2208 = vmatmul.f32.gmra.mxu0 %v2097
        %v2209 = vpop.f32.mrf.mxu0
        %v2210 = vadd.f32 0.0, %v2209
        %2211 = vmatmul.f32.gmra.mxu0 %v2100
        %v2212 = vpop.f32.mrf.mxu0
        %v2213 = vadd.f32 0.0, %v2212
        %2214 = vmatmul.f32.gmra.mxu0 %v2103
        %v2215 = vpop.f32.mrf.mxu0
        %v2216 = vadd.f32 0.0, %v2215
        %2217 = vmatmul.f32.gmra.mxu0 %v2106
        %v2218 = vpop.f32.mrf.mxu0
        %v2219 = vadd.f32 0.0, %v2218
        %2220 = vmatmul.f32.gmra.mxu0 %v2109
        %v2221 = vpop.f32.mrf.mxu0
        %v2222 = vadd.f32 0.0, %v2221
        %2223 = vmatmul.f32.gmra.mxu0 %v2112
        %v2224 = vpop.f32.mrf.mxu0
        %v2225 = vadd.f32 0.0, %v2224
        %2226 = vmatmul.f32.gmra.mxu0 %v2115
        %v2227 = vpop.f32.mrf.mxu0
        %v2228 = vadd.f32 0.0, %v2227
        %2229 = vmatmul.f32.gmra.mxu0 %v2118
        %v2230 = vpop.f32.mrf.mxu0
        %v2231 = vadd.f32 0.0, %v2230
        %2232 = vmatmul.f32.gmra.mxu0 %v2121
        %v2233 = vpop.f32.mrf.mxu0
        %v2234 = vadd.f32 0.0, %v2233
        %2235 = vmatmul.f32.gmra.mxu0 %v2124
        %v2236 = vpop.f32.mrf.mxu0
        %v2237 = vadd.f32 0.0, %v2236
        %2238 = vmatmul.f32.gmra.mxu0 %v2127
        %v2239 = vpop.f32.mrf.mxu0
        %v2240 = vadd.f32 0.0, %v2239
        %2241 = vmatmul.f32.gmra.mxu0 %v2130
        %v2242 = vpop.f32.mrf.mxu0
        %v2243 = vadd.f32 0.0, %v2242
        %2244 = vmatmul.f32.gmra.mxu0 %v2133
        %v2245 = vpop.f32.mrf.mxu0
        %v2246 = vadd.f32 0.0, %v2245
        %2247 = vmatmul.f32.gmra.mxu0 %v2136
        %v2248 = vpop.f32.mrf.mxu0
        %v2249 = vadd.f32 0.0, %v2248
        %2250 = vmatmul.f32.gmra.mxu0 %v2139
        %v2251 = vpop.f32.mrf.mxu0
        %v2252 = vadd.f32 0.0, %v2251
        %2253 = vmatmul.f32.gmra.mxu0 %v2142
        %v2254 = vpop.f32.mrf.mxu0
        %v2255 = vadd.f32 0.0, %v2254
        %2256 = vmatmul.f32.gmra.mxu0 %v2145
        %v2257 = vpop.f32.mrf.mxu0
        %v2258 = vadd.f32 0.0, %v2257
        %2259 = vmatmul.f32.gmra.mxu0 %v2148
        %v2260 = vpop.f32.mrf.mxu0
        %v2261 = vadd.f32 0.0, %v2260
        %2262 = vmatmul.f32.gmra.mxu0 %v2151
        %v2263 = vpop.f32.mrf.mxu0
        %v2264 = vadd.f32 0.0, %v2263
        %2265 = vmatmul.f32.gmra.mxu0 %v2154
        %v2266 = vpop.f32.mrf.mxu0
        %v2267 = vadd.f32 0.0, %v2266
        %2268 = vmatmul.f32.gmra.mxu0 %v2157
        %v2269 = vpop.f32.mrf.mxu0
        %v2270 = vadd.f32 0.0, %v2269
        %2271 = vmatmul.f32.gmra.mxu0 %v2160
        %v2272 = vpop.f32.mrf.mxu0
        %v2273 = vadd.f32 0.0, %v2272
        %2274 = vmatmul.f32.gmra.mxu0 %v2163
        %v2275 = vpop.f32.mrf.mxu0
        %v2276 = vadd.f32 0.0, %v2275
        %2277 = vmatmul.f32.gmra.mxu0 %v2166
        %v2278 = vpop.f32.mrf.mxu0
        %v2279 = vadd.f32 0.0, %v2278
        %2280 = vdwg.mxu0
        %v2281 = vadd.f32 %v2003, %v2186
        %v2282 = vadd.f32 %v2004, %v2189
        %v2283 = vadd.f32 %v2005, %v2192
        %v2284 = vadd.f32 %v2006, %v2195
        %v2285 = vadd.f32 %v2007, %v2198
        %v2286 = vadd.f32 %v2008, %v2201
        %v2287 = vadd.f32 %v2009, %v2204
        %v2288 = vadd.f32 %v2010, %v2207
        %v2289 = vadd.f32 %v2011, %v2210
        %v2290 = vadd.f32 %v2012, %v2213
        %v2291 = vadd.f32 %v2013, %v2216
        %v2292 = vadd.f32 %v2014, %v2219
        %v2293 = vadd.f32 %v2015, %v2222
        %v2294 = vadd.f32 %v2016, %v2225
        %v2295 = vadd.f32 %v2017, %v2228
        %v2296 = vadd.f32 %v2018, %v2231
        %v2297 = vadd.f32 %v2019, %v2234
        %v2298 = vadd.f32 %v2020, %v2237
        %v2299 = vadd.f32 %v2021, %v2240
        %v2300 = vadd.f32 %v2022, %v2243
        %v2301 = vadd.f32 %v2023, %v2246
        %v2302 = vadd.f32 %v2024, %v2249
        %v2303 = vadd.f32 %v2025, %v2252
        %v2304 = vadd.f32 %v2026, %v2255
        %v2305 = vadd.f32 %v2027, %v2258
        %v2306 = vadd.f32 %v2028, %v2261
        %v2307 = vadd.f32 %v2029, %v2264
        %v2308 = vadd.f32 %v2030, %v2267
        %v2309 = vadd.f32 %v2031, %v2270
        %v2310 = vadd.f32 %v2032, %v2273
        %v2311 = vadd.f32 %v2033, %v2276
        %v2312 = vadd.f32 %v2034, %v2279
        %v2313 = vld [vmem:[%s2035 + $0x1] sm:$0xff]
        %v2314 = vld [vmem:[%s2035 + $0x9] sm:$0xff]
        %v2315 = vld [vmem:[%s2035 + $0x19] sm:$0xff]
        %v2316 = vld [vmem:[%s2035 + $0x21] sm:$0xff]
        %v2317 = vld [vmem:[%s2035 + $0x31] sm:$0xff]
        %v2318 = vld [vmem:[%s2035 + $0x39] sm:$0xff]
        %v2319 = vld [vmem:[%s2035 + $0x49] sm:$0xff]
        %v2320 = vld [vmem:[%s2035 + $0x51] sm:$0xff]
        %v2321 = vld [vmem:[%s2035 + $0x61] sm:$0xff]
        %v2322 = vld [vmem:[%s2035 + $0x69] sm:$0xff]
        %v2323 = vld [vmem:[%s2035 + $0x79] sm:$0xff]
        %v2324 = vld [vmem:[%s2035 + $0x81] sm:$0xff]
        %v2325 = vld [vmem:[%s2035 + $0x91] sm:$0xff]
        %v2326 = vld [vmem:[%s2035 + $0x99] sm:$0xff]
        %v2327 = vld [vmem:[%s2035 + $0xa9] sm:$0xff]
        %v2328 = vld [vmem:[%s2035 + $0xb1] sm:$0xff]
        %v2329 = vld [vmem:[%s2035 + $0xc1] sm:$0xff]
        %v2330 = vld [vmem:[%s2035 + $0xc9] sm:$0xff]
        %v2331 = vld [vmem:[%s2035 + $0xd9] sm:$0xff]
        %v2332 = vld [vmem:[%s2035 + $0xe1] sm:$0xff]
        %v2333 = vld [vmem:[%s2035 + $0xf1] sm:$0xff]
        %v2334 = vld [vmem:[%s2035 + $0xf9] sm:$0xff]
        %v2335 = vld [vmem:[%s2035 + $0x109] sm:$0xff]
        %v2336 = vld [vmem:[%s2035 + $0x111] sm:$0xff]
        %v2337 = vld [vmem:[%s2035 + $0x121] sm:$0xff]
        %v2338 = vld [vmem:[%s2035 + $0x129] sm:$0xff]
        %v2339 = vld [vmem:[%s2035 + $0x139] sm:$0xff]
        %v2340 = vld [vmem:[%s2035 + $0x141] sm:$0xff]
        %v2341 = vld [vmem:[%s2035 + $0x151] sm:$0xff]
        %v2342 = vld [vmem:[%s2035 + $0x159] sm:$0xff]
        %v2343 = vld [vmem:[%s2035 + $0x169] sm:$0xff]
        %v2344 = vld [vmem:[%s2035 + $0x171] sm:$0xff]
        %v2345 = vld [vmem:[%s1 + $0xe0] sm:$0xff]
        %v2346 = vld [vmem:[%s1 + $0xe8] sm:$0xff]
        %v2347 = vld [vmem:[%s1 + $0xf0] sm:$0xff]
        %v2348 = vld [vmem:[%s1 + $0xf8] sm:$0xff]
        %v2350 = vsel %vm362, %v2313, 0
        %v2353 = vsel %vm362, %v2314, 0
        %v2356 = vsel %vm362, %v2315, 0
        %v2359 = vsel %vm362, %v2316, 0
        %v2362 = vsel %vm362, %v2317, 0
        %v2365 = vsel %vm362, %v2318, 0
        %v2368 = vsel %vm362, %v2319, 0
        %v2371 = vsel %vm362, %v2320, 0
        %v2374 = vsel %vm362, %v2321, 0
        %v2377 = vsel %vm362, %v2322, 0
        %v2380 = vsel %vm362, %v2323, 0
        %v2383 = vsel %vm362, %v2324, 0
        %v2386 = vsel %vm362, %v2325, 0
        %v2389 = vsel %vm362, %v2326, 0
        %v2392 = vsel %vm362, %v2327, 0
        %v2395 = vsel %vm362, %v2328, 0
        %v2398 = vsel %vm362, %v2329, 0
        %v2401 = vsel %vm362, %v2330, 0
        %v2404 = vsel %vm362, %v2331, 0
        %v2407 = vsel %vm362, %v2332, 0
        %v2410 = vsel %vm362, %v2333, 0
        %v2413 = vsel %vm362, %v2334, 0
        %v2416 = vsel %vm362, %v2335, 0
        %v2419 = vsel %vm362, %v2336, 0
        %v2422 = vsel %vm362, %v2337, 0
        %v2425 = vsel %vm362, %v2338, 0
        %v2428 = vsel %vm362, %v2339, 0
        %v2431 = vsel %vm362, %v2340, 0
        %v2434 = vsel %vm362, %v2341, 0
        %v2437 = vsel %vm362, %v2342, 0
        %v2440 = vsel %vm362, %v2343, 0
        %v2443 = vsel %vm362, %v2344, 0
        %2445 = vmatpush.msra.mxu0 0.0
        %2446 = vmatpush.msra.mxu0 0.0
        %2447 = vmatpush.msra.mxu0 0.0
        %2448 = vmatpush.msra.mxu0 0.0
        %2449 = vmatpush.msra.mxu0 0.0
        %2450 = vmatpush.msra.mxu0 0.0
        %2451 = vmatpush.msra.mxu0 0.0
        %2452 = vmatpush.msra.mxu0 0.0
        %2453 = vmatpush.msra.mxu0 0.0
        %2454 = vmatpush.msra.mxu0 0.0
        %2455 = vmatpush.msra.mxu0 0.0
        %2456 = vmatpush.msra.mxu0 0.0
        %2457 = vmatpush.msra.mxu0 %v2348
        %2458 = vmatpush.msra.mxu0 %v2347
        %2459 = vmatpush.msra.mxu0 %v2346
        %2460 = vmatpush.msra.mxu0 %v2345
        %2461 = vmatmul.f32.gmra.mxu0 %v2350
        %v2462 = vpop.f32.mrf.mxu0
        %v2463 = vadd.f32 0.0, %v2462
        %2464 = vmatmul.f32.gmra.mxu0 %v2353
        %v2465 = vpop.f32.mrf.mxu0
        %v2466 = vadd.f32 0.0, %v2465
        %2467 = vmatmul.f32.gmra.mxu0 %v2356
        %v2468 = vpop.f32.mrf.mxu0
        %v2469 = vadd.f32 0.0, %v2468
        %2470 = vmatmul.f32.gmra.mxu0 %v2359
        %v2471 = vpop.f32.mrf.mxu0
        %v2472 = vadd.f32 0.0, %v2471
        %2473 = vmatmul.f32.gmra.mxu0 %v2362
        %v2474 = vpop.f32.mrf.mxu0
        %v2475 = vadd.f32 0.0, %v2474
        %2476 = vmatmul.f32.gmra.mxu0 %v2365
        %v2477 = vpop.f32.mrf.mxu0
        %v2478 = vadd.f32 0.0, %v2477
        %2479 = vmatmul.f32.gmra.mxu0 %v2368
        %v2480 = vpop.f32.mrf.mxu0
        %v2481 = vadd.f32 0.0, %v2480
        %2482 = vmatmul.f32.gmra.mxu0 %v2371
        %v2483 = vpop.f32.mrf.mxu0
        %v2484 = vadd.f32 0.0, %v2483
        %2485 = vmatmul.f32.gmra.mxu0 %v2374
        %v2486 = vpop.f32.mrf.mxu0
        %v2487 = vadd.f32 0.0, %v2486
        %2488 = vmatmul.f32.gmra.mxu0 %v2377
        %v2489 = vpop.f32.mrf.mxu0
        %v2490 = vadd.f32 0.0, %v2489
        %2491 = vmatmul.f32.gmra.mxu0 %v2380
        %v2492 = vpop.f32.mrf.mxu0
        %v2493 = vadd.f32 0.0, %v2492
        %2494 = vmatmul.f32.gmra.mxu0 %v2383
        %v2495 = vpop.f32.mrf.mxu0
        %v2496 = vadd.f32 0.0, %v2495
        %2497 = vmatmul.f32.gmra.mxu0 %v2386
        %v2498 = vpop.f32.mrf.mxu0
        %v2499 = vadd.f32 0.0, %v2498
        %2500 = vmatmul.f32.gmra.mxu0 %v2389
        %v2501 = vpop.f32.mrf.mxu0
        %v2502 = vadd.f32 0.0, %v2501
        %2503 = vmatmul.f32.gmra.mxu0 %v2392
        %v2504 = vpop.f32.mrf.mxu0
        %v2505 = vadd.f32 0.0, %v2504
        %2506 = vmatmul.f32.gmra.mxu0 %v2395
        %v2507 = vpop.f32.mrf.mxu0
        %v2508 = vadd.f32 0.0, %v2507
        %2509 = vmatmul.f32.gmra.mxu0 %v2398
        %v2510 = vpop.f32.mrf.mxu0
        %v2511 = vadd.f32 0.0, %v2510
        %2512 = vmatmul.f32.gmra.mxu0 %v2401
        %v2513 = vpop.f32.mrf.mxu0
        %v2514 = vadd.f32 0.0, %v2513
        %2515 = vmatmul.f32.gmra.mxu0 %v2404
        %v2516 = vpop.f32.mrf.mxu0
        %v2517 = vadd.f32 0.0, %v2516
        %2518 = vmatmul.f32.gmra.mxu0 %v2407
        %v2519 = vpop.f32.mrf.mxu0
        %v2520 = vadd.f32 0.0, %v2519
        %2521 = vmatmul.f32.gmra.mxu0 %v2410
        %v2522 = vpop.f32.mrf.mxu0
        %v2523 = vadd.f32 0.0, %v2522
        %2524 = vmatmul.f32.gmra.mxu0 %v2413
        %v2525 = vpop.f32.mrf.mxu0
        %v2526 = vadd.f32 0.0, %v2525
        %2527 = vmatmul.f32.gmra.mxu0 %v2416
        %v2528 = vpop.f32.mrf.mxu0
        %v2529 = vadd.f32 0.0, %v2528
        %2530 = vmatmul.f32.gmra.mxu0 %v2419
        %v2531 = vpop.f32.mrf.mxu0
        %v2532 = vadd.f32 0.0, %v2531
        %2533 = vmatmul.f32.gmra.mxu0 %v2422
        %v2534 = vpop.f32.mrf.mxu0
        %v2535 = vadd.f32 0.0, %v2534
        %2536 = vmatmul.f32.gmra.mxu0 %v2425
        %v2537 = vpop.f32.mrf.mxu0
        %v2538 = vadd.f32 0.0, %v2537
        %2539 = vmatmul.f32.gmra.mxu0 %v2428
        %v2540 = vpop.f32.mrf.mxu0
        %v2541 = vadd.f32 0.0, %v2540
        %2542 = vmatmul.f32.gmra.mxu0 %v2431
        %v2543 = vpop.f32.mrf.mxu0
        %v2544 = vadd.f32 0.0, %v2543
        %2545 = vmatmul.f32.gmra.mxu0 %v2434
        %v2546 = vpop.f32.mrf.mxu0
        %v2547 = vadd.f32 0.0, %v2546
        %2548 = vmatmul.f32.gmra.mxu0 %v2437
        %v2549 = vpop.f32.mrf.mxu0
        %v2550 = vadd.f32 0.0, %v2549
        %2551 = vmatmul.f32.gmra.mxu0 %v2440
        %v2552 = vpop.f32.mrf.mxu0
        %v2553 = vadd.f32 0.0, %v2552
        %2554 = vmatmul.f32.gmra.mxu0 %v2443
        %v2555 = vpop.f32.mrf.mxu0
        %v2556 = vadd.f32 0.0, %v2555
        %2557 = vdwg.mxu0
        %v2558 = vadd.f32 %v2281, %v2463
        %v2559 = vadd.f32 %v2282, %v2466
        %v2560 = vadd.f32 %v2283, %v2469
        %v2561 = vadd.f32 %v2284, %v2472
        %v2562 = vadd.f32 %v2285, %v2475
        %v2563 = vadd.f32 %v2286, %v2478
        %v2564 = vadd.f32 %v2287, %v2481
        %v2565 = vadd.f32 %v2288, %v2484
        %v2566 = vadd.f32 %v2289, %v2487
        %v2567 = vadd.f32 %v2290, %v2490
        %v2568 = vadd.f32 %v2291, %v2493
        %v2569 = vadd.f32 %v2292, %v2496
        %v2570 = vadd.f32 %v2293, %v2499
        %v2571 = vadd.f32 %v2294, %v2502
        %v2572 = vadd.f32 %v2295, %v2505
        %v2573 = vadd.f32 %v2296, %v2508
        %v2574 = vadd.f32 %v2297, %v2511
        %v2575 = vadd.f32 %v2298, %v2514
        %v2576 = vadd.f32 %v2299, %v2517
        %v2577 = vadd.f32 %v2300, %v2520
        %v2578 = vadd.f32 %v2301, %v2523
        %v2579 = vadd.f32 %v2302, %v2526
        %v2580 = vadd.f32 %v2303, %v2529
        %v2581 = vadd.f32 %v2304, %v2532
        %v2582 = vadd.f32 %v2305, %v2535
        %v2583 = vadd.f32 %v2306, %v2538
        %v2584 = vadd.f32 %v2307, %v2541
        %v2585 = vadd.f32 %v2308, %v2544
        %v2586 = vadd.f32 %v2309, %v2547
        %v2587 = vadd.f32 %v2310, %v2550
        %v2588 = vadd.f32 %v2311, %v2553
        %v2589 = vadd.f32 %v2312, %v2556
        %v2590 = vld [vmem:[%s2035 + $0x2] sm:$0xff]
        %v2591 = vld [vmem:[%s2035 + $0xa] sm:$0xff]
        %v2592 = vld [vmem:[%s2035 + $0x1a] sm:$0xff]
        %v2593 = vld [vmem:[%s2035 + $0x22] sm:$0xff]
        %v2594 = vld [vmem:[%s2035 + $0x32] sm:$0xff]
        %v2595 = vld [vmem:[%s2035 + $0x3a] sm:$0xff]
        %v2596 = vld [vmem:[%s2035 + $0x4a] sm:$0xff]
        %v2597 = vld [vmem:[%s2035 + $0x52] sm:$0xff]
        %v2598 = vld [vmem:[%s2035 + $0x62] sm:$0xff]
        %v2599 = vld [vmem:[%s2035 + $0x6a] sm:$0xff]
        %v2600 = vld [vmem:[%s2035 + $0x7a] sm:$0xff]
        %v2601 = vld [vmem:[%s2035 + $0x82] sm:$0xff]
        %v2602 = vld [vmem:[%s2035 + $0x92] sm:$0xff]
        %v2603 = vld [vmem:[%s2035 + $0x9a] sm:$0xff]
        %v2604 = vld [vmem:[%s2035 + $0xaa] sm:$0xff]
        %v2605 = vld [vmem:[%s2035 + $0xb2] sm:$0xff]
        %v2606 = vld [vmem:[%s2035 + $0xc2] sm:$0xff]
        %v2607 = vld [vmem:[%s2035 + $0xca] sm:$0xff]
        %v2608 = vld [vmem:[%s2035 + $0xda] sm:$0xff]
        %v2609 = vld [vmem:[%s2035 + $0xe2] sm:$0xff]
        %v2610 = vld [vmem:[%s2035 + $0xf2] sm:$0xff]
        %v2611 = vld [vmem:[%s2035 + $0xfa] sm:$0xff]
        %v2612 = vld [vmem:[%s2035 + $0x10a] sm:$0xff]
        %v2613 = vld [vmem:[%s2035 + $0x112] sm:$0xff]
        %v2614 = vld [vmem:[%s2035 + $0x122] sm:$0xff]
        %v2615 = vld [vmem:[%s2035 + $0x12a] sm:$0xff]
        %v2616 = vld [vmem:[%s2035 + $0x13a] sm:$0xff]
        %v2617 = vld [vmem:[%s2035 + $0x142] sm:$0xff]
        %v2618 = vld [vmem:[%s2035 + $0x152] sm:$0xff]
        %v2619 = vld [vmem:[%s2035 + $0x15a] sm:$0xff]
        %v2620 = vld [vmem:[%s2035 + $0x16a] sm:$0xff]
        %v2621 = vld [vmem:[%s2035 + $0x172] sm:$0xff]
        %v2622 = vld [vmem:[%s1 + $0x100] sm:$0xff]
        %v2623 = vld [vmem:[%s1 + $0x108] sm:$0xff]
        %v2624 = vld [vmem:[%s1 + $0x110] sm:$0xff]
        %v2625 = vld [vmem:[%s1 + $0x118] sm:$0xff]
        %v2627 = vsel %vm362, %v2590, 0
        %v2630 = vsel %vm362, %v2591, 0
        %v2633 = vsel %vm362, %v2592, 0
        %v2636 = vsel %vm362, %v2593, 0
        %v2639 = vsel %vm362, %v2594, 0
        %v2642 = vsel %vm362, %v2595, 0
        %v2645 = vsel %vm362, %v2596, 0
        %v2648 = vsel %vm362, %v2597, 0
        %v2651 = vsel %vm362, %v2598, 0
        %v2654 = vsel %vm362, %v2599, 0
        %v2657 = vsel %vm362, %v2600, 0
        %v2660 = vsel %vm362, %v2601, 0
        %v2663 = vsel %vm362, %v2602, 0
        %v2666 = vsel %vm362, %v2603, 0
        %v2669 = vsel %vm362, %v2604, 0
        %v2672 = vsel %vm362, %v2605, 0
        %v2675 = vsel %vm362, %v2606, 0
        %v2678 = vsel %vm362, %v2607, 0
        %v2681 = vsel %vm362, %v2608, 0
        %v2684 = vsel %vm362, %v2609, 0
        %v2687 = vsel %vm362, %v2610, 0
        %v2690 = vsel %vm362, %v2611, 0
        %v2693 = vsel %vm362, %v2612, 0
        %v2696 = vsel %vm362, %v2613, 0
        %v2699 = vsel %vm362, %v2614, 0
        %v2702 = vsel %vm362, %v2615, 0
        %v2705 = vsel %vm362, %v2616, 0
        %v2708 = vsel %vm362, %v2617, 0
        %v2711 = vsel %vm362, %v2618, 0
        %v2714 = vsel %vm362, %v2619, 0
        %v2717 = vsel %vm362, %v2620, 0
        %v2720 = vsel %vm362, %v2621, 0
        %2722 = vmatpush.msra.mxu0 0.0
        %2723 = vmatpush.msra.mxu0 0.0
        %2724 = vmatpush.msra.mxu0 0.0
        %2725 = vmatpush.msra.mxu0 0.0
        %2726 = vmatpush.msra.mxu0 0.0
        %2727 = vmatpush.msra.mxu0 0.0
        %2728 = vmatpush.msra.mxu0 0.0
        %2729 = vmatpush.msra.mxu0 0.0
        %2730 = vmatpush.msra.mxu0 0.0
        %2731 = vmatpush.msra.mxu0 0.0
        %2732 = vmatpush.msra.mxu0 0.0
        %2733 = vmatpush.msra.mxu0 0.0
        %2734 = vmatpush.msra.mxu0 %v2625
        %2735 = vmatpush.msra.mxu0 %v2624
        %2736 = vmatpush.msra.mxu0 %v2623
        %2737 = vmatpush.msra.mxu0 %v2622
        %2738 = vmatmul.f32.gmra.mxu0 %v2627
        %v2739 = vpop.f32.mrf.mxu0
        %v2740 = vadd.f32 0.0, %v2739
        %2741 = vmatmul.f32.gmra.mxu0 %v2630
        %v2742 = vpop.f32.mrf.mxu0
        %v2743 = vadd.f32 0.0, %v2742
        %2744 = vmatmul.f32.gmra.mxu0 %v2633
        %v2745 = vpop.f32.mrf.mxu0
        %v2746 = vadd.f32 0.0, %v2745
        %2747 = vmatmul.f32.gmra.mxu0 %v2636
        %v2748 = vpop.f32.mrf.mxu0
        %v2749 = vadd.f32 0.0, %v2748
        %2750 = vmatmul.f32.gmra.mxu0 %v2639
        %v2751 = vpop.f32.mrf.mxu0
        %v2752 = vadd.f32 0.0, %v2751
        %2753 = vmatmul.f32.gmra.mxu0 %v2642
        %v2754 = vpop.f32.mrf.mxu0
        %v2755 = vadd.f32 0.0, %v2754
        %2756 = vmatmul.f32.gmra.mxu0 %v2645
        %v2757 = vpop.f32.mrf.mxu0
        %v2758 = vadd.f32 0.0, %v2757
        %2759 = vmatmul.f32.gmra.mxu0 %v2648
        %v2760 = vpop.f32.mrf.mxu0
        %v2761 = vadd.f32 0.0, %v2760
        %2762 = vmatmul.f32.gmra.mxu0 %v2651
        %v2763 = vpop.f32.mrf.mxu0
        %v2764 = vadd.f32 0.0, %v2763
        %2765 = vmatmul.f32.gmra.mxu0 %v2654
        %v2766 = vpop.f32.mrf.mxu0
        %v2767 = vadd.f32 0.0, %v2766
        %2768 = vmatmul.f32.gmra.mxu0 %v2657
        %v2769 = vpop.f32.mrf.mxu0
        %v2770 = vadd.f32 0.0, %v2769
        %2771 = vmatmul.f32.gmra.mxu0 %v2660
        %v2772 = vpop.f32.mrf.mxu0
        %v2773 = vadd.f32 0.0, %v2772
        %2774 = vmatmul.f32.gmra.mxu0 %v2663
        %v2775 = vpop.f32.mrf.mxu0
        %v2776 = vadd.f32 0.0, %v2775
        %2777 = vmatmul.f32.gmra.mxu0 %v2666
        %v2778 = vpop.f32.mrf.mxu0
        %v2779 = vadd.f32 0.0, %v2778
        %2780 = vmatmul.f32.gmra.mxu0 %v2669
        %v2781 = vpop.f32.mrf.mxu0
        %v2782 = vadd.f32 0.0, %v2781
        %2783 = vmatmul.f32.gmra.mxu0 %v2672
        %v2784 = vpop.f32.mrf.mxu0
        %v2785 = vadd.f32 0.0, %v2784
        %2786 = vmatmul.f32.gmra.mxu0 %v2675
        %v2787 = vpop.f32.mrf.mxu0
        %v2788 = vadd.f32 0.0, %v2787
        %2789 = vmatmul.f32.gmra.mxu0 %v2678
        %v2790 = vpop.f32.mrf.mxu0
        %v2791 = vadd.f32 0.0, %v2790
        %2792 = vmatmul.f32.gmra.mxu0 %v2681
        %v2793 = vpop.f32.mrf.mxu0
        %v2794 = vadd.f32 0.0, %v2793
        %2795 = vmatmul.f32.gmra.mxu0 %v2684
        %v2796 = vpop.f32.mrf.mxu0
        %v2797 = vadd.f32 0.0, %v2796
        %2798 = vmatmul.f32.gmra.mxu0 %v2687
        %v2799 = vpop.f32.mrf.mxu0
        %v2800 = vadd.f32 0.0, %v2799
        %2801 = vmatmul.f32.gmra.mxu0 %v2690
        %v2802 = vpop.f32.mrf.mxu0
        %v2803 = vadd.f32 0.0, %v2802
        %2804 = vmatmul.f32.gmra.mxu0 %v2693
        %v2805 = vpop.f32.mrf.mxu0
        %v2806 = vadd.f32 0.0, %v2805
        %2807 = vmatmul.f32.gmra.mxu0 %v2696
        %v2808 = vpop.f32.mrf.mxu0
        %v2809 = vadd.f32 0.0, %v2808
        %2810 = vmatmul.f32.gmra.mxu0 %v2699
        %v2811 = vpop.f32.mrf.mxu0
        %v2812 = vadd.f32 0.0, %v2811
        %2813 = vmatmul.f32.gmra.mxu0 %v2702
        %v2814 = vpop.f32.mrf.mxu0
        %v2815 = vadd.f32 0.0, %v2814
        %2816 = vmatmul.f32.gmra.mxu0 %v2705
        %v2817 = vpop.f32.mrf.mxu0
        %v2818 = vadd.f32 0.0, %v2817
        %2819 = vmatmul.f32.gmra.mxu0 %v2708
        %v2820 = vpop.f32.mrf.mxu0
        %v2821 = vadd.f32 0.0, %v2820
        %2822 = vmatmul.f32.gmra.mxu0 %v2711
        %v2823 = vpop.f32.mrf.mxu0
        %v2824 = vadd.f32 0.0, %v2823
        %2825 = vmatmul.f32.gmra.mxu0 %v2714
        %v2826 = vpop.f32.mrf.mxu0
        %v2827 = vadd.f32 0.0, %v2826
        %2828 = vmatmul.f32.gmra.mxu0 %v2717
        %v2829 = vpop.f32.mrf.mxu0
        %v2830 = vadd.f32 0.0, %v2829
        %2831 = vmatmul.f32.gmra.mxu0 %v2720
        %v2832 = vpop.f32.mrf.mxu0
        %v2833 = vadd.f32 0.0, %v2832
        %2834 = vdwg.mxu0
        %v2835 = vadd.f32 %v2558, %v2740
        %v2836 = vadd.f32 %v2559, %v2743
        %v2837 = vadd.f32 %v2560, %v2746
        %v2838 = vadd.f32 %v2561, %v2749
        %v2839 = vadd.f32 %v2562, %v2752
        %v2840 = vadd.f32 %v2563, %v2755
        %v2841 = vadd.f32 %v2564, %v2758
        %v2842 = vadd.f32 %v2565, %v2761
        %v2843 = vadd.f32 %v2566, %v2764
        %v2844 = vadd.f32 %v2567, %v2767
        %v2845 = vadd.f32 %v2568, %v2770
        %v2846 = vadd.f32 %v2569, %v2773
        %v2847 = vadd.f32 %v2570, %v2776
        %v2848 = vadd.f32 %v2571, %v2779
        %v2849 = vadd.f32 %v2572, %v2782
        %v2850 = vadd.f32 %v2573, %v2785
        %v2851 = vadd.f32 %v2574, %v2788
        %v2852 = vadd.f32 %v2575, %v2791
        %v2853 = vadd.f32 %v2576, %v2794
        %v2854 = vadd.f32 %v2577, %v2797
        %v2855 = vadd.f32 %v2578, %v2800
        %v2856 = vadd.f32 %v2579, %v2803
        %v2857 = vadd.f32 %v2580, %v2806
        %v2858 = vadd.f32 %v2581, %v2809
        %v2859 = vadd.f32 %v2582, %v2812
        %v2860 = vadd.f32 %v2583, %v2815
        %v2861 = vadd.f32 %v2584, %v2818
        %v2862 = vadd.f32 %v2585, %v2821
        %v2863 = vadd.f32 %v2586, %v2824
        %v2864 = vadd.f32 %v2587, %v2827
        %v2865 = vadd.f32 %v2588, %v2830
        %v2866 = vadd.f32 %v2589, %v2833
        %v2867 = vld [vmem:[%s2] sm:$0x1]
        %v2869 = vperm.slane %v2867, 0
        %v2871 = vadd.f32 %v2835, %v2869
        %v2872 = vadd.f32 %v2836, %v2869
        %v2873 = vadd.f32 %v2837, %v2869
        %v2874 = vadd.f32 %v2838, %v2869
        %v2875 = vadd.f32 %v2839, %v2869
        %v2876 = vadd.f32 %v2840, %v2869
        %v2877 = vadd.f32 %v2841, %v2869
        %v2878 = vadd.f32 %v2842, %v2869
        %v2879 = vadd.f32 %v2843, %v2869
        %v2880 = vadd.f32 %v2844, %v2869
        %v2881 = vadd.f32 %v2845, %v2869
        %v2882 = vadd.f32 %v2846, %v2869
        %v2883 = vadd.f32 %v2847, %v2869
        %v2884 = vadd.f32 %v2848, %v2869
        %v2885 = vadd.f32 %v2849, %v2869
        %v2886 = vadd.f32 %v2850, %v2869
        %v2887 = vadd.f32 %v2851, %v2869
        %v2888 = vadd.f32 %v2852, %v2869
        %v2889 = vadd.f32 %v2853, %v2869
        %v2890 = vadd.f32 %v2854, %v2869
        %v2891 = vadd.f32 %v2855, %v2869
        %v2892 = vadd.f32 %v2856, %v2869
        %v2893 = vadd.f32 %v2857, %v2869
        %v2894 = vadd.f32 %v2858, %v2869
        %v2895 = vadd.f32 %v2859, %v2869
        %v2896 = vadd.f32 %v2860, %v2869
        %v2897 = vadd.f32 %v2861, %v2869
        %v2898 = vadd.f32 %v2862, %v2869
        %v2899 = vadd.f32 %v2863, %v2869
        %v2900 = vadd.f32 %v2864, %v2869
        %v2901 = vadd.f32 %v2865, %v2869
        %v2902 = vadd.f32 %v2866, %v2869
        %v2903 = vmax.f32 %v2871, 0.0
        %v2904 = vmax.f32 %v2872, 0.0
        %v2905 = vmax.f32 %v2873, 0.0
        %v2906 = vmax.f32 %v2874, 0.0
        %v2907 = vmax.f32 %v2875, 0.0
        %v2908 = vmax.f32 %v2876, 0.0
        %v2909 = vmax.f32 %v2877, 0.0
        %v2910 = vmax.f32 %v2878, 0.0
        %v2911 = vmax.f32 %v2879, 0.0
        %v2912 = vmax.f32 %v2880, 0.0
        %v2913 = vmax.f32 %v2881, 0.0
        %v2914 = vmax.f32 %v2882, 0.0
        %v2915 = vmax.f32 %v2883, 0.0
        %v2916 = vmax.f32 %v2884, 0.0
        %v2917 = vmax.f32 %v2885, 0.0
        %v2918 = vmax.f32 %v2886, 0.0
        %v2919 = vmax.f32 %v2887, 0.0
        %v2920 = vmax.f32 %v2888, 0.0
        %v2921 = vmax.f32 %v2889, 0.0
        %v2922 = vmax.f32 %v2890, 0.0
        %v2923 = vmax.f32 %v2891, 0.0
        %v2924 = vmax.f32 %v2892, 0.0
        %v2925 = vmax.f32 %v2893, 0.0
        %v2926 = vmax.f32 %v2894, 0.0
        %v2927 = vmax.f32 %v2895, 0.0
        %v2928 = vmax.f32 %v2896, 0.0
        %v2929 = vmax.f32 %v2897, 0.0
        %v2930 = vmax.f32 %v2898, 0.0
        %v2931 = vmax.f32 %v2899, 0.0
        %v2932 = vmax.f32 %v2900, 0.0
        %v2933 = vmax.f32 %v2901, 0.0
        %v2934 = vmax.f32 %v2902, 0.0
        %2935 = vst.msk [vmem:[#allocation2] sm:$0xff] %vm362, %v2903
        %2936 = vst.msk [vmem:[#allocation2 + $0x8] sm:$0xff] %vm362, %v2904
        %2937 = vst.msk [vmem:[#allocation2 + $0x18] sm:$0xff] %vm362, %v2905
        %2938 = vst.msk [vmem:[#allocation2 + $0x20] sm:$0xff] %vm362, %v2906
        %2939 = vst.msk [vmem:[#allocation2 + $0x30] sm:$0xff] %vm362, %v2907
        %2940 = vst.msk [vmem:[#allocation2 + $0x38] sm:$0xff] %vm362, %v2908
        %2941 = vst.msk [vmem:[#allocation2 + $0x48] sm:$0xff] %vm362, %v2909
        %2942 = vst.msk [vmem:[#allocation2 + $0x50] sm:$0xff] %vm362, %v2910
        %2943 = vst.msk [vmem:[#allocation2 + $0x60] sm:$0xff] %vm362, %v2911
        %2944 = vst.msk [vmem:[#allocation2 + $0x68] sm:$0xff] %vm362, %v2912
        %2945 = vst.msk [vmem:[#allocation2 + $0x78] sm:$0xff] %vm362, %v2913
        %2946 = vst.msk [vmem:[#allocation2 + $0x80] sm:$0xff] %vm362, %v2914
        %2947 = vst.msk [vmem:[#allocation2 + $0x90] sm:$0xff] %vm362, %v2915
        %2948 = vst.msk [vmem:[#allocation2 + $0x98] sm:$0xff] %vm362, %v2916
        %2949 = vst.msk [vmem:[#allocation2 + $0xa8] sm:$0xff] %vm362, %v2917
        %2950 = vst.msk [vmem:[#allocation2 + $0xb0] sm:$0xff] %vm362, %v2918
        %2951 = vst.msk [vmem:[#allocation2 + $0xc0] sm:$0xff] %vm362, %v2919
        %2952 = vst.msk [vmem:[#allocation2 + $0xc8] sm:$0xff] %vm362, %v2920
        %2953 = vst.msk [vmem:[#allocation2 + $0xd8] sm:$0xff] %vm362, %v2921
        %2954 = vst.msk [vmem:[#allocation2 + $0xe0] sm:$0xff] %vm362, %v2922
        %2955 = vst.msk [vmem:[#allocation2 + $0xf0] sm:$0xff] %vm362, %v2923
        %2956 = vst.msk [vmem:[#allocation2 + $0xf8] sm:$0xff] %vm362, %v2924
        %2957 = vst.msk [vmem:[#allocation2 + $0x108] sm:$0xff] %vm362, %v2925
        %2958 = vst.msk [vmem:[#allocation2 + $0x110] sm:$0xff] %vm362, %v2926
        %2959 = vst.msk [vmem:[#allocation2 + $0x120] sm:$0xff] %vm362, %v2927
        %2960 = vst.msk [vmem:[#allocation2 + $0x128] sm:$0xff] %vm362, %v2928
        %2961 = vst.msk [vmem:[#allocation2 + $0x138] sm:$0xff] %vm362, %v2929
        %2962 = vst.msk [vmem:[#allocation2 + $0x140] sm:$0xff] %vm362, %v2930
        %2963 = vst.msk [vmem:[#allocation2 + $0x150] sm:$0xff] %vm362, %v2931
        %2964 = vst.msk [vmem:[#allocation2 + $0x158] sm:$0xff] %vm362, %v2932
        %2965 = vst.msk [vmem:[#allocation2 + $0x168] sm:$0xff] %vm362, %v2933
        %2966 = vst.msk [vmem:[#allocation2 + $0x170] sm:$0xff] %vm362, %v2934
        %v2967 = vld [vmem:[#allocation2] ss:$2 sm:$0xff]
        %s2968 = scalar_lea.vmem [#allocation2], 48
        %v2969 = vld [vmem:[%s2968] ss:$2 sm:$0xff]
        %s2970 = scalar_lea.vmem [#allocation2], 96
        %v2971 = vld [vmem:[%s2970] ss:$2 sm:$0xff]
        %s2972 = scalar_lea.vmem [#allocation2], 144
        %v2973 = vld [vmem:[%s2972] ss:$2 sm:$0xff]
        %s2974 = scalar_lea.vmem [#allocation2], 192
        %v2975 = vld [vmem:[%s2974] ss:$2 sm:$0xff]
        %s2976 = scalar_lea.vmem [#allocation2], 240
        %v2977 = vld [vmem:[%s2976] ss:$2 sm:$0xff]
        %s2978 = scalar_lea.vmem [#allocation2], 288
        %v2979 = vld [vmem:[%s2978] ss:$2 sm:$0xff]
        %s2980 = scalar_lea.vmem [#allocation2], 336
        %v2981 = vld [vmem:[%s2980] ss:$2 sm:$0xff]
        %s2982 = scalar_lea.vmem [#allocation2], 1
        %v2983 = vld [vmem:[%s2982] ss:$2 sm:$0xff]
        %s2984 = scalar_lea.vmem [#allocation2], 49
        %v2985 = vld [vmem:[%s2984] ss:$2 sm:$0xff]
        %s2986 = scalar_lea.vmem [#allocation2], 97
        %v2987 = vld [vmem:[%s2986] ss:$2 sm:$0xff]
        %s2988 = scalar_lea.vmem [#allocation2], 145
        %v2989 = vld [vmem:[%s2988] ss:$2 sm:$0xff]
        %s2990 = scalar_lea.vmem [#allocation2], 193
        %v2991 = vld [vmem:[%s2990] ss:$2 sm:$0xff]
        %s2992 = scalar_lea.vmem [#allocation2], 241
        %v2993 = vld [vmem:[%s2992] ss:$2 sm:$0xff]
        %s2994 = scalar_lea.vmem [#allocation2], 289
        %v2995 = vld [vmem:[%s2994] ss:$2 sm:$0xff]
        %s2996 = scalar_lea.vmem [#allocation2], 337
        %v2997 = vld [vmem:[%s2996] ss:$2 sm:$0xff]
        %v2998 = vld [vmem:[%s371] ss:$2 sm:$0xff]
        %s2999 = scalar_lea.vmem %s371, 48 [#allocation2]
        %v3000 = vld [vmem:[%s2999] ss:$2 sm:$0xff]
        %s3001 = scalar_lea.vmem %s371, 96 [#allocation2]
        %v3002 = vld [vmem:[%s3001] ss:$2 sm:$0xff]
        %s3003 = scalar_lea.vmem %s371, 144 [#allocation2]
        %v3004 = vld [vmem:[%s3003] ss:$2 sm:$0xff]
        %s3005 = scalar_lea.vmem %s371, 192 [#allocation2]
        %v3006 = vld [vmem:[%s3005] ss:$2 sm:$0xff]
        %s3007 = scalar_lea.vmem %s371, 240 [#allocation2]
        %v3008 = vld [vmem:[%s3007] ss:$2 sm:$0xff]
        %s3009 = scalar_lea.vmem %s371, 288 [#allocation2]
        %v3010 = vld [vmem:[%s3009] ss:$2 sm:$0xff]
        %s3011 = scalar_lea.vmem %s371, 336 [#allocation2]
        %v3012 = vld [vmem:[%s3011] ss:$2 sm:$0xff]
        %s3013 = scalar_lea.vmem %s371, 1 [#allocation2]
        %v3014 = vld [vmem:[%s3013] ss:$2 sm:$0xff]
        %s3015 = scalar_lea.vmem %s371, 49 [#allocation2]
        %v3016 = vld [vmem:[%s3015] ss:$2 sm:$0xff]
        %s3017 = scalar_lea.vmem %s371, 97 [#allocation2]
        %v3018 = vld [vmem:[%s3017] ss:$2 sm:$0xff]
        %s3019 = scalar_lea.vmem %s371, 145 [#allocation2]
        %v3020 = vld [vmem:[%s3019] ss:$2 sm:$0xff]
        %s3021 = scalar_lea.vmem %s371, 193 [#allocation2]
        %v3022 = vld [vmem:[%s3021] ss:$2 sm:$0xff]
        %s3023 = scalar_lea.vmem %s371, 241 [#allocation2]
        %v3024 = vld [vmem:[%s3023] ss:$2 sm:$0xff]
        %s3025 = scalar_lea.vmem %s371, 289 [#allocation2]
        %v3026 = vld [vmem:[%s3025] ss:$2 sm:$0xff]
        %s3027 = scalar_lea.vmem %s371, 337 [#allocation2]
        %v3028 = vld [vmem:[%s3027] ss:$2 sm:$0xff]
        %v3029 = vmax.f32 %v2967, %v2983
        %v3030 = vmax.f32 %v2969, %v2985
        %v3031 = vmax.f32 %v2971, %v2987
        %v3032 = vmax.f32 %v2973, %v2989
        %v3033 = vmax.f32 %v2975, %v2991
        %v3034 = vmax.f32 %v2977, %v2993
        %v3035 = vmax.f32 %v2979, %v2995
        %v3036 = vmax.f32 %v2981, %v2997
        %v3037 = vmax.f32 %v2998, %v3014
        %v3038 = vmax.f32 %v3000, %v3016
        %v3039 = vmax.f32 %v3002, %v3018
        %v3040 = vmax.f32 %v3004, %v3020
        %v3041 = vmax.f32 %v3006, %v3022
        %v3042 = vmax.f32 %v3008, %v3024
        %v3043 = vmax.f32 %v3010, %v3026
        %v3044 = vmax.f32 %v3012, %v3028
        %v3045 = vmax.f32 %v3029, %v3037
        %v3046 = vmax.f32 %v3030, %v3038
        %v3047 = vmax.f32 %v3031, %v3039
        %v3048 = vmax.f32 %v3032, %v3040
        %v3049 = vmax.f32 %v3033, %v3041
        %v3050 = vmax.f32 %v3034, %v3042
        %v3051 = vmax.f32 %v3035, %v3043
        %v3052 = vmax.f32 %v3036, %v3044
        %3053 = vst.msk [vmem:[#allocation2] sm:$0xff] %vm362, 0.0
        %3054 = vst.msk [vmem:[#allocation2 + $0x8] sm:$0x3] %vm365, 0.0
        %s3055 = scalar_lea.vmem [#allocation2], 216
        %3056 = vst.msk [vmem:[%s3055] sm:$0xff] %vm362, 0.0
        %3057 = vst.msk [vmem:[%s3055 + $0x8] sm:$0x3] %vm365, 0.0
        %3058 = vst.msk [vmem:[%s371] sm:$0x1] %vm372, 0.0
        %3059 = vst.msk [vmem:[%s371 + $0x18] sm:$0x1] %vm372, 0.0
        %3060 = vst.msk [vmem:[%s371 + $0x30] sm:$0x1] %vm372, 0.0
        %3061 = vst.msk [vmem:[%s371 + $0x48] sm:$0x1] %vm372, 0.0
        %3062 = vst.msk [vmem:[%s371 + $0x60] sm:$0x1] %vm372, 0.0
        %3063 = vst.msk [vmem:[%s371 + $0x78] sm:$0x1] %vm372, 0.0
        %3064 = vst.msk [vmem:[%s371 + $0x90] sm:$0x1] %vm372, 0.0
        %3065 = vst.msk [vmem:[%s371 + $0xa8] sm:$0x1] %vm372, 0.0
        %3066 = vst.msk [vmem:[%s371 + $0x9] sm:$0x1] %vm372, 0.0
        %3067 = vst.msk [vmem:[%s371 + $0x21] sm:$0x1] %vm372, 0.0
        %3068 = vst.msk [vmem:[%s371 + $0x39] sm:$0x1] %vm372, 0.0
        %3069 = vst.msk [vmem:[%s371 + $0x51] sm:$0x1] %vm372, 0.0
        %3070 = vst.msk [vmem:[%s371 + $0x69] sm:$0x1] %vm372, 0.0
        %3071 = vst.msk [vmem:[%s371 + $0x81] sm:$0x1] %vm372, 0.0
        %3072 = vst.msk [vmem:[%s371 + $0x99] sm:$0x1] %vm372, 0.0
        %3073 = vst.msk [vmem:[%s371 + $0xb1] sm:$0x1] %vm372, 0.0
        %3074 = vst.msk [vmem:[%s371 + $0x1] sm:$0xff] %vm362, %v3045
        %3075 = vst.msk [vmem:[%s371 + $0x19] sm:$0xff] %vm362, %v3046
        %3076 = vst.msk [vmem:[%s371 + $0x31] sm:$0xff] %vm362, %v3047
        %3077 = vst.msk [vmem:[%s371 + $0x49] sm:$0xff] %vm362, %v3048
        %3078 = vst.msk [vmem:[%s371 + $0x61] sm:$0xff] %vm362, %v3049
        %3079 = vst.msk [vmem:[%s371 + $0x79] sm:$0xff] %vm362, %v3050
        %3080 = vst.msk [vmem:[%s371 + $0x91] sm:$0xff] %vm362, %v3051
        %3081 = vst.msk [vmem:[%s371 + $0xa9] sm:$0xff] %vm362, %v3052
        %v3082 = vld [vmem:[#allocation2] sm:$0xff]
        %v3083 = vld [vmem:[#allocation2 + $0x18] sm:$0xff]
        %v3084 = vld [vmem:[#allocation2 + $0x30] sm:$0xff]
        %v3085 = vld [vmem:[#allocation2 + $0x48] sm:$0xff]
        %v3086 = vld [vmem:[#allocation2 + $0x60] sm:$0xff]
        %v3087 = vld [vmem:[#allocation2 + $0x78] sm:$0xff]
        %v3088 = vld [vmem:[#allocation2 + $0x90] sm:$0xff]
        %v3089 = vld [vmem:[#allocation2 + $0xa8] sm:$0xff]
        %v3090 = vld [vmem:[%s3] sm:$0xff]
        %v3091 = vld [vmem:[%s3 + $0x8] sm:$0xff]
        %v3092 = vld [vmem:[%s3 + $0x10] sm:$0xff]
        %v3093 = vld [vmem:[%s3 + $0x18] sm:$0xff]
        %v3094 = vld [vmem:[#allocation2 + $0x1] sm:$0xff]
        %v3095 = vld [vmem:[#allocation2 + $0x19] sm:$0xff]
        %v3096 = vld [vmem:[#allocation2 + $0x31] sm:$0xff]
        %v3097 = vld [vmem:[#allocation2 + $0x49] sm:$0xff]
        %v3098 = vld [vmem:[#allocation2 + $0x61] sm:$0xff]
        %v3099 = vld [vmem:[#allocation2 + $0x79] sm:$0xff]
        %v3100 = vld [vmem:[#allocation2 + $0x91] sm:$0xff]
        %v3101 = vld [vmem:[#allocation2 + $0xa9] sm:$0xff]
        %v3102 = vld [vmem:[%s3 + $0x20] sm:$0xff]
        %v3103 = vld [vmem:[%s3 + $0x28] sm:$0xff]
        %v3104 = vld [vmem:[%s3 + $0x30] sm:$0xff]
        %v3105 = vld [vmem:[%s3 + $0x38] sm:$0xff]
        %v3107 = vsel %vm362, %v3094, 0
        %v3110 = vsel %vm362, %v3095, 0
        %v3113 = vsel %vm362, %v3096, 0
        %v3116 = vsel %vm362, %v3097, 0
        %v3119 = vsel %vm362, %v3098, 0
        %v3122 = vsel %vm362, %v3099, 0
        %v3125 = vsel %vm362, %v3100, 0
        %v3128 = vsel %vm362, %v3101, 0
        %3130 = vmatpush.msra.mxu0 0.0
        %3131 = vmatpush.msra.mxu0 0.0
        %3132 = vmatpush.msra.mxu0 0.0
        %3133 = vmatpush.msra.mxu0 0.0
        %3134 = vmatpush.msra.mxu0 0.0
        %3135 = vmatpush.msra.mxu0 0.0
        %3136 = vmatpush.msra.mxu0 0.0
        %3137 = vmatpush.msra.mxu0 0.0
        %3138 = vmatpush.msra.mxu0 0.0
        %3139 = vmatpush.msra.mxu0 0.0
        %3140 = vmatpush.msra.mxu0 0.0
        %3141 = vmatpush.msra.mxu0 0.0
        %3142 = vmatpush.msra.mxu0 %v3105
        %3143 = vmatpush.msra.mxu0 %v3104
        %3144 = vmatpush.msra.mxu0 %v3103
        %3145 = vmatpush.msra.mxu0 %v3102
        %3146 = vmatmul.f32.gmra.mxu0 %v3107
        %v3147 = vpop.f32.mrf.mxu0
        %v3148 = vadd.f32 0.0, %v3147
        %3149 = vmatmul.f32.gmra.mxu0 %v3110
        %v3150 = vpop.f32.mrf.mxu0
        %v3151 = vadd.f32 0.0, %v3150
        %3152 = vmatmul.f32.gmra.mxu0 %v3113
        %v3153 = vpop.f32.mrf.mxu0
        %v3154 = vadd.f32 0.0, %v3153
        %3155 = vmatmul.f32.gmra.mxu0 %v3116
        %v3156 = vpop.f32.mrf.mxu0
        %v3157 = vadd.f32 0.0, %v3156
        %3158 = vmatmul.f32.gmra.mxu0 %v3119
        %v3159 = vpop.f32.mrf.mxu0
        %v3160 = vadd.f32 0.0, %v3159
        %3161 = vmatmul.f32.gmra.mxu0 %v3122
        %v3162 = vpop.f32.mrf.mxu0
        %v3163 = vadd.f32 0.0, %v3162
        %3164 = vmatmul.f32.gmra.mxu0 %v3125
        %v3165 = vpop.f32.mrf.mxu0
        %v3166 = vadd.f32 0.0, %v3165
        %3167 = vmatmul.f32.gmra.mxu0 %v3128
        %v3168 = vpop.f32.mrf.mxu0
        %v3169 = vadd.f32 0.0, %v3168
        %3170 = vdwg.mxu0
        %v3172 = vsel %vm362, %v3082, 0
        %v3175 = vsel %vm362, %v3083, 0
        %v3178 = vsel %vm362, %v3084, 0
        %v3181 = vsel %vm362, %v3085, 0
        %v3184 = vsel %vm362, %v3086, 0
        %v3187 = vsel %vm362, %v3087, 0
        %v3190 = vsel %vm362, %v3088, 0
        %v3193 = vsel %vm362, %v3089, 0
        %3195 = vmatpush.msra.mxu0 0.0
        %3196 = vmatpush.msra.mxu0 0.0
        %3197 = vmatpush.msra.mxu0 0.0
        %3198 = vmatpush.msra.mxu0 0.0
        %3199 = vmatpush.msra.mxu0 0.0
        %3200 = vmatpush.msra.mxu0 0.0
        %3201 = vmatpush.msra.mxu0 0.0
        %3202 = vmatpush.msra.mxu0 0.0
        %3203 = vmatpush.msra.mxu0 0.0
        %3204 = vmatpush.msra.mxu0 0.0
        %3205 = vmatpush.msra.mxu0 0.0
        %3206 = vmatpush.msra.mxu0 0.0
        %3207 = vmatpush.msra.mxu0 %v3093
        %3208 = vmatpush.msra.mxu0 %v3092
        %3209 = vmatpush.msra.mxu0 %v3091
        %3210 = vmatpush.msra.mxu0 %v3090
        %3211 = vmatmul.f32.gmra.mxu0 %v3172
        %v3212 = vpop.f32.mrf.mxu0
        %v3213 = vadd.f32 %v3148, %v3212
        %3214 = vmatmul.f32.gmra.mxu0 %v3175
        %v3215 = vpop.f32.mrf.mxu0
        %v3216 = vadd.f32 %v3151, %v3215
        %3217 = vmatmul.f32.gmra.mxu0 %v3178
        %v3218 = vpop.f32.mrf.mxu0
        %v3219 = vadd.f32 %v3154, %v3218
        %3220 = vmatmul.f32.gmra.mxu0 %v3181
        %v3221 = vpop.f32.mrf.mxu0
        %v3222 = vadd.f32 %v3157, %v3221
        %3223 = vmatmul.f32.gmra.mxu0 %v3184
        %v3224 = vpop.f32.mrf.mxu0
        %v3225 = vadd.f32 %v3160, %v3224
        %3226 = vmatmul.f32.gmra.mxu0 %v3187
        %v3227 = vpop.f32.mrf.mxu0
        %v3228 = vadd.f32 %v3163, %v3227
        %3229 = vmatmul.f32.gmra.mxu0 %v3190
        %v3230 = vpop.f32.mrf.mxu0
        %v3231 = vadd.f32 %v3166, %v3230
        %3232 = vmatmul.f32.gmra.mxu0 %v3193
        %v3233 = vpop.f32.mrf.mxu0
        %v3234 = vadd.f32 %v3169, %v3233
        %3235 = vdwg.mxu0
        %v3236 = vld [vmem:[#allocation2 + $0x2] sm:$0xff]
        %v3237 = vld [vmem:[#allocation2 + $0x1a] sm:$0xff]
        %v3238 = vld [vmem:[#allocation2 + $0x32] sm:$0xff]
        %v3239 = vld [vmem:[#allocation2 + $0x4a] sm:$0xff]
        %v3240 = vld [vmem:[#allocation2 + $0x62] sm:$0xff]
        %v3241 = vld [vmem:[#allocation2 + $0x7a] sm:$0xff]
        %v3242 = vld [vmem:[#allocation2 + $0x92] sm:$0xff]
        %v3243 = vld [vmem:[#allocation2 + $0xaa] sm:$0xff]
        %v3244 = vld [vmem:[%s3 + $0x40] sm:$0xff]
        %v3245 = vld [vmem:[%s3 + $0x48] sm:$0xff]
        %v3246 = vld [vmem:[%s3 + $0x50] sm:$0xff]
        %v3247 = vld [vmem:[%s3 + $0x58] sm:$0xff]
        %v3249 = vsel %vm362, %v3236, 0
        %v3252 = vsel %vm362, %v3237, 0
        %v3255 = vsel %vm362, %v3238, 0
        %v3258 = vsel %vm362, %v3239, 0
        %v3261 = vsel %vm362, %v3240, 0
        %v3264 = vsel %vm362, %v3241, 0
        %v3267 = vsel %vm362, %v3242, 0
        %v3270 = vsel %vm362, %v3243, 0
        %3272 = vmatpush.msra.mxu0 0.0
        %3273 = vmatpush.msra.mxu0 0.0
        %3274 = vmatpush.msra.mxu0 0.0
        %3275 = vmatpush.msra.mxu0 0.0
        %3276 = vmatpush.msra.mxu0 0.0
        %3277 = vmatpush.msra.mxu0 0.0
        %3278 = vmatpush.msra.mxu0 0.0
        %3279 = vmatpush.msra.mxu0 0.0
        %3280 = vmatpush.msra.mxu0 0.0
        %3281 = vmatpush.msra.mxu0 0.0
        %3282 = vmatpush.msra.mxu0 0.0
        %3283 = vmatpush.msra.mxu0 0.0
        %3284 = vmatpush.msra.mxu0 %v3247
        %3285 = vmatpush.msra.mxu0 %v3246
        %3286 = vmatpush.msra.mxu0 %v3245
        %3287 = vmatpush.msra.mxu0 %v3244
        %3288 = vmatmul.f32.gmra.mxu0 %v3249
        %v3289 = vpop.f32.mrf.mxu0
        %v3290 = vadd.f32 0.0, %v3289
        %3291 = vmatmul.f32.gmra.mxu0 %v3252
        %v3292 = vpop.f32.mrf.mxu0
        %v3293 = vadd.f32 0.0, %v3292
        %3294 = vmatmul.f32.gmra.mxu0 %v3255
        %v3295 = vpop.f32.mrf.mxu0
        %v3296 = vadd.f32 0.0, %v3295
        %3297 = vmatmul.f32.gmra.mxu0 %v3258
        %v3298 = vpop.f32.mrf.mxu0
        %v3299 = vadd.f32 0.0, %v3298
        %3300 = vmatmul.f32.gmra.mxu0 %v3261
        %v3301 = vpop.f32.mrf.mxu0
        %v3302 = vadd.f32 0.0, %v3301
        %3303 = vmatmul.f32.gmra.mxu0 %v3264
        %v3304 = vpop.f32.mrf.mxu0
        %v3305 = vadd.f32 0.0, %v3304
        %3306 = vmatmul.f32.gmra.mxu0 %v3267
        %v3307 = vpop.f32.mrf.mxu0
        %v3308 = vadd.f32 0.0, %v3307
        %3309 = vmatmul.f32.gmra.mxu0 %v3270
        %v3310 = vpop.f32.mrf.mxu0
        %v3311 = vadd.f32 0.0, %v3310
        %3312 = vdwg.mxu0
        %v3313 = vadd.f32 %v3213, %v3290
        %v3314 = vadd.f32 %v3216, %v3293
        %v3315 = vadd.f32 %v3219, %v3296
        %v3316 = vadd.f32 %v3222, %v3299
        %v3317 = vadd.f32 %v3225, %v3302
        %v3318 = vadd.f32 %v3228, %v3305
        %v3319 = vadd.f32 %v3231, %v3308
        %v3320 = vadd.f32 %v3234, %v3311
        %v3321 = vld [vmem:[%s371] sm:$0xff]
        %v3322 = vld [vmem:[%s371 + $0x18] sm:$0xff]
        %v3323 = vld [vmem:[%s371 + $0x30] sm:$0xff]
        %v3324 = vld [vmem:[%s371 + $0x48] sm:$0xff]
        %v3325 = vld [vmem:[%s371 + $0x60] sm:$0xff]
        %v3326 = vld [vmem:[%s371 + $0x78] sm:$0xff]
        %v3327 = vld [vmem:[%s371 + $0x90] sm:$0xff]
        %v3328 = vld [vmem:[%s371 + $0xa8] sm:$0xff]
        %v3329 = vld [vmem:[%s3 + $0x60] sm:$0xff]
        %v3330 = vld [vmem:[%s3 + $0x68] sm:$0xff]
        %v3331 = vld [vmem:[%s3 + $0x70] sm:$0xff]
        %v3332 = vld [vmem:[%s3 + $0x78] sm:$0xff]
        %v3334 = vsel %vm362, %v3321, 0
        %v3337 = vsel %vm362, %v3322, 0
        %v3340 = vsel %vm362, %v3323, 0
        %v3343 = vsel %vm362, %v3324, 0
        %v3346 = vsel %vm362, %v3325, 0
        %v3349 = vsel %vm362, %v3326, 0
        %v3352 = vsel %vm362, %v3327, 0
        %v3355 = vsel %vm362, %v3328, 0
        %3357 = vmatpush.msra.mxu0 0.0
        %3358 = vmatpush.msra.mxu0 0.0
        %3359 = vmatpush.msra.mxu0 0.0
        %3360 = vmatpush.msra.mxu0 0.0
        %3361 = vmatpush.msra.mxu0 0.0
        %3362 = vmatpush.msra.mxu0 0.0
        %3363 = vmatpush.msra.mxu0 0.0
        %3364 = vmatpush.msra.mxu0 0.0
        %3365 = vmatpush.msra.mxu0 0.0
        %3366 = vmatpush.msra.mxu0 0.0
        %3367 = vmatpush.msra.mxu0 0.0
        %3368 = vmatpush.msra.mxu0 0.0
        %3369 = vmatpush.msra.mxu0 %v3332
        %3370 = vmatpush.msra.mxu0 %v3331
        %3371 = vmatpush.msra.mxu0 %v3330
        %3372 = vmatpush.msra.mxu0 %v3329
        %3373 = vmatmul.f32.gmra.mxu0 %v3334
        %v3374 = vpop.f32.mrf.mxu0
        %v3375 = vadd.f32 0.0, %v3374
        %3376 = vmatmul.f32.gmra.mxu0 %v3337
        %v3377 = vpop.f32.mrf.mxu0
        %v3378 = vadd.f32 0.0, %v3377
        %3379 = vmatmul.f32.gmra.mxu0 %v3340
        %v3380 = vpop.f32.mrf.mxu0
        %v3381 = vadd.f32 0.0, %v3380
        %3382 = vmatmul.f32.gmra.mxu0 %v3343
        %v3383 = vpop.f32.mrf.mxu0
        %v3384 = vadd.f32 0.0, %v3383
        %3385 = vmatmul.f32.gmra.mxu0 %v3346
        %v3386 = vpop.f32.mrf.mxu0
        %v3387 = vadd.f32 0.0, %v3386
        %3388 = vmatmul.f32.gmra.mxu0 %v3349
        %v3389 = vpop.f32.mrf.mxu0
        %v3390 = vadd.f32 0.0, %v3389
        %3391 = vmatmul.f32.gmra.mxu0 %v3352
        %v3392 = vpop.f32.mrf.mxu0
        %v3393 = vadd.f32 0.0, %v3392
        %3394 = vmatmul.f32.gmra.mxu0 %v3355
        %v3395 = vpop.f32.mrf.mxu0
        %v3396 = vadd.f32 0.0, %v3395
        %3397 = vdwg.mxu0
        %v3398 = vadd.f32 %v3313, %v3375
        %v3399 = vadd.f32 %v3314, %v3378
        %v3400 = vadd.f32 %v3315, %v3381
        %v3401 = vadd.f32 %v3316, %v3384
        %v3402 = vadd.f32 %v3317, %v3387
        %v3403 = vadd.f32 %v3318, %v3390
        %v3404 = vadd.f32 %v3319, %v3393
        %v3405 = vadd.f32 %v3320, %v3396
        %v3406 = vld [vmem:[%s371 + $0x1] sm:$0xff]
        %v3407 = vld [vmem:[%s371 + $0x19] sm:$0xff]
        %v3408 = vld [vmem:[%s371 + $0x31] sm:$0xff]
        %v3409 = vld [vmem:[%s371 + $0x49] sm:$0xff]
        %v3410 = vld [vmem:[%s371 + $0x61] sm:$0xff]
        %v3411 = vld [vmem:[%s371 + $0x79] sm:$0xff]
        %v3412 = vld [vmem:[%s371 + $0x91] sm:$0xff]
        %v3413 = vld [vmem:[%s371 + $0xa9] sm:$0xff]
        %v3414 = vld [vmem:[%s3 + $0x80] sm:$0xff]
        %v3415 = vld [vmem:[%s3 + $0x88] sm:$0xff]
        %v3416 = vld [vmem:[%s3 + $0x90] sm:$0xff]
        %v3417 = vld [vmem:[%s3 + $0x98] sm:$0xff]
        %v3419 = vsel %vm362, %v3406, 0
        %v3422 = vsel %vm362, %v3407, 0
        %v3425 = vsel %vm362, %v3408, 0
        %v3428 = vsel %vm362, %v3409, 0
        %v3431 = vsel %vm362, %v3410, 0
        %v3434 = vsel %vm362, %v3411, 0
        %v3437 = vsel %vm362, %v3412, 0
        %v3440 = vsel %vm362, %v3413, 0
        %3442 = vmatpush.msra.mxu0 0.0
        %3443 = vmatpush.msra.mxu0 0.0
        %3444 = vmatpush.msra.mxu0 0.0
        %3445 = vmatpush.msra.mxu0 0.0
        %3446 = vmatpush.msra.mxu0 0.0
        %3447 = vmatpush.msra.mxu0 0.0
        %3448 = vmatpush.msra.mxu0 0.0
        %3449 = vmatpush.msra.mxu0 0.0
        %3450 = vmatpush.msra.mxu0 0.0
        %3451 = vmatpush.msra.mxu0 0.0
        %3452 = vmatpush.msra.mxu0 0.0
        %3453 = vmatpush.msra.mxu0 0.0
        %3454 = vmatpush.msra.mxu0 %v3417
        %3455 = vmatpush.msra.mxu0 %v3416
        %3456 = vmatpush.msra.mxu0 %v3415
        %3457 = vmatpush.msra.mxu0 %v3414
        %3458 = vmatmul.f32.gmra.mxu0 %v3419
        %v3459 = vpop.f32.mrf.mxu0
        %v3460 = vadd.f32 0.0, %v3459
        %3461 = vmatmul.f32.gmra.mxu0 %v3422
        %v3462 = vpop.f32.mrf.mxu0
        %v3463 = vadd.f32 0.0, %v3462
        %3464 = vmatmul.f32.gmra.mxu0 %v3425
        %v3465 = vpop.f32.mrf.mxu0
        %v3466 = vadd.f32 0.0, %v3465
        %3467 = vmatmul.f32.gmra.mxu0 %v3428
        %v3468 = vpop.f32.mrf.mxu0
        %v3469 = vadd.f32 0.0, %v3468
        %3470 = vmatmul.f32.gmra.mxu0 %v3431
        %v3471 = vpop.f32.mrf.mxu0
        %v3472 = vadd.f32 0.0, %v3471
        %3473 = vmatmul.f32.gmra.mxu0 %v3434
        %v3474 = vpop.f32.mrf.mxu0
        %v3475 = vadd.f32 0.0, %v3474
        %3476 = vmatmul.f32.gmra.mxu0 %v3437
        %v3477 = vpop.f32.mrf.mxu0
        %v3478 = vadd.f32 0.0, %v3477
        %3479 = vmatmul.f32.gmra.mxu0 %v3440
        %v3480 = vpop.f32.mrf.mxu0
        %v3481 = vadd.f32 0.0, %v3480
        %3482 = vdwg.mxu0
        %v3483 = vadd.f32 %v3398, %v3460
        %v3484 = vadd.f32 %v3399, %v3463
        %v3485 = vadd.f32 %v3400, %v3466
        %v3486 = vadd.f32 %v3401, %v3469
        %v3487 = vadd.f32 %v3402, %v3472
        %v3488 = vadd.f32 %v3403, %v3475
        %v3489 = vadd.f32 %v3404, %v3478
        %v3490 = vadd.f32 %v3405, %v3481
        %v3491 = vld [vmem:[%s371 + $0x2] sm:$0xff]
        %v3492 = vld [vmem:[%s371 + $0x1a] sm:$0xff]
        %v3493 = vld [vmem:[%s371 + $0x32] sm:$0xff]
        %v3494 = vld [vmem:[%s371 + $0x4a] sm:$0xff]
        %v3495 = vld [vmem:[%s371 + $0x62] sm:$0xff]
        %v3496 = vld [vmem:[%s371 + $0x7a] sm:$0xff]
        %v3497 = vld [vmem:[%s371 + $0x92] sm:$0xff]
        %v3498 = vld [vmem:[%s371 + $0xaa] sm:$0xff]
        %v3499 = vld [vmem:[%s3 + $0xa0] sm:$0xff]
        %v3500 = vld [vmem:[%s3 + $0xa8] sm:$0xff]
        %v3501 = vld [vmem:[%s3 + $0xb0] sm:$0xff]
        %v3502 = vld [vmem:[%s3 + $0xb8] sm:$0xff]
        %v3504 = vsel %vm362, %v3491, 0
        %v3507 = vsel %vm362, %v3492, 0
        %v3510 = vsel %vm362, %v3493, 0
        %v3513 = vsel %vm362, %v3494, 0
        %v3516 = vsel %vm362, %v3495, 0
        %v3519 = vsel %vm362, %v3496, 0
        %v3522 = vsel %vm362, %v3497, 0
        %v3525 = vsel %vm362, %v3498, 0
        %3527 = vmatpush.msra.mxu0 0.0
        %3528 = vmatpush.msra.mxu0 0.0
        %3529 = vmatpush.msra.mxu0 0.0
        %3530 = vmatpush.msra.mxu0 0.0
        %3531 = vmatpush.msra.mxu0 0.0
        %3532 = vmatpush.msra.mxu0 0.0
        %3533 = vmatpush.msra.mxu0 0.0
        %3534 = vmatpush.msra.mxu0 0.0
        %3535 = vmatpush.msra.mxu0 0.0
        %3536 = vmatpush.msra.mxu0 0.0
        %3537 = vmatpush.msra.mxu0 0.0
        %3538 = vmatpush.msra.mxu0 0.0
        %3539 = vmatpush.msra.mxu0 %v3502
        %3540 = vmatpush.msra.mxu0 %v3501
        %3541 = vmatpush.msra.mxu0 %v3500
        %3542 = vmatpush.msra.mxu0 %v3499
        %3543 = vmatmul.f32.gmra.mxu0 %v3504
        %v3544 = vpop.f32.mrf.mxu0
        %v3545 = vadd.f32 0.0, %v3544
        %3546 = vmatmul.f32.gmra.mxu0 %v3507
        %v3547 = vpop.f32.mrf.mxu0
        %v3548 = vadd.f32 0.0, %v3547
        %3549 = vmatmul.f32.gmra.mxu0 %v3510
        %v3550 = vpop.f32.mrf.mxu0
        %v3551 = vadd.f32 0.0, %v3550
        %3552 = vmatmul.f32.gmra.mxu0 %v3513
        %v3553 = vpop.f32.mrf.mxu0
        %v3554 = vadd.f32 0.0, %v3553
        %3555 = vmatmul.f32.gmra.mxu0 %v3516
        %v3556 = vpop.f32.mrf.mxu0
        %v3557 = vadd.f32 0.0, %v3556
        %3558 = vmatmul.f32.gmra.mxu0 %v3519
        %v3559 = vpop.f32.mrf.mxu0
        %v3560 = vadd.f32 0.0, %v3559
        %3561 = vmatmul.f32.gmra.mxu0 %v3522
        %v3562 = vpop.f32.mrf.mxu0
        %v3563 = vadd.f32 0.0, %v3562
        %3564 = vmatmul.f32.gmra.mxu0 %v3525
        %v3565 = vpop.f32.mrf.mxu0
        %v3566 = vadd.f32 0.0, %v3565
        %3567 = vdwg.mxu0
        %v3568 = vadd.f32 %v3483, %v3545
        %v3569 = vadd.f32 %v3484, %v3548
        %v3570 = vadd.f32 %v3485, %v3551
        %v3571 = vadd.f32 %v3486, %v3554
        %v3572 = vadd.f32 %v3487, %v3557
        %v3573 = vadd.f32 %v3488, %v3560
        %v3574 = vadd.f32 %v3489, %v3563
        %v3575 = vadd.f32 %v3490, %v3566
        %v3576 = vld [vmem:[%s2035] sm:$0xff]
        %v3577 = vld [vmem:[%s2035 + $0x18] sm:$0xff]
        %v3578 = vld [vmem:[%s2035 + $0x30] sm:$0xff]
        %v3579 = vld [vmem:[%s2035 + $0x48] sm:$0xff]
        %v3580 = vld [vmem:[%s2035 + $0x60] sm:$0xff]
        %v3581 = vld [vmem:[%s2035 + $0x78] sm:$0xff]
        %v3582 = vld [vmem:[%s2035 + $0x90] sm:$0xff]
        %v3583 = vld [vmem:[%s2035 + $0xa8] sm:$0xff]
        %v3584 = vld [vmem:[%s3 + $0xc0] sm:$0xff]
        %v3585 = vld [vmem:[%s3 + $0xc8] sm:$0xff]
        %v3586 = vld [vmem:[%s3 + $0xd0] sm:$0xff]
        %v3587 = vld [vmem:[%s3 + $0xd8] sm:$0xff]
        %v3589 = vsel %vm362, %v3576, 0
        %v3592 = vsel %vm362, %v3577, 0
        %v3595 = vsel %vm362, %v3578, 0
        %v3598 = vsel %vm362, %v3579, 0
        %v3601 = vsel %vm362, %v3580, 0
        %v3604 = vsel %vm362, %v3581, 0
        %v3607 = vsel %vm362, %v3582, 0
        %v3610 = vsel %vm362, %v3583, 0
        %3612 = vmatpush.msra.mxu0 0.0
        %3613 = vmatpush.msra.mxu0 0.0
        %3614 = vmatpush.msra.mxu0 0.0
        %3615 = vmatpush.msra.mxu0 0.0
        %3616 = vmatpush.msra.mxu0 0.0
        %3617 = vmatpush.msra.mxu0 0.0
        %3618 = vmatpush.msra.mxu0 0.0
        %3619 = vmatpush.msra.mxu0 0.0
        %3620 = vmatpush.msra.mxu0 0.0
        %3621 = vmatpush.msra.mxu0 0.0
        %3622 = vmatpush.msra.mxu0 0.0
        %3623 = vmatpush.msra.mxu0 0.0
        %3624 = vmatpush.msra.mxu0 %v3587
        %3625 = vmatpush.msra.mxu0 %v3586
        %3626 = vmatpush.msra.mxu0 %v3585
        %3627 = vmatpush.msra.mxu0 %v3584
        %3628 = vmatmul.f32.gmra.mxu0 %v3589
        %v3629 = vpop.f32.mrf.mxu0
        %v3630 = vadd.f32 0.0, %v3629
        %3631 = vmatmul.f32.gmra.mxu0 %v3592
        %v3632 = vpop.f32.mrf.mxu0
        %v3633 = vadd.f32 0.0, %v3632
        %3634 = vmatmul.f32.gmra.mxu0 %v3595
        %v3635 = vpop.f32.mrf.mxu0
        %v3636 = vadd.f32 0.0, %v3635
        %3637 = vmatmul.f32.gmra.mxu0 %v3598
        %v3638 = vpop.f32.mrf.mxu0
        %v3639 = vadd.f32 0.0, %v3638
        %3640 = vmatmul.f32.gmra.mxu0 %v3601
        %v3641 = vpop.f32.mrf.mxu0
        %v3642 = vadd.f32 0.0, %v3641
        %3643 = vmatmul.f32.gmra.mxu0 %v3604
        %v3644 = vpop.f32.mrf.mxu0
        %v3645 = vadd.f32 0.0, %v3644
        %3646 = vmatmul.f32.gmra.mxu0 %v3607
        %v3647 = vpop.f32.mrf.mxu0
        %v3648 = vadd.f32 0.0, %v3647
        %3649 = vmatmul.f32.gmra.mxu0 %v3610
        %v3650 = vpop.f32.mrf.mxu0
        %v3651 = vadd.f32 0.0, %v3650
        %3652 = vdwg.mxu0
        %v3653 = vadd.f32 %v3568, %v3630
        %v3654 = vadd.f32 %v3569, %v3633
        %v3655 = vadd.f32 %v3570, %v3636
        %v3656 = vadd.f32 %v3571, %v3639
        %v3657 = vadd.f32 %v3572, %v3642
        %v3658 = vadd.f32 %v3573, %v3645
        %v3659 = vadd.f32 %v3574, %v3648
        %v3660 = vadd.f32 %v3575, %v3651
        %v3661 = vld [vmem:[%s2035 + $0x1] sm:$0xff]
        %v3662 = vld [vmem:[%s2035 + $0x19] sm:$0xff]
        %v3663 = vld [vmem:[%s2035 + $0x31] sm:$0xff]
        %v3664 = vld [vmem:[%s2035 + $0x49] sm:$0xff]
        %v3665 = vld [vmem:[%s2035 + $0x61] sm:$0xff]
        %v3666 = vld [vmem:[%s2035 + $0x79] sm:$0xff]
        %v3667 = vld [vmem:[%s2035 + $0x91] sm:$0xff]
        %v3668 = vld [vmem:[%s2035 + $0xa9] sm:$0xff]
        %v3669 = vld [vmem:[%s3 + $0xe0] sm:$0xff]
        %v3670 = vld [vmem:[%s3 + $0xe8] sm:$0xff]
        %v3671 = vld [vmem:[%s3 + $0xf0] sm:$0xff]
        %v3672 = vld [vmem:[%s3 + $0xf8] sm:$0xff]
        %v3674 = vsel %vm362, %v3661, 0
        %v3677 = vsel %vm362, %v3662, 0
        %v3680 = vsel %vm362, %v3663, 0
        %v3683 = vsel %vm362, %v3664, 0
        %v3686 = vsel %vm362, %v3665, 0
        %v3689 = vsel %vm362, %v3666, 0
        %v3692 = vsel %vm362, %v3667, 0
        %v3695 = vsel %vm362, %v3668, 0
        %3697 = vmatpush.msra.mxu0 0.0
        %3698 = vmatpush.msra.mxu0 0.0
        %3699 = vmatpush.msra.mxu0 0.0
        %3700 = vmatpush.msra.mxu0 0.0
        %3701 = vmatpush.msra.mxu0 0.0
        %3702 = vmatpush.msra.mxu0 0.0
        %3703 = vmatpush.msra.mxu0 0.0
        %3704 = vmatpush.msra.mxu0 0.0
        %3705 = vmatpush.msra.mxu0 0.0
        %3706 = vmatpush.msra.mxu0 0.0
        %3707 = vmatpush.msra.mxu0 0.0
        %3708 = vmatpush.msra.mxu0 0.0
        %3709 = vmatpush.msra.mxu0 %v3672
        %3710 = vmatpush.msra.mxu0 %v3671
        %3711 = vmatpush.msra.mxu0 %v3670
        %3712 = vmatpush.msra.mxu0 %v3669
        %3713 = vmatmul.f32.gmra.mxu0 %v3674
        %v3714 = vpop.f32.mrf.mxu0
        %v3715 = vadd.f32 0.0, %v3714
        %3716 = vmatmul.f32.gmra.mxu0 %v3677
        %v3717 = vpop.f32.mrf.mxu0
        %v3718 = vadd.f32 0.0, %v3717
        %3719 = vmatmul.f32.gmra.mxu0 %v3680
        %v3720 = vpop.f32.mrf.mxu0
        %v3721 = vadd.f32 0.0, %v3720
        %3722 = vmatmul.f32.gmra.mxu0 %v3683
        %v3723 = vpop.f32.mrf.mxu0
        %v3724 = vadd.f32 0.0, %v3723
        %3725 = vmatmul.f32.gmra.mxu0 %v3686
        %v3726 = vpop.f32.mrf.mxu0
        %v3727 = vadd.f32 0.0, %v3726
        %3728 = vmatmul.f32.gmra.mxu0 %v3689
        %v3729 = vpop.f32.mrf.mxu0
        %v3730 = vadd.f32 0.0, %v3729
        %3731 = vmatmul.f32.gmra.mxu0 %v3692
        %v3732 = vpop.f32.mrf.mxu0
        %v3733 = vadd.f32 0.0, %v3732
        %3734 = vmatmul.f32.gmra.mxu0 %v3695
        %v3735 = vpop.f32.mrf.mxu0
        %v3736 = vadd.f32 0.0, %v3735
        %3737 = vdwg.mxu0
        %v3738 = vadd.f32 %v3653, %v3715
        %v3739 = vadd.f32 %v3654, %v3718
        %v3740 = vadd.f32 %v3655, %v3721
        %v3741 = vadd.f32 %v3656, %v3724
        %v3742 = vadd.f32 %v3657, %v3727
        %v3743 = vadd.f32 %v3658, %v3730
        %v3744 = vadd.f32 %v3659, %v3733
        %v3745 = vadd.f32 %v3660, %v3736
        %v3746 = vld [vmem:[%s2035 + $0x2] sm:$0xff]
        %v3747 = vld [vmem:[%s2035 + $0x1a] sm:$0xff]
        %v3748 = vld [vmem:[%s2035 + $0x32] sm:$0xff]
        %v3749 = vld [vmem:[%s2035 + $0x4a] sm:$0xff]
        %v3750 = vld [vmem:[%s2035 + $0x62] sm:$0xff]
        %v3751 = vld [vmem:[%s2035 + $0x7a] sm:$0xff]
        %v3752 = vld [vmem:[%s2035 + $0x92] sm:$0xff]
        %v3753 = vld [vmem:[%s2035 + $0xaa] sm:$0xff]
        %v3754 = vld [vmem:[%s3 + $0x100] sm:$0xff]
        %v3755 = vld [vmem:[%s3 + $0x108] sm:$0xff]
        %v3756 = vld [vmem:[%s3 + $0x110] sm:$0xff]
        %v3757 = vld [vmem:[%s3 + $0x118] sm:$0xff]
        %v3759 = vsel %vm362, %v3746, 0
        %v3762 = vsel %vm362, %v3747, 0
        %v3765 = vsel %vm362, %v3748, 0
        %v3768 = vsel %vm362, %v3749, 0
        %v3771 = vsel %vm362, %v3750, 0
        %v3774 = vsel %vm362, %v3751, 0
        %v3777 = vsel %vm362, %v3752, 0
        %v3780 = vsel %vm362, %v3753, 0
        %3782 = vmatpush.msra.mxu0 0.0
        %3783 = vmatpush.msra.mxu0 0.0
        %3784 = vmatpush.msra.mxu0 0.0
        %3785 = vmatpush.msra.mxu0 0.0
        %3786 = vmatpush.msra.mxu0 0.0
        %3787 = vmatpush.msra.mxu0 0.0
        %3788 = vmatpush.msra.mxu0 0.0
        %3789 = vmatpush.msra.mxu0 0.0
        %3790 = vmatpush.msra.mxu0 0.0
        %3791 = vmatpush.msra.mxu0 0.0
        %3792 = vmatpush.msra.mxu0 0.0
        %3793 = vmatpush.msra.mxu0 0.0
        %3794 = vmatpush.msra.mxu0 %v3757
        %3795 = vmatpush.msra.mxu0 %v3756
        %3796 = vmatpush.msra.mxu0 %v3755
        %3797 = vmatpush.msra.mxu0 %v3754
        %3798 = vmatmul.f32.gmra.mxu0 %v3759
        %v3799 = vpop.f32.mrf.mxu0
        %v3800 = vadd.f32 0.0, %v3799
        %3801 = vmatmul.f32.gmra.mxu0 %v3762
        %v3802 = vpop.f32.mrf.mxu0
        %v3803 = vadd.f32 0.0, %v3802
        %3804 = vmatmul.f32.gmra.mxu0 %v3765
        %v3805 = vpop.f32.mrf.mxu0
        %v3806 = vadd.f32 0.0, %v3805
        %3807 = vmatmul.f32.gmra.mxu0 %v3768
        %v3808 = vpop.f32.mrf.mxu0
        %v3809 = vadd.f32 0.0, %v3808
        %3810 = vmatmul.f32.gmra.mxu0 %v3771
        %v3811 = vpop.f32.mrf.mxu0
        %v3812 = vadd.f32 0.0, %v3811
        %3813 = vmatmul.f32.gmra.mxu0 %v3774
        %v3814 = vpop.f32.mrf.mxu0
        %v3815 = vadd.f32 0.0, %v3814
        %3816 = vmatmul.f32.gmra.mxu0 %v3777
        %v3817 = vpop.f32.mrf.mxu0
        %v3818 = vadd.f32 0.0, %v3817
        %3819 = vmatmul.f32.gmra.mxu0 %v3780
        %v3820 = vpop.f32.mrf.mxu0
        %v3821 = vadd.f32 0.0, %v3820
        %3822 = vdwg.mxu0
        %v3823 = vadd.f32 %v3738, %v3800
        %v3824 = vadd.f32 %v3739, %v3803
        %v3825 = vadd.f32 %v3740, %v3806
        %v3826 = vadd.f32 %v3741, %v3809
        %v3827 = vadd.f32 %v3742, %v3812
        %v3828 = vadd.f32 %v3743, %v3815
        %v3829 = vadd.f32 %v3744, %v3818
        %v3830 = vadd.f32 %v3745, %v3821
        %v3831 = vld [vmem:[%s4] sm:$0x1]
        %v3833 = vperm.slane %v3831, 0
        %v3835 = vadd.f32 %v3823, %v3833
        %v3836 = vadd.f32 %v3824, %v3833
        %v3837 = vadd.f32 %v3825, %v3833
        %v3838 = vadd.f32 %v3826, %v3833
        %v3839 = vadd.f32 %v3827, %v3833
        %v3840 = vadd.f32 %v3828, %v3833
        %v3841 = vadd.f32 %v3829, %v3833
        %v3842 = vadd.f32 %v3830, %v3833
        %v3843 = vmax.f32 %v3835, 0.0
        %v3844 = vmax.f32 %v3836, 0.0
        %v3845 = vmax.f32 %v3837, 0.0
        %v3846 = vmax.f32 %v3838, 0.0
        %v3847 = vmax.f32 %v3839, 0.0
        %v3848 = vmax.f32 %v3840, 0.0
        %v3849 = vmax.f32 %v3841, 0.0
        %v3850 = vmax.f32 %v3842, 0.0
        %3851 = vst.msk [vmem:[#allocation2] sm:$0xff] %vm362, %v3843
        %3852 = vst.msk [vmem:[#allocation2 + $0x18] sm:$0xff] %vm362, %v3844
        %3853 = vst.msk [vmem:[#allocation2 + $0x30] sm:$0xff] %vm362, %v3845
        %3854 = vst.msk [vmem:[#allocation2 + $0x48] sm:$0xff] %vm362, %v3846
        %3855 = vst.msk [vmem:[#allocation2 + $0x60] sm:$0xff] %vm362, %v3847
        %3856 = vst.msk [vmem:[#allocation2 + $0x78] sm:$0xff] %vm362, %v3848
        %3857 = vst.msk [vmem:[#allocation2 + $0x90] sm:$0xff] %vm362, %v3849
        %3858 = vst.msk [vmem:[#allocation2 + $0xa8] sm:$0xff] %vm362, %v3850
        %v3859 = vld [vmem:[#allocation2] ss:$2 sm:$0xf]
        %v3860 = vld [vmem:[%s2968] ss:$2 sm:$0xf]
        %v3861 = vld [vmem:[%s2970] ss:$2 sm:$0xf]
        %v3862 = vld [vmem:[%s2972] ss:$2 sm:$0xf]
        %v3863 = vld [vmem:[%s2982] ss:$2 sm:$0xf]
        %v3864 = vld [vmem:[%s2984] ss:$2 sm:$0xf]
        %v3865 = vld [vmem:[%s2986] ss:$2 sm:$0xf]
        %v3866 = vld [vmem:[%s2988] ss:$2 sm:$0xf]
        %v3867 = vld [vmem:[%s371] ss:$2 sm:$0xf]
        %v3868 = vld [vmem:[%s2999] ss:$2 sm:$0xf]
        %v3869 = vld [vmem:[%s3001] ss:$2 sm:$0xf]
        %v3870 = vld [vmem:[%s3003] ss:$2 sm:$0xf]
        %v3871 = vld [vmem:[%s3013] ss:$2 sm:$0xf]
        %v3872 = vld [vmem:[%s3015] ss:$2 sm:$0xf]
        %v3873 = vld [vmem:[%s3017] ss:$2 sm:$0xf]
        %v3874 = vld [vmem:[%s3019] ss:$2 sm:$0xf]
        %v3875 = vmax.f32 %v3859, %v3863
        %v3876 = vmax.f32 %v3860, %v3864
        %v3877 = vmax.f32 %v3861, %v3865
        %v3878 = vmax.f32 %v3862, %v3866
        %v3879 = vmax.f32 %v3867, %v3871
        %v3880 = vmax.f32 %v3868, %v3872
        %v3881 = vmax.f32 %v3869, %v3873
        %v3882 = vmax.f32 %v3870, %v3874
        %v3883 = vmax.f32 %v3875, %v3879
        %v3884 = vmax.f32 %v3876, %v3880
        %v3885 = vmax.f32 %v3877, %v3881
        %v3886 = vmax.f32 %v3878, %v3882
        %vm3887 = vcmask 259072
        %3888 = vst.msk [vmem:[#allocation2] sm:$0x3f] %vm3887, 0.0
        %s3889 = scalar_lea.vmem [#allocation2], 120
        %3890 = vst.msk [vmem:[%s3889] sm:$0x3f] %vm3887, 0.0
        %3891 = vst.msk [vmem:[%s371] sm:$0x1] %vm372, 0.0
        %3892 = vst.msk [vmem:[%s371 + $0x18] sm:$0x1] %vm372, 0.0
        %3893 = vst.msk [vmem:[%s371 + $0x30] sm:$0x1] %vm372, 0.0
        %3894 = vst.msk [vmem:[%s371 + $0x48] sm:$0x1] %vm372, 0.0
        %3895 = vst.msk [vmem:[%s371 + $0x5] sm:$0x1] %vm372, 0.0
        %3896 = vst.msk [vmem:[%s371 + $0x1d] sm:$0x1] %vm372, 0.0
        %3897 = vst.msk [vmem:[%s371 + $0x35] sm:$0x1] %vm372, 0.0
        %3898 = vst.msk [vmem:[%s371 + $0x4d] sm:$0x1] %vm372, 0.0
        %vm3899 = vcmask 257024
        %3900 = vst.msk [vmem:[%s371 + $0x1] sm:$0xf] %vm3899, %v3883
        %3901 = vst.msk [vmem:[%s371 + $0x19] sm:$0xf] %vm3899, %v3884
        %3902 = vst.msk [vmem:[%s371 + $0x31] sm:$0xf] %vm3899, %v3885
        %3903 = vst.msk [vmem:[%s371 + $0x49] sm:$0xf] %vm3899, %v3886
        %v3904 = vld [vmem:[#allocation2] sm:$0xf]
        %v3905 = vld [vmem:[#allocation2 + $0x18] sm:$0xf]
        %v3906 = vld [vmem:[#allocation2 + $0x30] sm:$0xf]
        %v3907 = vld [vmem:[#allocation2 + $0x48] sm:$0xf]
        %v3908 = vld [vmem:[%s5] sm:$0xff]
        %v3909 = vld [vmem:[%s5 + $0x8] sm:$0xff]
        %v3910 = vld [vmem:[%s5 + $0x10] sm:$0xff]
        %v3911 = vld [vmem:[%s5 + $0x18] sm:$0xff]
        %v3912 = vld [vmem:[#allocation2 + $0x1] sm:$0xf]
        %v3913 = vld [vmem:[#allocation2 + $0x19] sm:$0xf]
        %v3914 = vld [vmem:[#allocation2 + $0x31] sm:$0xf]
        %v3915 = vld [vmem:[#allocation2 + $0x49] sm:$0xf]
        %v3916 = vld [vmem:[%s5 + $0x20] sm:$0xff]
        %v3917 = vld [vmem:[%s5 + $0x28] sm:$0xff]
        %v3918 = vld [vmem:[%s5 + $0x30] sm:$0xff]
        %v3919 = vld [vmem:[%s5 + $0x38] sm:$0xff]
        %3924 = vst [vmem:[#allocation1] ss:$2 sm:$0xff] %v3912
        %s3925 = scalar_lea.vmem [#allocation1], 1
        %3926 = vst [vmem:[%s3925] ss:$2 sm:$0xff] %v3913
        %s3927 = scalar_lea.vmem [#allocation1], 16
        %3928 = vst [vmem:[%s3927] ss:$2 sm:$0xff] %v3914
        %s3929 = scalar_lea.vmem [#allocation1], 17
        %3930 = vst [vmem:[%s3929] ss:$2 sm:$0xff] %v3915
        %v3931 = vld.sshfl [vmem:[#allocation1] sm:$0xff pattern:$0x75316420]
        %v3932 = vld.sshfl [vmem:[#allocation1 + $0x10] sm:$0xff pattern:$0x75316420]
        %v3933 = vsel %vm362, %v3931, 0
        %v3935 = vsel %vm362, %v3932, 0
        %3937 = vmatpush.msra.mxu0 0.0
        %3938 = vmatpush.msra.mxu0 0.0
        %3939 = vmatpush.msra.mxu0 0.0
        %3940 = vmatpush.msra.mxu0 0.0
        %3941 = vmatpush.msra.mxu0 0.0
        %3942 = vmatpush.msra.mxu0 0.0
        %3943 = vmatpush.msra.mxu0 0.0
        %3944 = vmatpush.msra.mxu0 0.0
        %3945 = vmatpush.msra.mxu0 0.0
        %3946 = vmatpush.msra.mxu0 0.0
        %3947 = vmatpush.msra.mxu0 0.0
        %3948 = vmatpush.msra.mxu0 0.0
        %3949 = vmatpush.msra.mxu0 %v3919
        %3950 = vmatpush.msra.mxu0 %v3918
        %3951 = vmatpush.msra.mxu0 %v3917
        %3952 = vmatpush.msra.mxu0 %v3916
        %3953 = vmatmul.f32.gmra.mxu0 %v3933
        %v3954 = vpop.f32.mrf.mxu0
        %v3955 = vadd.f32 0.0, %v3954
        %3956 = vmatmul.f32.gmra.mxu0 %v3935
        %v3957 = vpop.f32.mrf.mxu0
        %v3958 = vadd.f32 0.0, %v3957
        %3959 = vdwg.mxu0
        %3964 = vst [vmem:[#allocation1] ss:$2 sm:$0xff] %v3904
        %s3965 = scalar_lea.vmem [#allocation1], 1
        %3966 = vst [vmem:[%s3965] ss:$2 sm:$0xff] %v3905
        %s3967 = scalar_lea.vmem [#allocation1], 16
        %3968 = vst [vmem:[%s3967] ss:$2 sm:$0xff] %v3906
        %s3969 = scalar_lea.vmem [#allocation1], 17
        %3970 = vst [vmem:[%s3969] ss:$2 sm:$0xff] %v3907
        %v3971 = vld.sshfl [vmem:[#allocation1] sm:$0xff pattern:$0x75316420]
        %v3972 = vld.sshfl [vmem:[#allocation1 + $0x10] sm:$0xff pattern:$0x75316420]
        %v3973 = vsel %vm362, %v3971, 0
        %v3975 = vsel %vm362, %v3972, 0
        %3977 = vmatpush.msra.mxu0 0.0
        %3978 = vmatpush.msra.mxu0 0.0
        %3979 = vmatpush.msra.mxu0 0.0
        %3980 = vmatpush.msra.mxu0 0.0
        %3981 = vmatpush.msra.mxu0 0.0
        %3982 = vmatpush.msra.mxu0 0.0
        %3983 = vmatpush.msra.mxu0 0.0
        %3984 = vmatpush.msra.mxu0 0.0
        %3985 = vmatpush.msra.mxu0 0.0
        %3986 = vmatpush.msra.mxu0 0.0
        %3987 = vmatpush.msra.mxu0 0.0
        %3988 = vmatpush.msra.mxu0 0.0
        %3989 = vmatpush.msra.mxu0 %v3911
        %3990 = vmatpush.msra.mxu0 %v3910
        %3991 = vmatpush.msra.mxu0 %v3909
        %3992 = vmatpush.msra.mxu0 %v3908
        %3993 = vmatmul.f32.gmra.mxu0 %v3973
        %v3994 = vpop.f32.mrf.mxu0
        %v3995 = vadd.f32 %v3955, %v3994
        %3996 = vmatmul.f32.gmra.mxu0 %v3975
        %v3997 = vpop.f32.mrf.mxu0
        %v3998 = vadd.f32 %v3958, %v3997
        %3999 = vdwg.mxu0
        %v4000 = vld [vmem:[#allocation2 + $0x2] sm:$0xf]
        %v4001 = vld [vmem:[#allocation2 + $0x1a] sm:$0xf]
        %v4002 = vld [vmem:[#allocation2 + $0x32] sm:$0xf]
        %v4003 = vld [vmem:[#allocation2 + $0x4a] sm:$0xf]
        %v4004 = vld [vmem:[%s5 + $0x40] sm:$0xff]
        %v4005 = vld [vmem:[%s5 + $0x48] sm:$0xff]
        %v4006 = vld [vmem:[%s5 + $0x50] sm:$0xff]
        %v4007 = vld [vmem:[%s5 + $0x58] sm:$0xff]
        %4012 = vst [vmem:[#allocation1] ss:$2 sm:$0xff] %v4000
        %s4013 = scalar_lea.vmem [#allocation1], 1
        %4014 = vst [vmem:[%s4013] ss:$2 sm:$0xff] %v4001
        %s4015 = scalar_lea.vmem [#allocation1], 16
        %4016 = vst [vmem:[%s4015] ss:$2 sm:$0xff] %v4002
        %s4017 = scalar_lea.vmem [#allocation1], 17
        %4018 = vst [vmem:[%s4017] ss:$2 sm:$0xff] %v4003
        %v4019 = vld.sshfl [vmem:[#allocation1] sm:$0xff pattern:$0x75316420]
        %v4020 = vld.sshfl [vmem:[#allocation1 + $0x10] sm:$0xff pattern:$0x75316420]
        %v4021 = vsel %vm362, %v4019, 0
        %v4023 = vsel %vm362, %v4020, 0
        %4025 = vmatpush.msra.mxu0 0.0
        %4026 = vmatpush.msra.mxu0 0.0
        %4027 = vmatpush.msra.mxu0 0.0
        %4028 = vmatpush.msra.mxu0 0.0
        %4029 = vmatpush.msra.mxu0 0.0
        %4030 = vmatpush.msra.mxu0 0.0
        %4031 = vmatpush.msra.mxu0 0.0
        %4032 = vmatpush.msra.mxu0 0.0
        %4033 = vmatpush.msra.mxu0 0.0
        %4034 = vmatpush.msra.mxu0 0.0
        %4035 = vmatpush.msra.mxu0 0.0
        %4036 = vmatpush.msra.mxu0 0.0
        %4037 = vmatpush.msra.mxu0 %v4007
        %4038 = vmatpush.msra.mxu0 %v4006
        %4039 = vmatpush.msra.mxu0 %v4005
        %4040 = vmatpush.msra.mxu0 %v4004
        %4041 = vmatmul.f32.gmra.mxu0 %v4021
        %v4042 = vpop.f32.mrf.mxu0
        %v4043 = vadd.f32 0.0, %v4042
        %4044 = vmatmul.f32.gmra.mxu0 %v4023
        %v4045 = vpop.f32.mrf.mxu0
        %v4046 = vadd.f32 0.0, %v4045
        %4047 = vdwg.mxu0
        %v4048 = vadd.f32 %v3995, %v4043
        %v4049 = vadd.f32 %v3998, %v4046
        %v4050 = vld [vmem:[%s371] sm:$0xf]
        %v4051 = vld [vmem:[%s371 + $0x18] sm:$0xf]
        %v4052 = vld [vmem:[%s371 + $0x30] sm:$0xf]
        %v4053 = vld [vmem:[%s371 + $0x48] sm:$0xf]
        %v4054 = vld [vmem:[%s5 + $0x60] sm:$0xff]
        %v4055 = vld [vmem:[%s5 + $0x68] sm:$0xff]
        %v4056 = vld [vmem:[%s5 + $0x70] sm:$0xff]
        %v4057 = vld [vmem:[%s5 + $0x78] sm:$0xff]
        %4062 = vst [vmem:[#allocation1] ss:$2 sm:$0xff] %v4050
        %s4063 = scalar_lea.vmem [#allocation1], 1
        %4064 = vst [vmem:[%s4063] ss:$2 sm:$0xff] %v4051
        %s4065 = scalar_lea.vmem [#allocation1], 16
        %4066 = vst [vmem:[%s4065] ss:$2 sm:$0xff] %v4052
        %s4067 = scalar_lea.vmem [#allocation1], 17
        %4068 = vst [vmem:[%s4067] ss:$2 sm:$0xff] %v4053
        %v4069 = vld.sshfl [vmem:[#allocation1] sm:$0xff pattern:$0x75316420]
        %v4070 = vld.sshfl [vmem:[#allocation1 + $0x10] sm:$0xff pattern:$0x75316420]
        %v4071 = vsel %vm362, %v4069, 0
        %v4073 = vsel %vm362, %v4070, 0
        %4075 = vmatpush.msra.mxu0 0.0
        %4076 = vmatpush.msra.mxu0 0.0
        %4077 = vmatpush.msra.mxu0 0.0
        %4078 = vmatpush.msra.mxu0 0.0
        %4079 = vmatpush.msra.mxu0 0.0
        %4080 = vmatpush.msra.mxu0 0.0
        %4081 = vmatpush.msra.mxu0 0.0
        %4082 = vmatpush.msra.mxu0 0.0
        %4083 = vmatpush.msra.mxu0 0.0
        %4084 = vmatpush.msra.mxu0 0.0
        %4085 = vmatpush.msra.mxu0 0.0
        %4086 = vmatpush.msra.mxu0 0.0
        %4087 = vmatpush.msra.mxu0 %v4057
        %4088 = vmatpush.msra.mxu0 %v4056
        %4089 = vmatpush.msra.mxu0 %v4055
        %4090 = vmatpush.msra.mxu0 %v4054
        %4091 = vmatmul.f32.gmra.mxu0 %v4071
        %v4092 = vpop.f32.mrf.mxu0
        %v4093 = vadd.f32 0.0, %v4092
        %4094 = vmatmul.f32.gmra.mxu0 %v4073
        %v4095 = vpop.f32.mrf.mxu0
        %v4096 = vadd.f32 0.0, %v4095
        %4097 = vdwg.mxu0
        %v4098 = vadd.f32 %v4048, %v4093
        %v4099 = vadd.f32 %v4049, %v4096
        %v4100 = vld [vmem:[%s371 + $0x1] sm:$0xf]
        %v4101 = vld [vmem:[%s371 + $0x19] sm:$0xf]
        %v4102 = vld [vmem:[%s371 + $0x31] sm:$0xf]
        %v4103 = vld [vmem:[%s371 + $0x49] sm:$0xf]
        %v4104 = vld [vmem:[%s5 + $0x80] sm:$0xff]
        %v4105 = vld [vmem:[%s5 + $0x88] sm:$0xff]
        %v4106 = vld [vmem:[%s5 + $0x90] sm:$0xff]
        %v4107 = vld [vmem:[%s5 + $0x98] sm:$0xff]
        %4112 = vst [vmem:[#allocation1] ss:$2 sm:$0xff] %v4100
        %s4113 = scalar_lea.vmem [#allocation1], 1
        %4114 = vst [vmem:[%s4113] ss:$2 sm:$0xff] %v4101
        %s4115 = scalar_lea.vmem [#allocation1], 16
        %4116 = vst [vmem:[%s4115] ss:$2 sm:$0xff] %v4102
        %s4117 = scalar_lea.vmem [#allocation1], 17
        %4118 = vst [vmem:[%s4117] ss:$2 sm:$0xff] %v4103
        %v4119 = vld.sshfl [vmem:[#allocation1] sm:$0xff pattern:$0x75316420]
        %v4120 = vld.sshfl [vmem:[#allocation1 + $0x10] sm:$0xff pattern:$0x75316420]
        %v4121 = vsel %vm362, %v4119, 0
        %v4123 = vsel %vm362, %v4120, 0
        %4125 = vmatpush.msra.mxu0 0.0
        %4126 = vmatpush.msra.mxu0 0.0
        %4127 = vmatpush.msra.mxu0 0.0
        %4128 = vmatpush.msra.mxu0 0.0
        %4129 = vmatpush.msra.mxu0 0.0
        %4130 = vmatpush.msra.mxu0 0.0
        %4131 = vmatpush.msra.mxu0 0.0
        %4132 = vmatpush.msra.mxu0 0.0
        %4133 = vmatpush.msra.mxu0 0.0
        %4134 = vmatpush.msra.mxu0 0.0
        %4135 = vmatpush.msra.mxu0 0.0
        %4136 = vmatpush.msra.mxu0 0.0
        %4137 = vmatpush.msra.mxu0 %v4107
        %4138 = vmatpush.msra.mxu0 %v4106
        %4139 = vmatpush.msra.mxu0 %v4105
        %4140 = vmatpush.msra.mxu0 %v4104
        %4141 = vmatmul.f32.gmra.mxu0 %v4121
        %v4142 = vpop.f32.mrf.mxu0
        %v4143 = vadd.f32 0.0, %v4142
        %4144 = vmatmul.f32.gmra.mxu0 %v4123
        %v4145 = vpop.f32.mrf.mxu0
        %v4146 = vadd.f32 0.0, %v4145
        %4147 = vdwg.mxu0
        %v4148 = vadd.f32 %v4098, %v4143
        %v4149 = vadd.f32 %v4099, %v4146
        %v4150 = vld [vmem:[%s371 + $0x2] sm:$0xf]
        %v4151 = vld [vmem:[%s371 + $0x1a] sm:$0xf]
        %v4152 = vld [vmem:[%s371 + $0x32] sm:$0xf]
        %v4153 = vld [vmem:[%s371 + $0x4a] sm:$0xf]
        %v4154 = vld [vmem:[%s5 + $0xa0] sm:$0xff]
        %v4155 = vld [vmem:[%s5 + $0xa8] sm:$0xff]
        %v4156 = vld [vmem:[%s5 + $0xb0] sm:$0xff]
        %v4157 = vld [vmem:[%s5 + $0xb8] sm:$0xff]
        %4162 = vst [vmem:[#allocation1] ss:$2 sm:$0xff] %v4150
        %s4163 = scalar_lea.vmem [#allocation1], 1
        %4164 = vst [vmem:[%s4163] ss:$2 sm:$0xff] %v4151
        %s4165 = scalar_lea.vmem [#allocation1], 16
        %4166 = vst [vmem:[%s4165] ss:$2 sm:$0xff] %v4152
        %s4167 = scalar_lea.vmem [#allocation1], 17
        %4168 = vst [vmem:[%s4167] ss:$2 sm:$0xff] %v4153
        %v4169 = vld.sshfl [vmem:[#allocation1] sm:$0xff pattern:$0x75316420]
        %v4170 = vld.sshfl [vmem:[#allocation1 + $0x10] sm:$0xff pattern:$0x75316420]
        %v4171 = vsel %vm362, %v4169, 0
        %v4173 = vsel %vm362, %v4170, 0
        %4175 = vmatpush.msra.mxu0 0.0
        %4176 = vmatpush.msra.mxu0 0.0
        %4177 = vmatpush.msra.mxu0 0.0
        %4178 = vmatpush.msra.mxu0 0.0
        %4179 = vmatpush.msra.mxu0 0.0
        %4180 = vmatpush.msra.mxu0 0.0
        %4181 = vmatpush.msra.mxu0 0.0
        %4182 = vmatpush.msra.mxu0 0.0
        %4183 = vmatpush.msra.mxu0 0.0
        %4184 = vmatpush.msra.mxu0 0.0
        %4185 = vmatpush.msra.mxu0 0.0
        %4186 = vmatpush.msra.mxu0 0.0
        %4187 = vmatpush.msra.mxu0 %v4157
        %4188 = vmatpush.msra.mxu0 %v4156
        %4189 = vmatpush.msra.mxu0 %v4155
        %4190 = vmatpush.msra.mxu0 %v4154
        %4191 = vmatmul.f32.gmra.mxu0 %v4171
        %v4192 = vpop.f32.mrf.mxu0
        %v4193 = vadd.f32 0.0, %v4192
        %4194 = vmatmul.f32.gmra.mxu0 %v4173
        %v4195 = vpop.f32.mrf.mxu0
        %v4196 = vadd.f32 0.0, %v4195
        %4197 = vdwg.mxu0
        %v4198 = vadd.f32 %v4148, %v4193
        %v4199 = vadd.f32 %v4149, %v4196
        %v4200 = vld [vmem:[%s2035] sm:$0xf]
        %v4201 = vld [vmem:[%s2035 + $0x18] sm:$0xf]
        %v4202 = vld [vmem:[%s2035 + $0x30] sm:$0xf]
        %v4203 = vld [vmem:[%s2035 + $0x48] sm:$0xf]
        %v4204 = vld [vmem:[%s5 + $0xc0] sm:$0xff]
        %v4205 = vld [vmem:[%s5 + $0xc8] sm:$0xff]
        %v4206 = vld [vmem:[%s5 + $0xd0] sm:$0xff]
        %v4207 = vld [vmem:[%s5 + $0xd8] sm:$0xff]
        %4212 = vst [vmem:[#allocation1] ss:$2 sm:$0xff] %v4200
        %s4213 = scalar_lea.vmem [#allocation1], 1
        %4214 = vst [vmem:[%s4213] ss:$2 sm:$0xff] %v4201
        %s4215 = scalar_lea.vmem [#allocation1], 16
        %4216 = vst [vmem:[%s4215] ss:$2 sm:$0xff] %v4202
        %s4217 = scalar_lea.vmem [#allocation1], 17
        %4218 = vst [vmem:[%s4217] ss:$2 sm:$0xff] %v4203
        %v4219 = vld.sshfl [vmem:[#allocation1] sm:$0xff pattern:$0x75316420]
        %v4220 = vld.sshfl [vmem:[#allocation1 + $0x10] sm:$0xff pattern:$0x75316420]
        %v4221 = vsel %vm362, %v4219, 0
        %v4223 = vsel %vm362, %v4220, 0
        %4225 = vmatpush.msra.mxu0 0.0
        %4226 = vmatpush.msra.mxu0 0.0
        %4227 = vmatpush.msra.mxu0 0.0
        %4228 = vmatpush.msra.mxu0 0.0
        %4229 = vmatpush.msra.mxu0 0.0
        %4230 = vmatpush.msra.mxu0 0.0
        %4231 = vmatpush.msra.mxu0 0.0
        %4232 = vmatpush.msra.mxu0 0.0
        %4233 = vmatpush.msra.mxu0 0.0
        %4234 = vmatpush.msra.mxu0 0.0
        %4235 = vmatpush.msra.mxu0 0.0
        %4236 = vmatpush.msra.mxu0 0.0
        %4237 = vmatpush.msra.mxu0 %v4207
        %4238 = vmatpush.msra.mxu0 %v4206
        %4239 = vmatpush.msra.mxu0 %v4205
        %4240 = vmatpush.msra.mxu0 %v4204
        %4241 = vmatmul.f32.gmra.mxu0 %v4221
        %v4242 = vpop.f32.mrf.mxu0
        %v4243 = vadd.f32 0.0, %v4242
        %4244 = vmatmul.f32.gmra.mxu0 %v4223
        %v4245 = vpop.f32.mrf.mxu0
        %v4246 = vadd.f32 0.0, %v4245
        %4247 = vdwg.mxu0
        %v4248 = vadd.f32 %v4198, %v4243
        %v4249 = vadd.f32 %v4199, %v4246
        %v4250 = vld [vmem:[%s2035 + $0x1] sm:$0xf]
        %v4251 = vld [vmem:[%s2035 + $0x19] sm:$0xf]
        %v4252 = vld [vmem:[%s2035 + $0x31] sm:$0xf]
        %v4253 = vld [vmem:[%s2035 + $0x49] sm:$0xf]
        %v4254 = vld [vmem:[%s5 + $0xe0] sm:$0xff]
        %v4255 = vld [vmem:[%s5 + $0xe8] sm:$0xff]
        %v4256 = vld [vmem:[%s5 + $0xf0] sm:$0xff]
        %v4257 = vld [vmem:[%s5 + $0xf8] sm:$0xff]
        %4262 = vst [vmem:[#allocation1] ss:$2 sm:$0xff] %v4250
        %s4263 = scalar_lea.vmem [#allocation1], 1
        %4264 = vst [vmem:[%s4263] ss:$2 sm:$0xff] %v4251
        %s4265 = scalar_lea.vmem [#allocation1], 16
        %4266 = vst [vmem:[%s4265] ss:$2 sm:$0xff] %v4252
        %s4267 = scalar_lea.vmem [#allocation1], 17
        %4268 = vst [vmem:[%s4267] ss:$2 sm:$0xff] %v4253
        %v4269 = vld.sshfl [vmem:[#allocation1] sm:$0xff pattern:$0x75316420]
        %v4270 = vld.sshfl [vmem:[#allocation1 + $0x10] sm:$0xff pattern:$0x75316420]
        %v4271 = vsel %vm362, %v4269, 0
        %v4273 = vsel %vm362, %v4270, 0
        %4275 = vmatpush.msra.mxu0 0.0
        %4276 = vmatpush.msra.mxu0 0.0
        %4277 = vmatpush.msra.mxu0 0.0
        %4278 = vmatpush.msra.mxu0 0.0
        %4279 = vmatpush.msra.mxu0 0.0
        %4280 = vmatpush.msra.mxu0 0.0
        %4281 = vmatpush.msra.mxu0 0.0
        %4282 = vmatpush.msra.mxu0 0.0
        %4283 = vmatpush.msra.mxu0 0.0
        %4284 = vmatpush.msra.mxu0 0.0
        %4285 = vmatpush.msra.mxu0 0.0
        %4286 = vmatpush.msra.mxu0 0.0
        %4287 = vmatpush.msra.mxu0 %v4257
        %4288 = vmatpush.msra.mxu0 %v4256
        %4289 = vmatpush.msra.mxu0 %v4255
        %4290 = vmatpush.msra.mxu0 %v4254
        %4291 = vmatmul.f32.gmra.mxu0 %v4271
        %v4292 = vpop.f32.mrf.mxu0
        %v4293 = vadd.f32 0.0, %v4292
        %4294 = vmatmul.f32.gmra.mxu0 %v4273
        %v4295 = vpop.f32.mrf.mxu0
        %v4296 = vadd.f32 0.0, %v4295
        %4297 = vdwg.mxu0
        %v4298 = vadd.f32 %v4248, %v4293
        %v4299 = vadd.f32 %v4249, %v4296
        %v4300 = vld [vmem:[%s2035 + $0x2] sm:$0xf]
        %v4301 = vld [vmem:[%s2035 + $0x1a] sm:$0xf]
        %v4302 = vld [vmem:[%s2035 + $0x32] sm:$0xf]
        %v4303 = vld [vmem:[%s2035 + $0x4a] sm:$0xf]
        %v4304 = vld [vmem:[%s5 + $0x100] sm:$0xff]
        %v4305 = vld [vmem:[%s5 + $0x108] sm:$0xff]
        %v4306 = vld [vmem:[%s5 + $0x110] sm:$0xff]
        %v4307 = vld [vmem:[%s5 + $0x118] sm:$0xff]
        %4312 = vst [vmem:[#allocation1] ss:$2 sm:$0xff] %v4300
        %s4313 = scalar_lea.vmem [#allocation1], 1
        %4314 = vst [vmem:[%s4313] ss:$2 sm:$0xff] %v4301
        %s4315 = scalar_lea.vmem [#allocation1], 16
        %4316 = vst [vmem:[%s4315] ss:$2 sm:$0xff] %v4302
        %s4317 = scalar_lea.vmem [#allocation1], 17
        %4318 = vst [vmem:[%s4317] ss:$2 sm:$0xff] %v4303
        %v4319 = vld.sshfl [vmem:[#allocation1] sm:$0xff pattern:$0x75316420]
        %v4320 = vld.sshfl [vmem:[#allocation1 + $0x10] sm:$0xff pattern:$0x75316420]
        %v4321 = vsel %vm362, %v4319, 0
        %v4323 = vsel %vm362, %v4320, 0
        %4325 = vmatpush.msra.mxu0 0.0
        %4326 = vmatpush.msra.mxu0 0.0
        %4327 = vmatpush.msra.mxu0 0.0
        %4328 = vmatpush.msra.mxu0 0.0
        %4329 = vmatpush.msra.mxu0 0.0
        %4330 = vmatpush.msra.mxu0 0.0
        %4331 = vmatpush.msra.mxu0 0.0
        %4332 = vmatpush.msra.mxu0 0.0
        %4333 = vmatpush.msra.mxu0 0.0
        %4334 = vmatpush.msra.mxu0 0.0
        %4335 = vmatpush.msra.mxu0 0.0
        %4336 = vmatpush.msra.mxu0 0.0
        %4337 = vmatpush.msra.mxu0 %v4307
        %4338 = vmatpush.msra.mxu0 %v4306
        %4339 = vmatpush.msra.mxu0 %v4305
        %4340 = vmatpush.msra.mxu0 %v4304
        %4341 = vmatmul.f32.gmra.mxu0 %v4321
        %v4342 = vpop.f32.mrf.mxu0
        %v4343 = vadd.f32 0.0, %v4342
        %4344 = vmatmul.f32.gmra.mxu0 %v4323
        %v4345 = vpop.f32.mrf.mxu0
        %v4346 = vadd.f32 0.0, %v4345
        %4347 = vdwg.mxu0
        %v4348 = vadd.f32 %v4298, %v4343
        %v4349 = vadd.f32 %v4299, %v4346
        %v4350 = vld [vmem:[%s6] sm:$0x1]
        %v4352 = vperm.slane %v4350, 0
        %v4354 = vadd.f32 %v4348, %v4352
        %v4355 = vadd.f32 %v4349, %v4352
        %v4358 = vrot.slane %v4354, 4
        %v4359 = vrot.slane %v4355, 4
        %4362 = vst.msk [vmem:[#allocation2] sm:$0xf] %vm3899, %v4354
        %4363 = vst.msk [vmem:[#allocation2 + $0x18] sm:$0xf] %vm3899, %v4358
        %4364 = vst.msk [vmem:[#allocation2 + $0x30] sm:$0xf] %vm3899, %v4355
        %4365 = vst.msk [vmem:[#allocation2 + $0x48] sm:$0xf] %vm3899, %v4359
        %v4366 = vld [vmem:[#allocation2] ss:$2 sm:$0x3]
        %v4367 = vld [vmem:[%s2968] ss:$2 sm:$0x3]
        %v4368 = vld [vmem:[%s2982] ss:$2 sm:$0x3]
        %v4369 = vld [vmem:[%s2984] ss:$2 sm:$0x3]
        %v4370 = vld [vmem:[%s371] ss:$2 sm:$0x3]
        %v4371 = vld [vmem:[%s2999] ss:$2 sm:$0x3]
        %v4372 = vld [vmem:[%s3013] ss:$2 sm:$0x3]
        %v4373 = vld [vmem:[%s3015] ss:$2 sm:$0x3]
        %v4374 = vmax.f32 %v4366, %v4368
        %v4375 = vmax.f32 %v4367, %v4369
        %v4376 = vmax.f32 %v4370, %v4372
        %v4377 = vmax.f32 %v4371, %v4373
        %v4378 = vmax.f32 %v4374, %v4376
        %v4379 = vmax.f32 %v4375, %v4377
        %4382 = vst [vmem:[#allocation1] ss:$4 sm:$0xff] %v4378
        %s4383 = scalar_lea.vmem [#allocation1], 1
        %4384 = vst [vmem:[%s4383] ss:$4 sm:$0xff] %v4379
        %v4385 = vld.sshfl [vmem:[#allocation1] sm:$0xff pattern:$0x73625140]
        %v4387 = vsel %vm3899, %v4385, 0.0
        %v4388 = vrot.slane %v4387, 4
        %v4389 = vadd.f32 %v4387, %v4388
        %v4390 = vrot.slane %v4389, 2
        %v4391 = vadd.f32 %v4389, %v4390
        %v4392 = vrot.slane %v4391, 1
        %v4393 = vadd.f32 %v4391, %v4392
        %v4394 = vmul.f32 %v4393, 0.25
        %v4395 = vld [vmem:[%s7] sm:$0xff]
        %v4396 = vld [vmem:[%s7 + $0x8] sm:$0xff]
        %v4397 = vld [vmem:[%s7 + $0x10] sm:$0xff]
        %v4398 = vld [vmem:[%s7 + $0x18] sm:$0xff]
        %v4399 = vld [vmem:[%s8] sm:$0x1]
        %v4401 = vsel %vm362, %v4394, 0
        %4403 = vmatpush.msra.mxu0 0.0
        %4404 = vmatpush.msra.mxu0 0.0
        %4405 = vmatpush.msra.mxu0 0.0
        %4406 = vmatpush.msra.mxu0 0.0
        %4407 = vmatpush.msra.mxu0 0.0
        %4408 = vmatpush.msra.mxu0 0.0
        %4409 = vmatpush.msra.mxu0 0.0
        %4410 = vmatpush.msra.mxu0 0.0
        %4411 = vmatpush.msra.mxu0 0.0
        %4412 = vmatpush.msra.mxu0 0.0
        %4413 = vmatpush.msra.mxu0 0.0
        %4414 = vmatpush.msra.mxu0 0.0
        %4415 = vmatpush.msra.mxu0 %v4398
        %4416 = vmatpush.msra.mxu0 %v4397
        %4417 = vmatpush.msra.mxu0 %v4396
        %4418 = vmatpush.msra.mxu0 %v4395
        %4419 = vmatmul.f32.gmra.mxu0 %v4401
        %v4420 = vpop.f32.mrf.mxu0
        %v4421 = vadd.f32 %v4399, %v4420
        %4422 = vdwg.mxu0
        %vm4423 = vcmask 32768
        %4424 = vst.msk [vmem:[%s324] sm:$0x1] %vm4423, %v4421
        %s4425 = sand.u32 %s225, 1
        %s4426 = scalar_lea.sflag [#allocation4], %s4425
        %s4427 = sand.u32 %s225, 1
        %s4428 = scalar_lea.vmem [#allocation3], %s4427
        // Predicated region
        $region57: #{tpu_custom_call.1} parent=55 // pred_check
          %p4429 = pneg %p235
        $region58: #{tpu_custom_call.1} parent=55 // pred_check_branch
          %4431 = sbr.rel (%p4429) target = $region60
        $region59: #{tpu_custom_call.1} parent=55 // pred_region
          %4433 = vsyncadd %s4426, 0
          %s4434 = scalar_lea.hbm %s9, %s23
          %s4436 = sshll.u32 %s4428, 4
          %s4437 = int_to_ptr.vmem [resolvable:$true] %s4436
          %s4438 = sshll.u32 %s4434, 4
          %s4439 = int_to_ptr.hbm [resolvable:$true] %s4438
          %4441 = dma.vmem_to_hbm [thread:$0]  %s4437, 16, %s4439, %s4426
        $region60: #{tpu_custom_call.1} parent=55 // pred_fallthru
          _
      $region56: #{tpu_custom_call.1} parent=5 // pred_fallthru
        _
      %p4442 = scmp.le.s32.totalorder 2, %s18
      // Predicated region
      $region61: #{tpu_custom_call.1} parent=5 // pred_check
        %p4443 = pneg %p4442
      $region62: #{tpu_custom_call.1} parent=5 // pred_check_branch
        %4445 = sbr.rel (%p4443) target = $region64
      $region63: #{tpu_custom_call.1} parent=5 // pred_region
        %s4446 = ssub.s32 %s18, 2
        // Predicated region
        $region65: #{tpu_custom_call.1} parent=63 // pred_check
          %p4447 = pneg %p241
        $region66: #{tpu_custom_call.1} parent=63 // pred_check_branch
          %4449 = sbr.rel (%p4447) target = $region68
        $region67: #{tpu_custom_call.1} parent=63 // pred_region
          %s4450 = sand.u32 %s226, 1
          %s4451 = scalar_lea.sflag [#allocation4], %s4450
          %s4452 = sand.u32 %s226, 1
          %s4453 = scalar_lea.vmem [#allocation3], %s4452
          %4455 = dma.done %s4451, 16
        $region68: #{tpu_custom_call.1} parent=63 // pred_fallthru
          _
      $region64: #{tpu_custom_call.1} parent=5 // pred_fallthru
        _
    $region6: #{tpu_custom_call.1} parent=1 // loop_footer
      %s22 = sadd.s32 1, %s18
    $region7: #{tpu_custom_call.1} parent=1 // loop_footer_branch
      %17 = sbr.rel target = $region3
    $region8: #{tpu_custom_call.1} parent=1 // loop_exit
      _
    %4456 = vsyncpa [#allocation4], 1
    %s4457 = scalar_lea.sflag [#allocation4], 1
    %4458 = vsyncpa %s4457, 1

</llo_original>
